<compile_context>
chip_gen: v7x
topology: tpu7x:2x2x1
jax: 0.10.0
libtpu: 0.0.40
codegen_flags: <defaults>
</compile_context>

<pallas_src>
import jax
import jax.numpy as jnp
import numpy as np
from jax import lax
from jax.experimental import pallas as pl
from jax.experimental.pallas import tpu as pltpu

GROWTH_RATE = 32
EPS = 1e-5


# --------------------------------------------------------------------------- helpers
def _cparams():
    return pltpu.CompilerParams(
        dimension_semantics=("parallel",),
        vmem_limit_bytes=32 * 1024 * 1024,
    )


def _pick_row_tile(m, target=1024):
    """Largest multiple-of-8 tile <= `target` rows that divides M and leaves at
    least 2 grid steps (so pipelining / megacore sharding actually engage)."""
    assert m % 8 == 0, "N*H*W must be a multiple of 8"
    for tm in range(min(target, m), 7, -8):
        if m % tm == 0 and m // tm >= 2:
            return tm
    return m


def _pack_partial_sums(s, sq):
    """Pack (1,C) col-sums / col-sums-of-squares into one (8,C) block:
    rows 0-3 hold the sums, rows 4-7 the sums of squares (8-sublane aligned)."""
    c = s.shape[-1]
    row = lax.broadcasted_iota(jnp.int32, (8, c), 0)
    return jnp.where(row < 4, jnp.broadcast_to(s, (8, c)), jnp.broadcast_to(sq, (8, c)))


def _finalize_bn(psums, m, gamma, beta):
    """Reduce per-tile partial sums -> BN scale/shift (training-mode, biased var)."""
    ps = psums.reshape(-1, 8, psums.shape[-1])
    total = jnp.sum(ps[:, 0, :], axis=0)
    total_sq = jnp.sum(ps[:, 4, :], axis=0)
    mean = total / m
    # TODO(synk): for very large M, switch to chunked/compensated summation.
    var = jnp.maximum(total_sq / m - mean * mean, 0.0)      # biased, like torch BN
    scale = gamma * lax.rsqrt(var + EPS)
    shift = beta - mean * scale
    return (scale.reshape(1, -1).astype(jnp.float32),
            shift.reshape(1, -1).astype(jnp.float32))


# --------------------------------------------------------------------------- kernels
def _col_stats_kernel(x_ref, ps_ref):
    """Per-tile partial column sums / sums of squares of x (for BN1 stats)."""
    x = x_ref[...]
    s = jnp.sum(x, axis=0, keepdims=True)
    sq = jnp.sum(x * x, axis=0, keepdims=True)
    ps_ref[...] = _pack_partial_sums(s, sq)


def _bn1_relu_conv1_kernel(x_ref, s1_ref, t1_ref, w1_ref, h_ref, ps_ref):
    """Tiled: BN1 (precomputed scale/shift) -> ReLU -> 1x1 conv as bf16 MXU matmul.
    Also emits per-tile partial sums of h so BN2 stats need no extra pass over h."""
    a1 = jnp.maximum(x_ref[...] * s1_ref[...] + t1_ref[...], 0.0)        # (TM, Cin) f32
    h = jnp.dot(a1.astype(jnp.bfloat16), w1_ref[...],                    # w1: bf16 (Cin, C1)
                preferred_element_type=jnp.float32)                      # (TM, C1) f32
    h_ref[...] = h
    s = jnp.sum(h, axis=0, keepdims=True)
    sq = jnp.sum(h * h, axis=0, keepdims=True)
    ps_ref[...] = _pack_partial_sums(s, sq)


def _bn2_relu_kernel(h_ref, s2_ref, t2_ref, a2_ref):
    """Tiled: BN2 (precomputed scale/shift) -> ReLU, stored bf16 (halves conv2 input bytes)."""
    a2_ref[...] = jnp.maximum(h_ref[...] * s2_ref[...] + t2_ref[...], 0.0).astype(jnp.bfloat16)


def _conv2_matmul_kernel(p_ref, w_ref, o_ref):
    """3x3 conv as one full-K matmul per M tile: (TM, 9*C1) x (9*C1, 128), f32 acc.
    No accumulator scratch, no init/finalize phases, lane-dense 128-wide output."""
    o_ref[...] = jnp.dot(p_ref[...], w_ref[...], preferred_element_type=jnp.float32)


# --------------------------------------------------------------------------- forward
def bottleneck_forward_nhwc(x_nhwc, params):
    N, H, W, Cin = x_nhwc.shape
    C1 = 4 * GROWTH_RATE
    C2 = GROWTH_RATE
    C2P = 128                       # conv2 output padded to a full lane width
    M = N * H * W
    TM = _pick_row_tile(M)
    nT = M // TM

    x_rows = x_nhwc.reshape(M, Cin).astype(jnp.float32)

    # ---- BN1 statistics: per-tile partial sums (Pallas) + tiny finalize outside.
    ps1 = pl.pallas_call(
        _col_stats_kernel,
        out_shape=jax.ShapeDtypeStruct((nT * 8, Cin), jnp.float32),
        grid=(nT,),
        in_specs=[pl.BlockSpec((TM, Cin), lambda i: (i, 0))],
        out_specs=pl.BlockSpec((8, Cin), lambda i: (i, 0)),
        compiler_params=_cparams(),
    )(x_rows)
    scale1, shift1 = _finalize_bn(ps1, M, params["g1"], params["b1"])

    # ---- BN1 -> ReLU -> 1x1 conv (bf16 matmul), with fused BN2 partial sums.
    w1 = jnp.transpose(params["w1"][:, :, 0, 0], (1, 0)).astype(jnp.bfloat16)   # (Cin, C1)
    h, ps2 = pl.pallas_call(
        _bn1_relu_conv1_kernel,
        out_shape=(jax.ShapeDtypeStruct((M, C1), jnp.float32),
                   jax.ShapeDtypeStruct((nT * 8, C1), jnp.float32)),
        grid=(nT,),
        in_specs=[pl.BlockSpec((TM, Cin), lambda i: (i, 0)),
                  pl.BlockSpec((1, Cin), lambda i: (0, 0)),
                  pl.BlockSpec((1, Cin), lambda i: (0, 0)),
                  pl.BlockSpec((Cin, C1), lambda i: (0, 0))],
        out_specs=[pl.BlockSpec((TM, C1), lambda i: (i, 0)),
                   pl.BlockSpec((8, C1), lambda i: (i, 0))],
        compiler_params=_cparams(),
    )(x_rows, scale1, shift1, w1)
    scale2, shift2 = _finalize_bn(ps2, M, params["g2"], params["b2"])

    # ---- BN2 -> ReLU (tiled), stored as bf16 so the 3x3-conv stream is half-width.
    a2_rows = pl.pallas_call(
        _bn2_relu_kernel,
        out_shape=jax.ShapeDtypeStruct((M, C1), jnp.bfloat16),
        grid=(nT,),
        in_specs=[pl.BlockSpec((TM, C1), lambda i: (i, 0)),
                  pl.BlockSpec((1, C1), lambda i: (0, 0)),
                  pl.BlockSpec((1, C1), lambda i: (0, 0))],
        out_specs=pl.BlockSpec((TM, C1), lambda i: (i, 0)),
        compiler_params=_cparams(),
    )(h, scale2, shift2)

    # ---- 3x3 conv: im2col (bf16, XLA data-movement glue) + one full-K matmul per tile.
    # TODO(synk): the im2col gather still amplifies HBM reads ~9x; next step is an
    # in-kernel halo formulation (manual DMA / Element index_map + 9 shifted dots).
    a4 = a2_rows.reshape(N, H, W, C1)
    ap = jnp.pad(a4, ((0, 0), (1, 1), (1, 1), (0, 0)))                   # zero pad H, W
    patches = jnp.concatenate(
        [ap[:, ky:ky + H, kx:kx + W, :] for ky in range(3) for kx in range(3)],
        axis=-1,
    ).reshape(M, 9 * C1)                                                  # (M, 1152) bf16

    # OIHW -> (ky, kx, C1, C2) to match patch ordering, zero-padded to 128 lanes.
    w2 = jnp.transpose(params["w2"], (2, 3, 1, 0)).reshape(9 * C1, C2)
    w2p = jnp.pad(w2, ((0, 0), (0, C2P - C2))).astype(jnp.bfloat16)       # (1152, 128)

    out_p = pl.pallas_call(
        _conv2_matmul_kernel,
        out_shape=jax.ShapeDtypeStruct((M, C2P), jnp.float32),
        grid=(nT,),
        in_specs=[pl.BlockSpec((TM, 9 * C1), lambda i: (i, 0)),
                  pl.BlockSpec((9 * C1, C2P), lambda i: (0, 0))],
        out_specs=pl.BlockSpec((TM, C2P), lambda i: (i, 0)),
        compiler_params=_cparams(),
    )(patches, w2p)

    xp_nhwc = out_p[:, :C2].reshape(N, H, W, C2)
    return jnp.concatenate([xp_nhwc, x_nhwc.astype(jnp.float32)], axis=-1)   # cat([xp, x])


def bottleneck_forward(x_nchw, params):
    """NCHW wrapper matching the PyTorch module interface. A full DenseNet should
    stay NHWC between blocks and call bottleneck_forward_nhwc directly, converting
    layout only once at the network boundary (saves two transposes per layer)."""
    x_nhwc = jnp.transpose(x_nchw, (0, 2, 3, 1))
    out_nhwc = bottleneck_forward_nhwc(x_nhwc, params)
    return jnp.transpose(out_nhwc, (0, 3, 1, 2))


# --------------------------------------------------------------------------- reference
def _reference_forward(x, params):
    """Pure-JAX reference (training-mode BN), NCHW, f32 HIGHEST precision."""
    def bn(t, g, b):
        mu = jnp.mean(t, axis=(0, 2, 3), keepdims=True)
        var = jnp.mean((t - mu) ** 2, axis=(0, 2, 3), keepdims=True)
        return (t - mu) * lax.rsqrt(var + EPS) * g.reshape(1, -1, 1, 1) + b.reshape(1, -1, 1, 1)

    a = jax.nn.relu(bn(x, params["g1"], params["b1"]))
    h = lax.conv_general_dilated(a, params["w1"], (1, 1), "VALID",
                                 dimension_numbers=("NCHW", "OIHW", "NCHW"),
                                 precision=lax.Precision.HIGHEST)
    a2 = jax.nn.relu(bn(h, params["g2"], params["b2"]))
    xp = lax.conv_general_dilated(a2, params["w2"], (1, 1), ((1, 1), (1, 1)),
                                  dimension_numbers=("NCHW", "OIHW", "NCHW"),
                                  precision=lax.Precision.HIGHEST)
    return jnp.concatenate([xp, x], axis=1)


if __name__ == "__main__":
    N, Cin, H, W = 2, 4, 16, 16
    C1 = 4 * GROWTH_RATE
    C2 = GROWTH_RATE

    key = jax.random.PRNGKey(0)
    kx, k1, k2, k3, k4, k5, k6 = jax.random.split(key, 7)

    x = jax.random.normal(kx, (N, Cin, H, W), dtype=jnp.float32)
    params = {
        "g1": 1.0 + 0.1 * jax.random.normal(k1, (Cin,), jnp.float32),
        "b1": 0.1 * jax.random.normal(k2, (Cin,), jnp.float32),
        "w1": jax.random.normal(k3, (C1, Cin, 1, 1), jnp.float32) * np.sqrt(2.0 / Cin),
        "g2": 1.0 + 0.1 * jax.random.normal(k4, (C1,), jnp.float32),
        "b2": 0.1 * jax.random.normal(k5, (C1,), jnp.float32),
        "w2": jax.random.normal(k6, (C2, C1, 3, 3), jnp.float32) * np.sqrt(2.0 / (C1 * 9)),
    }

    out = jax.block_until_ready(jax.jit(bottleneck_forward)(x, params))
    assert out.shape == (N, C2 + Cin, H, W), out.shape

    ref = jax.block_until_ready(_reference_forward(x, params))
    np.testing.assert_allclose(np.asarray(out), np.asarray(ref), rtol=2e-2, atol=2e-2)

    print("KERNEL_OK")
</pallas_src>

<mosaic_0001>
module attributes {stable_mosaic.version = 11 : i64} {
  func.func @_col_stats_kernel(%arg0: i32, %arg1: memref<256x4xf32, #tpu.memory_space<vmem>>, %arg2: memref<8x4xf32, #tpu.memory_space<vmem>>) attributes {dimension_semantics = [#tpu.dimension_semantics<parallel>], iteration_bounds = array<i64: 2>, scalar_prefetch = 0 : i64, scratch_operands = 0 : i64, tpu.core_type = #tpu.core_type<tc>, window_params = [{transform_indices = @transform_0, window_bounds = array<i64: 256, 4>}, {transform_indices = @transform_1, window_bounds = array<i64: 8, 4>}]} {
    %c0 = arith.constant 0 : index
    %c0_0 = arith.constant 0 : index
    %0 = vector.load %arg1[%c0, %c0_0] : memref<256x4xf32, #tpu.memory_space<vmem>>, vector<256x4xf32>
    %cst = arith.constant dense<0.000000e+00> : vector<4xf32>
    %1 = vector.multi_reduction <add>, %0, %cst [0] : vector<256x4xf32> to vector<4xf32>
    %2 = vector.shape_cast %1 : vector<4xf32> to vector<1x4xf32>
    %3 = arith.mulf %0, %0 : vector<256x4xf32>
    %cst_1 = arith.constant dense<0.000000e+00> : vector<4xf32>
    %4 = vector.multi_reduction <add>, %3, %cst_1 [0] : vector<256x4xf32> to vector<4xf32>
    %5 = vector.shape_cast %4 : vector<4xf32> to vector<1x4xf32>
    %6 = tpu.iota {dimensions = array<i32: 0>} : vector<8x4xi32>
    %c4_i32 = arith.constant 4 : i32
    %7 = vector.broadcast %c4_i32 : i32 to vector<8x4xi32>
    %8 = arith.cmpi slt, %6, %7 : vector<8x4xi32>
    %9 = vector.shape_cast %2 : vector<1x4xf32> to vector<1x4xf32>
    %10 = vector.broadcast %9 : vector<1x4xf32> to vector<8x4xf32>
    %11 = vector.shape_cast %5 : vector<1x4xf32> to vector<1x4xf32>
    %12 = vector.broadcast %11 : vector<1x4xf32> to vector<8x4xf32>
    %13 = arith.select %8, %10, %12 : vector<8x4xi1>, vector<8x4xf32>
    %c0_2 = arith.constant 0 : index
    %c0_3 = arith.constant 0 : index
    %14 = vector.load %arg2[%c0_2, %c0_3] : memref<8x4xf32, #tpu.memory_space<vmem>>, vector<8x4xf32>
    tpu.vector_store %arg2[%c0_2, %c0_3], %13 {strides = array<i32>} : memref<8x4xf32, #tpu.memory_space<vmem>>, vector<8x4xf32>,
    return
  }
  func.func @transform_0(%arg0: i32) -> (i32, i32) {
    %c0_i32 = arith.constant 0 : i32
    %c0_i32_0 = arith.constant 0 : i32
    return %arg0, %c0_i32 : i32, i32
  }
  func.func @transform_1(%arg0: i32) -> (i32, i32) {
    %c0_i32 = arith.constant 0 : i32
    %c0_i32_0 = arith.constant 0 : i32
    return %arg0, %c0_i32 : i32, i32
  }
}

module attributes {stable_mosaic.version = 11 : i64} {
  func.func @_bn1_relu_conv1_kernel(%arg0: i32, %arg1: memref<256x4xf32, #tpu.memory_space<vmem>>, %arg2: memref<1x4xf32, #tpu.memory_space<vmem>>, %arg3: memref<1x4xf32, #tpu.memory_space<vmem>>, %arg4: memref<4x128xbf16, #tpu.memory_space<vmem>>, %arg5: memref<256x128xf32, #tpu.memory_space<vmem>>, %arg6: memref<8x128xf32, #tpu.memory_space<vmem>>) attributes {dimension_semantics = [#tpu.dimension_semantics<parallel>], iteration_bounds = array<i64: 2>, scalar_prefetch = 0 : i64, scratch_operands = 0 : i64, tpu.core_type = #tpu.core_type<tc>, window_params = [{transform_indices = @transform_0, window_bounds = array<i64: 256, 4>}, {pipeline_mode = #tpu.pipeline_mode<synchronous>, transform_indices = @transform_1, window_bounds = array<i64: 1, 4>}, {pipeline_mode = #tpu.pipeline_mode<synchronous>, transform_indices = @transform_2, window_bounds = array<i64: 1, 4>}, {pipeline_mode = #tpu.pipeline_mode<synchronous>, transform_indices = @transform_3, window_bounds = array<i64: 4, 128>}, {transform_indices = @transform_4, window_bounds = array<i64: 256, 128>}, {transform_indices = @transform_5, window_bounds = array<i64: 8, 128>}]} {
    %c0 = arith.constant 0 : index
    %c0_0 = arith.constant 0 : index
    %0 = vector.load %arg1[%c0, %c0_0] : memref<256x4xf32, #tpu.memory_space<vmem>>, vector<256x4xf32>
    %c0_1 = arith.constant 0 : index
    %c0_2 = arith.constant 0 : index
    %1 = vector.load %arg2[%c0_1, %c0_2] : memref<1x4xf32, #tpu.memory_space<vmem>>, vector<1x4xf32>
    %2 = vector.broadcast %1 : vector<1x4xf32> to vector<256x4xf32>
    %3 = arith.mulf %0, %2 : vector<256x4xf32>
    %c0_3 = arith.constant 0 : index
    %c0_4 = arith.constant 0 : index
    %4 = vector.load %arg3[%c0_3, %c0_4] : memref<1x4xf32, #tpu.memory_space<vmem>>, vector<1x4xf32>
    %5 = vector.broadcast %4 : vector<1x4xf32> to vector<256x4xf32>
    %6 = arith.addf %3, %5 : vector<256x4xf32>
    %cst = arith.constant 0.000000e+00 : f32
    %7 = vector.broadcast %cst : f32 to vector<256x4xf32>
    %8 = arith.maximumf %6, %7 : vector<256x4xf32>
    %9 = arith.truncf %8 : vector<256x4xf32> to vector<256x4xbf16>
    %c0_5 = arith.constant 0 : index
    %c0_6 = arith.constant 0 : index
    %10 = vector.load %arg4[%c0_5, %c0_6] : memref<4x128xbf16, #tpu.memory_space<vmem>>, vector<4x128xbf16>
    %cst_7 = arith.constant dense<0.000000e+00> : vector<256x128xf32>
    %11 = tpu.matmul %9, %10, %cst_7 {dimension_numbers = #tpu.dot_dimension_numbers<[1], [0], [0], [1], [0, 0, 1, 1], [], []>} : vector<256x4xbf16>, vector<4x128xbf16>, vector<256x128xf32> -> vector<256x128xf32>
    %c0_8 = arith.constant 0 : index
    %c0_9 = arith.constant 0 : index
    %12 = vector.load %arg5[%c0_8, %c0_9] : memref<256x128xf32, #tpu.memory_space<vmem>>, vector<256x128xf32>
    tpu.vector_store %arg5[%c0_8, %c0_9], %11 {strides = array<i32>} : memref<256x128xf32, #tpu.memory_space<vmem>>, vector<256x128xf32>,
    %cst_10 = arith.constant dense<0.000000e+00> : vector<128xf32>
    %13 = vector.multi_reduction <add>, %11, %cst_10 [0] : vector<256x128xf32> to vector<128xf32>
    %14 = vector.shape_cast %13 : vector<128xf32> to vector<1x128xf32>
    %15 = arith.mulf %11, %11 : vector<256x128xf32>
    %cst_11 = arith.constant dense<0.000000e+00> : vector<128xf32>
    %16 = vector.multi_reduction <add>, %15, %cst_11 [0] : vector<256x128xf32> to vector<128xf32>
    %17 = vector.shape_cast %16 : vector<128xf32> to vector<1x128xf32>
    %18 = tpu.iota {dimensions = array<i32: 0>} : vector<8x128xi32>
    %c4_i32 = arith.constant 4 : i32
    %19 = vector.broadcast %c4_i32 : i32 to vector<8x128xi32>
    %20 = arith.cmpi slt, %18, %19 : vector<8x128xi32>
    %21 = vector.shape_cast %14 : vector<1x128xf32> to vector<1x128xf32>
    %22 = vector.broadcast %21 : vector<1x128xf32> to vector<8x128xf32>
    %23 = vector.shape_cast %17 : vector<1x128xf32> to vector<1x128xf32>
    %24 = vector.broadcast %23 : vector<1x128xf32> to vector<8x128xf32>
    %25 = arith.select %20, %22, %24 : vector<8x128xi1>, vector<8x128xf32>
    %c0_12 = arith.constant 0 : index
    %c0_13 = arith.constant 0 : index
    %26 = vector.load %arg6[%c0_12, %c0_13] : memref<8x128xf32, #tpu.memory_space<vmem>>, vector<8x128xf32>
    tpu.vector_store %arg6[%c0_12, %c0_13], %25 {strides = array<i32>} : memref<8x128xf32, #tpu.memory_space<vmem>>, vector<8x128xf32>,
    return
  }
  func.func @transform_0(%arg0: i32) -> (i32, i32) {
    %c0_i32 = arith.constant 0 : i32
    %c0_i32_0 = arith.constant 0 : i32
    return %arg0, %c0_i32 : i32, i32
  }
  func.func @transform_1(%arg0: i32) -> (i32, i32) {
    %c0_i32 = arith.constant 0 : i32
    %c0_i32_0 = arith.constant 0 : i32
    %c0_i32_1 = arith.constant 0 : i32
    return %c0_i32, %c0_i32_0 : i32, i32
  }
  func.func @transform_2(%arg0: i32) -> (i32, i32) {
    %c0_i32 = arith.constant 0 : i32
    %c0_i32_0 = arith.constant 0 : i32
    %c0_i32_1 = arith.constant 0 : i32
    return %c0_i32, %c0_i32_0 : i32, i32
  }
  func.func @transform_3(%arg0: i32) -> (i32, i32) {
    %c0_i32 = arith.constant 0 : i32
    %c0_i32_0 = arith.constant 0 : i32
    %c0_i32_1 = arith.constant 0 : i32
    return %c0_i32, %c0_i32_0 : i32, i32
  }
  func.func @transform_4(%arg0: i32) -> (i32, i32) {
    %c0_i32 = arith.constant 0 : i32
    %c0_i32_0 = arith.constant 0 : i32
    return %arg0, %c0_i32 : i32, i32
  }
  func.func @transform_5(%arg0: i32) -> (i32, i32) {
    %c0_i32 = arith.constant 0 : i32
    %c0_i32_0 = arith.constant 0 : i32
    return %arg0, %c0_i32 : i32, i32
  }
}

module attributes {stable_mosaic.version = 11 : i64} {
  func.func @_bn2_relu_kernel(%arg0: i32, %arg1: memref<256x128xf32, #tpu.memory_space<vmem>>, %arg2: memref<1x128xf32, #tpu.memory_space<vmem>>, %arg3: memref<1x128xf32, #tpu.memory_space<vmem>>, %arg4: memref<256x128xbf16, #tpu.memory_space<vmem>>) attributes {dimension_semantics = [#tpu.dimension_semantics<parallel>], iteration_bounds = array<i64: 2>, scalar_prefetch = 0 : i64, scratch_operands = 0 : i64, tpu.core_type = #tpu.core_type<tc>, window_params = [{transform_indices = @transform_0, window_bounds = array<i64: 256, 128>}, {pipeline_mode = #tpu.pipeline_mode<synchronous>, transform_indices = @transform_1, window_bounds = array<i64: 1, 128>}, {pipeline_mode = #tpu.pipeline_mode<synchronous>, transform_indices = @transform_2, window_bounds = array<i64: 1, 128>}, {transform_indices = @transform_3, window_bounds = array<i64: 256, 128>}]} {
    %c0 = arith.constant 0 : index
    %c0_0 = arith.constant 0 : index
    %0 = vector.load %arg1[%c0, %c0_0] : memref<256x128xf32, #tpu.memory_space<vmem>>, vector<256x128xf32>
    %c0_1 = arith.constant 0 : index
    %c0_2 = arith.constant 0 : index
    %1 = vector.load %arg2[%c0_1, %c0_2] : memref<1x128xf32, #tpu.memory_space<vmem>>, vector<1x128xf32>
    %2 = vector.broadcast %1 : vector<1x128xf32> to vector<256x128xf32>
    %3 = arith.mulf %0, %2 : vector<256x128xf32>
    %c0_3 = arith.constant 0 : index
    %c0_4 = arith.constant 0 : index
    %4 = vector.load %arg3[%c0_3, %c0_4] : memref<1x128xf32, #tpu.memory_space<vmem>>, vector<1x128xf32>
    %5 = vector.broadcast %4 : vector<1x128xf32> to vector<256x128xf32>
    %6 = arith.addf %3, %5 : vector<256x128xf32>
    %cst = arith.constant 0.000000e+00 : f32
    %7 = vector.broadcast %cst : f32 to vector<256x128xf32>
    %8 = arith.maximumf %6, %7 : vector<256x128xf32>
    %9 = arith.truncf %8 : vector<256x128xf32> to vector<256x128xbf16>
    %c0_5 = arith.constant 0 : index
    %c0_6 = arith.constant 0 : index
    %10 = vector.load %arg4[%c0_5, %c0_6] : memref<256x128xbf16, #tpu.memory_space<vmem>>, vector<256x128xbf16>
    tpu.vector_store %arg4[%c0_5, %c0_6], %9 {strides = array<i32>} : memref<256x128xbf16, #tpu.memory_space<vmem>>, vector<256x128xbf16>,
    return
  }
  func.func @transform_0(%arg0: i32) -> (i32, i32) {
    %c0_i32 = arith.constant 0 : i32
    %c0_i32_0 = arith.constant 0 : i32
    return %arg0, %c0_i32 : i32, i32
  }
  func.func @transform_1(%arg0: i32) -> (i32, i32) {
    %c0_i32 = arith.constant 0 : i32
    %c0_i32_0 = arith.constant 0 : i32
    %c0_i32_1 = arith.constant 0 : i32
    return %c0_i32, %c0_i32_0 : i32, i32
  }
  func.func @transform_2(%arg0: i32) -> (i32, i32) {
    %c0_i32 = arith.constant 0 : i32
    %c0_i32_0 = arith.constant 0 : i32
    %c0_i32_1 = arith.constant 0 : i32
    return %c0_i32, %c0_i32_0 : i32, i32
  }
  func.func @transform_3(%arg0: i32) -> (i32, i32) {
    %c0_i32 = arith.constant 0 : i32
    %c0_i32_0 = arith.constant 0 : i32
    return %arg0, %c0_i32 : i32, i32
  }
}

module attributes {stable_mosaic.version = 11 : i64} {
  func.func @_conv2_matmul_kernel(%arg0: i32, %arg1: memref<256x1152xbf16, #tpu.memory_space<vmem>>, %arg2: memref<1152x128xbf16, #tpu.memory_space<vmem>>, %arg3: memref<256x128xf32, #tpu.memory_space<vmem>>) attributes {dimension_semantics = [#tpu.dimension_semantics<parallel>], iteration_bounds = array<i64: 2>, scalar_prefetch = 0 : i64, scratch_operands = 0 : i64, tpu.core_type = #tpu.core_type<tc>, window_params = [{transform_indices = @transform_0, window_bounds = array<i64: 256, 1152>}, {pipeline_mode = #tpu.pipeline_mode<synchronous>, transform_indices = @transform_1, window_bounds = array<i64: 1152, 128>}, {transform_indices = @transform_2, window_bounds = array<i64: 256, 128>}]} {
    %c0 = arith.constant 0 : index
    %c0_0 = arith.constant 0 : index
    %0 = vector.load %arg1[%c0, %c0_0] : memref<256x1152xbf16, #tpu.memory_space<vmem>>, vector<256x1152xbf16>
    %c0_1 = arith.constant 0 : index
    %c0_2 = arith.constant 0 : index
    %1 = vector.load %arg2[%c0_1, %c0_2] : memref<1152x128xbf16, #tpu.memory_space<vmem>>, vector<1152x128xbf16>
    %cst = arith.constant dense<0.000000e+00> : vector<256x128xf32>
    %2 = tpu.matmul %0, %1, %cst {dimension_numbers = #tpu.dot_dimension_numbers<[1], [0], [0], [1], [0, 0, 1, 1], [], []>} : vector<256x1152xbf16>, vector<1152x128xbf16>, vector<256x128xf32> -> vector<256x128xf32>
    %c0_3 = arith.constant 0 : index
    %c0_4 = arith.constant 0 : index
    %3 = vector.load %arg3[%c0_3, %c0_4] : memref<256x128xf32, #tpu.memory_space<vmem>>, vector<256x128xf32>
    tpu.vector_store %arg3[%c0_3, %c0_4], %2 {strides = array<i32>} : memref<256x128xf32, #tpu.memory_space<vmem>>, vector<256x128xf32>,
    return
  }
  func.func @transform_0(%arg0: i32) -> (i32, i32) {
    %c0_i32 = arith.constant 0 : i32
    %c0_i32_0 = arith.constant 0 : i32
    return %arg0, %c0_i32 : i32, i32
  }
  func.func @transform_1(%arg0: i32) -> (i32, i32) {
    %c0_i32 = arith.constant 0 : i32
    %c0_i32_0 = arith.constant 0 : i32
    %c0_i32_1 = arith.constant 0 : i32
    return %c0_i32, %c0_i32_0 : i32, i32
  }
  func.func @transform_2(%arg0: i32) -> (i32, i32) {
    %c0_i32 = arith.constant 0 : i32
    %c0_i32_0 = arith.constant 0 : i32
    return %arg0, %c0_i32 : i32, i32
  }
}

</mosaic_0001>

<llo_original>
// kernel: bottleneck_forward.4
$region0: #{bottleneck_forward.4}
  #allocation0 [shape = 'u32[]', space=smem, size = 0x4, offset = 0x4, fixed_abs, tag = 'smem constant byte address 0x4 - core index']
  #allocation1 [shape = 'u32[144,128]{1,0:T(1,128)}', space=vmem, size = 0x12000, scoped, tag = 'internal scratch']
  %s0 = inlined_call_operand.vmem [shape: f32[512,4], index: 0, kind: input, shape index: {}]
  %s1 = inlined_call_operand.vmem [shape: f32[16,4], index: 1, kind: output, shape index: {}]
  %s2 = sld [smem:[#allocation0]]
  $region37: #{bottleneck_forward.4} parent=0
    _
  %s4 = ssub.s32 1, %s2
  %s5 = scalar_select 0, %s4, %s2
  loop: start=0, step=1, limit=4
  $region2: #{bottleneck_forward.4} parent=0 // loop_pre_header
    _
  $region3: #{bottleneck_forward.4} parent=0 // loop_header
    %s7 = sphi 0, %s11
    %p8 = scmp.ge.s32.totalorder %s7, 4
    %s17 = sphi 0, %s19
    %s20 = sphi 0, %s17
    %s21 = sphi 0, %s20
    %s37 = sphi 0, %s21
    %s43 = sphi 0, %s45
    %s46 = sphi 0, %s43
    %s47 = sphi 0, %s46
    %s63 = sphi 0, %s47
  $region4: #{bottleneck_forward.4} parent=0 // loop_header_branch
    %10 = sbr.rel (%p8) target = $region8
  $region5: #{bottleneck_forward.4} parent=0 // loop_body
    %s12 = ssub.s32 %s7, 1
    %s13 = ssub.s32 %s7, 2
    %s14 = sadd.s32 %s7, 1
    %s15 = ssub.s32 %s7, %s14
    %p16 = scmp.eq.s32.totalorder %s15, 0
    %s18 = sadd.s32 %s17, 1
    %s19 = scalar_select %p16, %s17, %s18
    %p22 = pneg %p16
    %p23 = scmp.eq.s32.totalorder %s7, 1
    %p24 = por %p22, %p23
    %p25 = scmp.ne.s32.totalorder %s17, %s20
    %p26 = scmp.eq.s32.totalorder %s7, 0
    %p27 = por %p25, %p26
    %p28 = scmp.ne.s32.totalorder %s17, %s20
    %p29 = scmp.eq.s32.totalorder %s12, 1
    %p30 = por %p28, %p29
    %p31 = scmp.ne.s32.totalorder %s20, %s21
    %p32 = scmp.eq.s32.totalorder %s12, 0
    %p33 = por %p31, %p32
    %p34 = scmp.ne.s32.totalorder %s20, %s21
    %p35 = scmp.eq.s32.totalorder %s13, 1
    %p36 = por %p34, %p35
    %p38 = scmp.ne.s32.totalorder %s21, %s37
    %p39 = scmp.eq.s32.totalorder %s13, 0
    %p40 = por %p38, %p39
    %s41 = ssub.s32 %s7, %s14
    %p42 = scmp.eq.s32.totalorder %s41, 0
    %s44 = sadd.s32 %s43, 1
    %s45 = scalar_select %p42, %s43, %s44
    %p48 = pneg %p42
    %p49 = scmp.eq.s32.totalorder %s7, 1
    %p50 = por %p48, %p49
    %p51 = scmp.ne.s32.totalorder %s43, %s46
    %p52 = scmp.eq.s32.totalorder %s7, 0
    %p53 = por %p51, %p52
    %p54 = scmp.ne.s32.totalorder %s43, %s46
    %p55 = scmp.eq.s32.totalorder %s12, 1
    %p56 = por %p54, %p55
    %p57 = scmp.ne.s32.totalorder %s46, %s47
    %p58 = scmp.eq.s32.totalorder %s12, 0
    %p59 = por %p57, %p58
    %p60 = scmp.ne.s32.totalorder %s46, %s47
    %p61 = scmp.eq.s32.totalorder %s13, 1
    %p62 = por %p60, %p61
    %p64 = scmp.ne.s32.totalorder %s47, %s63
    %p65 = scmp.eq.s32.totalorder %s13, 0
    %p66 = por %p64, %p65
    %p67 = scmp.le.s32.totalorder 1, %s7
    %p68 = scmp.lt.s32.totalorder %s7, 3
    %p69 = pnand %p67, %p68
    %p70 = pneg %p69
    // Predicated region
    $region9: #{bottleneck_forward.4} parent=5 // pred_check
      _
    $region10: #{bottleneck_forward.4} parent=5 // pred_check_branch
      %72 = sbr.rel (%p69) target = $region12
    $region11: #{bottleneck_forward.4} parent=5 // pred_region
      %s73 = ssub.s32 %s7, 1
    $region12: #{bottleneck_forward.4} parent=5 // pred_fallthru
      _
    %p74 = scmp.lt.s32.totalorder %s7, 2
    // Predicated region
    $region13: #{bottleneck_forward.4} parent=5 // pred_check
      %p75 = pneg %p74
    $region14: #{bottleneck_forward.4} parent=5 // pred_check_branch
      %77 = sbr.rel (%p75) target = $region16
    $region15: #{bottleneck_forward.4} parent=5 // pred_region
      // Predicated region
      $region17: #{bottleneck_forward.4} parent=15 // pred_check
        %p78 = pneg %p27
      $region18: #{bottleneck_forward.4} parent=15 // pred_check_branch
        %80 = sbr.rel (%p78) target = $region20
      $region19: #{bottleneck_forward.4} parent=15 // pred_region
        %s81 = smul.u32 32, %s7
        %p82 = scmp.lt.s32.totalorder %s81, 63
        %s83 = scalar_select %p82, %s81, 63
        %s84 = smul.addr %s83, 8
        %s85 = scalar_lea.vmem %s0, %s84
        %s86 = smul.u32 32, %s7
      $region20: #{bottleneck_forward.4} parent=15 // pred_fallthru
        _
    $region16: #{bottleneck_forward.4} parent=5 // pred_fallthru
      _
    %p87 = scmp.le.s32.totalorder 1, %s7
    %p88 = scmp.lt.s32.totalorder %s7, 3
    %p89 = pnand %p87, %p88
    %p90 = pneg %p89
    // Predicated region
    $region21: #{bottleneck_forward.4} parent=5 // pred_check
      _
    $region22: #{bottleneck_forward.4} parent=5 // pred_check_branch
      %92 = sbr.rel (%p89) target = $region24
    $region23: #{bottleneck_forward.4} parent=5 // pred_region
      %s93 = ssub.s32 %s7, 1
      %s94 = smul.u32 32, %s12
      %p95 = scmp.lt.s32.totalorder %s94, 63
      %s96 = scalar_select %p95, %s94, 63
      %s97 = smul.addr %s96, 8
      %s98 = scalar_lea.vmem %s0, %s97
      %p99 = pneg %p33
      %p100 = pneg %p30
      %p101 = pneg %p59
      %p102 = pneg %p56
      %p103 = scmp.lt.s32.totalorder %s12, 1
      %s104 = scalar_select %p103, %s12, 1
      %s105 = smul.addr %s104, 8
      %s106 = scalar_lea.vmem %s1, %s105
      %s107 = smul.u32 32, %s12
      %p108 = scmp.lt.s32.totalorder %s107, 63
      %s109 = scalar_select %p108, %s107, 63
      %s110 = smul.addr %s109, 8
      %s111 = scalar_lea.vmem %s0, %s110
      %s112 = smul.u32 32, %s12
      %p113 = scmp.lt.s32.totalorder %s12, 1
      %s114 = scalar_select %p113, %s12, 1
      %s115 = smul.addr %s114, 8
      %s116 = scalar_lea.vmem %s1, %s115
      %v117 = vld [vmem:[%s111] sm:$0xff]
      %v118 = vld [vmem:[%s111 + $0x8] sm:$0xff]
      %v119 = vld [vmem:[%s111 + $0x10] sm:$0xff]
      %v120 = vld [vmem:[%s111 + $0x18] sm:$0xff]
      %v121 = vld [vmem:[%s111 + $0x20] sm:$0xff]
      %v122 = vld [vmem:[%s111 + $0x28] sm:$0xff]
      %v123 = vld [vmem:[%s111 + $0x30] sm:$0xff]
      %v124 = vld [vmem:[%s111 + $0x38] sm:$0xff]
      %v125 = vld [vmem:[%s111 + $0x40] sm:$0xff]
      %v126 = vld [vmem:[%s111 + $0x48] sm:$0xff]
      %v127 = vld [vmem:[%s111 + $0x50] sm:$0xff]
      %v128 = vld [vmem:[%s111 + $0x58] sm:$0xff]
      %v129 = vld [vmem:[%s111 + $0x60] sm:$0xff]
      %v130 = vld [vmem:[%s111 + $0x68] sm:$0xff]
      %v131 = vld [vmem:[%s111 + $0x70] sm:$0xff]
      %v132 = vld [vmem:[%s111 + $0x78] sm:$0xff]
      %v133 = vld [vmem:[%s111 + $0x80] sm:$0xff]
      %v134 = vld [vmem:[%s111 + $0x88] sm:$0xff]
      %v135 = vld [vmem:[%s111 + $0x90] sm:$0xff]
      %v136 = vld [vmem:[%s111 + $0x98] sm:$0xff]
      %v137 = vld [vmem:[%s111 + $0xa0] sm:$0xff]
      %v138 = vld [vmem:[%s111 + $0xa8] sm:$0xff]
      %v139 = vld [vmem:[%s111 + $0xb0] sm:$0xff]
      %v140 = vld [vmem:[%s111 + $0xb8] sm:$0xff]
      %v141 = vld [vmem:[%s111 + $0xc0] sm:$0xff]
      %v142 = vld [vmem:[%s111 + $0xc8] sm:$0xff]
      %v143 = vld [vmem:[%s111 + $0xd0] sm:$0xff]
      %v144 = vld [vmem:[%s111 + $0xd8] sm:$0xff]
      %v145 = vld [vmem:[%s111 + $0xe0] sm:$0xff]
      %v146 = vld [vmem:[%s111 + $0xe8] sm:$0xff]
      %v147 = vld [vmem:[%s111 + $0xf0] sm:$0xff]
      %v148 = vld [vmem:[%s111 + $0xf8] sm:$0xff]
      %vm149 = vcmask 31744
      %v150 = vsel %vm149, %v117, 0.0
      %v151 = vsel %vm149, %v118, 0.0
      %v152 = vadd.f32 %v150, %v151
      %v153 = vsel %vm149, %v119, 0.0
      %v154 = vadd.f32 %v152, %v153
      %v155 = vsel %vm149, %v120, 0.0
      %v156 = vadd.f32 %v154, %v155
      %v157 = vsel %vm149, %v121, 0.0
      %v158 = vadd.f32 %v156, %v157
      %v159 = vsel %vm149, %v122, 0.0
      %v160 = vadd.f32 %v158, %v159
      %v161 = vsel %vm149, %v123, 0.0
      %v162 = vadd.f32 %v160, %v161
      %v163 = vsel %vm149, %v124, 0.0
      %v164 = vadd.f32 %v162, %v163
      %v165 = vsel %vm149, %v125, 0.0
      %v166 = vadd.f32 %v164, %v165
      %v167 = vsel %vm149, %v126, 0.0
      %v168 = vadd.f32 %v166, %v167
      %v169 = vsel %vm149, %v127, 0.0
      %v170 = vadd.f32 %v168, %v169
      %v171 = vsel %vm149, %v128, 0.0
      %v172 = vadd.f32 %v170, %v171
      %v173 = vsel %vm149, %v129, 0.0
      %v174 = vadd.f32 %v172, %v173
      %v175 = vsel %vm149, %v130, 0.0
      %v176 = vadd.f32 %v174, %v175
      %v177 = vsel %vm149, %v131, 0.0
      %v178 = vadd.f32 %v176, %v177
      %v179 = vsel %vm149, %v132, 0.0
      %v180 = vadd.f32 %v178, %v179
      %v181 = vsel %vm149, %v133, 0.0
      %v182 = vadd.f32 %v180, %v181
      %v183 = vsel %vm149, %v134, 0.0
      %v184 = vadd.f32 %v182, %v183
      %v185 = vsel %vm149, %v135, 0.0
      %v186 = vadd.f32 %v184, %v185
      %v187 = vsel %vm149, %v136, 0.0
      %v188 = vadd.f32 %v186, %v187
      %v189 = vsel %vm149, %v137, 0.0
      %v190 = vadd.f32 %v188, %v189
      %v191 = vsel %vm149, %v138, 0.0
      %v192 = vadd.f32 %v190, %v191
      %v193 = vsel %vm149, %v139, 0.0
      %v194 = vadd.f32 %v192, %v193
      %v195 = vsel %vm149, %v140, 0.0
      %v196 = vadd.f32 %v194, %v195
      %v197 = vsel %vm149, %v141, 0.0
      %v198 = vadd.f32 %v196, %v197
      %v199 = vsel %vm149, %v142, 0.0
      %v200 = vadd.f32 %v198, %v199
      %v201 = vsel %vm149, %v143, 0.0
      %v202 = vadd.f32 %v200, %v201
      %v203 = vsel %vm149, %v144, 0.0
      %v204 = vadd.f32 %v202, %v203
      %v205 = vsel %vm149, %v145, 0.0
      %v206 = vadd.f32 %v204, %v205
      %v207 = vsel %vm149, %v146, 0.0
      %v208 = vadd.f32 %v206, %v207
      %v209 = vsel %vm149, %v147, 0.0
      %v210 = vadd.f32 %v208, %v209
      %v211 = vsel %vm149, %v148, 0.0
      %v212 = vadd.f32 %v210, %v211
      %v213 = vrot.slane %v212, 4
      %v214 = vadd.f32 %v212, %v213
      %v215 = vrot.slane %v214, 2
      %v216 = vadd.f32 %v214, %v215
      %v217 = vrot.slane %v216, 1
      %v218 = vadd.f32 %v216, %v217
      %v219 = vmul.f32 %v117, %v117
      %v220 = vmul.f32 %v118, %v118
      %v221 = vmul.f32 %v119, %v119
      %v222 = vmul.f32 %v120, %v120
      %v223 = vmul.f32 %v121, %v121
      %v224 = vmul.f32 %v122, %v122
      %v225 = vmul.f32 %v123, %v123
      %v226 = vmul.f32 %v124, %v124
      %v227 = vmul.f32 %v125, %v125
      %v228 = vmul.f32 %v126, %v126
      %v229 = vmul.f32 %v127, %v127
      %v230 = vmul.f32 %v128, %v128
      %v231 = vmul.f32 %v129, %v129
      %v232 = vmul.f32 %v130, %v130
      %v233 = vmul.f32 %v131, %v131
      %v234 = vmul.f32 %v132, %v132
      %v235 = vmul.f32 %v133, %v133
      %v236 = vmul.f32 %v134, %v134
      %v237 = vmul.f32 %v135, %v135
      %v238 = vmul.f32 %v136, %v136
      %v239 = vmul.f32 %v137, %v137
      %v240 = vmul.f32 %v138, %v138
      %v241 = vmul.f32 %v139, %v139
      %v242 = vmul.f32 %v140, %v140
      %v243 = vmul.f32 %v141, %v141
      %v244 = vmul.f32 %v142, %v142
      %v245 = vmul.f32 %v143, %v143
      %v246 = vmul.f32 %v144, %v144
      %v247 = vmul.f32 %v145, %v145
      %v248 = vmul.f32 %v146, %v146
      %v249 = vmul.f32 %v147, %v147
      %v250 = vmul.f32 %v148, %v148
      %v251 = vsel %vm149, %v219, 0.0
      %v252 = vsel %vm149, %v220, 0.0
      %v253 = vadd.f32 %v251, %v252
      %v254 = vsel %vm149, %v221, 0.0
      %v255 = vadd.f32 %v253, %v254
      %v256 = vsel %vm149, %v222, 0.0
      %v257 = vadd.f32 %v255, %v256
      %v258 = vsel %vm149, %v223, 0.0
      %v259 = vadd.f32 %v257, %v258
      %v260 = vsel %vm149, %v224, 0.0
      %v261 = vadd.f32 %v259, %v260
      %v262 = vsel %vm149, %v225, 0.0
      %v263 = vadd.f32 %v261, %v262
      %v264 = vsel %vm149, %v226, 0.0
      %v265 = vadd.f32 %v263, %v264
      %v266 = vsel %vm149, %v227, 0.0
      %v267 = vadd.f32 %v265, %v266
      %v268 = vsel %vm149, %v228, 0.0
      %v269 = vadd.f32 %v267, %v268
      %v270 = vsel %vm149, %v229, 0.0
      %v271 = vadd.f32 %v269, %v270
      %v272 = vsel %vm149, %v230, 0.0
      %v273 = vadd.f32 %v271, %v272
      %v274 = vsel %vm149, %v231, 0.0
      %v275 = vadd.f32 %v273, %v274
      %v276 = vsel %vm149, %v232, 0.0
      %v277 = vadd.f32 %v275, %v276
      %v278 = vsel %vm149, %v233, 0.0
      %v279 = vadd.f32 %v277, %v278
      %v280 = vsel %vm149, %v234, 0.0
      %v281 = vadd.f32 %v279, %v280
      %v282 = vsel %vm149, %v235, 0.0
      %v283 = vadd.f32 %v281, %v282
      %v284 = vsel %vm149, %v236, 0.0
      %v285 = vadd.f32 %v283, %v284
      %v286 = vsel %vm149, %v237, 0.0
      %v287 = vadd.f32 %v285, %v286
      %v288 = vsel %vm149, %v238, 0.0
      %v289 = vadd.f32 %v287, %v288
      %v290 = vsel %vm149, %v239, 0.0
      %v291 = vadd.f32 %v289, %v290
      %v292 = vsel %vm149, %v240, 0.0
      %v293 = vadd.f32 %v291, %v292
      %v294 = vsel %vm149, %v241, 0.0
      %v295 = vadd.f32 %v293, %v294
      %v296 = vsel %vm149, %v242, 0.0
      %v297 = vadd.f32 %v295, %v296
      %v298 = vsel %vm149, %v243, 0.0
      %v299 = vadd.f32 %v297, %v298
      %v300 = vsel %vm149, %v244, 0.0
      %v301 = vadd.f32 %v299, %v300
      %v302 = vsel %vm149, %v245, 0.0
      %v303 = vadd.f32 %v301, %v302
      %v304 = vsel %vm149, %v246, 0.0
      %v305 = vadd.f32 %v303, %v304
      %v306 = vsel %vm149, %v247, 0.0
      %v307 = vadd.f32 %v305, %v306
      %v308 = vsel %vm149, %v248, 0.0
      %v309 = vadd.f32 %v307, %v308
      %v310 = vsel %vm149, %v249, 0.0
      %v311 = vadd.f32 %v309, %v310
      %v312 = vsel %vm149, %v250, 0.0
      %v313 = vadd.f32 %v311, %v312
      %v314 = vrot.slane %v313, 4
      %v315 = vadd.f32 %v313, %v314
      %v316 = vrot.slane %v315, 2
      %v317 = vadd.f32 %v315, %v316
      %v318 = vrot.slane %v317, 1
      %v319 = vadd.f32 %v317, %v318
      %v320 = vlaneseq
      %v321 = vshrl.u32 %v320, 7
      %vm322 = vcmp.lt.s32.totalorder %v321, 4
      %v323 = vsel %vm322, %v218, %v319
      %324 = vst.msk [vmem:[%s116] sm:$0xff] %vm149, %v323
      %p325 = scmp.lt.s32.totalorder %s12, 1
      %s326 = scalar_select %p325, %s12, 1
      %s327 = smul.addr %s326, 8
      %s328 = scalar_lea.vmem %s1, %s327
      // Predicated region
      $region25: #{bottleneck_forward.4} parent=23 // pred_check
        %p329 = pneg %p56
      $region26: #{bottleneck_forward.4} parent=23 // pred_check_branch
        %331 = sbr.rel (%p329) target = $region28
      $region27: #{bottleneck_forward.4} parent=23 // pred_region
        _
      $region28: #{bottleneck_forward.4} parent=23 // pred_fallthru
        _
    $region24: #{bottleneck_forward.4} parent=5 // pred_fallthru
      _
    %p332 = scmp.le.s32.totalorder 2, %s7
    // Predicated region
    $region29: #{bottleneck_forward.4} parent=5 // pred_check
      %p333 = pneg %p332
    $region30: #{bottleneck_forward.4} parent=5 // pred_check_branch
      %335 = sbr.rel (%p333) target = $region32
    $region31: #{bottleneck_forward.4} parent=5 // pred_region
      %s336 = ssub.s32 %s7, 2
      // Predicated region
      $region33: #{bottleneck_forward.4} parent=31 // pred_check
        %p337 = pneg %p62
      $region34: #{bottleneck_forward.4} parent=31 // pred_check_branch
        %339 = sbr.rel (%p337) target = $region36
      $region35: #{bottleneck_forward.4} parent=31 // pred_region
        %p340 = scmp.lt.s32.totalorder %s13, 1
        %s341 = scalar_select %p340, %s13, 1
        %s342 = smul.addr %s341, 8
        %s343 = scalar_lea.vmem %s1, %s342
      $region36: #{bottleneck_forward.4} parent=31 // pred_fallthru
        _
    $region32: #{bottleneck_forward.4} parent=5 // pred_fallthru
      _
  $region6: #{bottleneck_forward.4} parent=0 // loop_footer
    %s11 = sadd.s32 1, %s7
  $region7: #{bottleneck_forward.4} parent=0 // loop_footer_branch
    %6 = sbr.rel target = $region3
  $region8: #{bottleneck_forward.4} parent=0 // loop_exit
    _

// kernel: bottleneck_forward.5
$region0: #{bottleneck_forward.5}
  #allocation0 [shape = 'u32[]', space=smem, size = 0x4, offset = 0x4, fixed_abs, tag = 'smem constant byte address 0x4 - core index']
  #allocation1 [shape = 'u32[144,128]{1,0:T(1,128)}', space=vmem, size = 0x12000, scoped, tag = 'internal scratch']
  %s0 = inlined_call_operand.vmem [shape: f32[512,4], index: 0, kind: input, shape index: {}]
  %s1 = inlined_call_operand.vmem [shape: f32[1,4], index: 1, kind: input, shape index: {}]
  %s2 = inlined_call_operand.vmem [shape: f32[1,4], index: 2, kind: input, shape index: {}]
  %s3 = inlined_call_operand.vmem [shape: bf16[4,128], index: 3, kind: input, shape index: {}]
  %s4 = inlined_call_operand.vmem [shape: f32[512,128], index: 4, kind: output, shape index: {0}]
  %s5 = inlined_call_operand.vmem [shape: f32[16,128], index: 5, kind: output, shape index: {1}]
  %6 = xla_tuple %s4, %s5
  %s7 = sld [smem:[#allocation0]]
  $region57: #{bottleneck_forward.5} parent=0
    _
  %s9 = ssub.s32 1, %s7
  %s10 = scalar_select 0, %s9, %s7
  loop: start=0, step=1, limit=4
  $region2: #{bottleneck_forward.5} parent=0 // loop_pre_header
    _
  $region3: #{bottleneck_forward.5} parent=0 // loop_header
    %s12 = sphi 0, %s16
    %p13 = scmp.ge.s32.totalorder %s12, 4
    %s22 = sphi 0, %s24
    %s25 = sphi 0, %s22
    %s26 = sphi 0, %s25
    %s42 = sphi 0, %s26
    %s46 = sphi 0, %s46
    %s48 = sphi 0, %s46
    %s49 = sphi 0, %s48
    %s63 = sphi 0, %s49
    %s67 = sphi 0, %s67
    %s69 = sphi 0, %s67
    %s70 = sphi 0, %s69
    %s84 = sphi 0, %s70
    %s88 = sphi 0, %s88
    %s90 = sphi 0, %s88
    %s91 = sphi 0, %s90
    %s105 = sphi 0, %s91
    %s111 = sphi 0, %s113
    %s114 = sphi 0, %s111
    %s115 = sphi 0, %s114
    %s131 = sphi 0, %s115
    %s137 = sphi 0, %s139
    %s140 = sphi 0, %s137
    %s141 = sphi 0, %s140
    %s157 = sphi 0, %s141
  $region4: #{bottleneck_forward.5} parent=0 // loop_header_branch
    %15 = sbr.rel (%p13) target = $region8
  $region5: #{bottleneck_forward.5} parent=0 // loop_body
    %s17 = ssub.s32 %s12, 1
    %s18 = ssub.s32 %s12, 2
    %s19 = sadd.s32 %s12, 1
    %s20 = ssub.s32 %s12, %s19
    %p21 = scmp.eq.s32.totalorder %s20, 0
    %s23 = sadd.s32 %s22, 1
    %s24 = scalar_select %p21, %s22, %s23
    %p27 = pneg %p21
    %p28 = scmp.eq.s32.totalorder %s12, 1
    %p29 = por %p27, %p28
    %p30 = scmp.ne.s32.totalorder %s22, %s25
    %p31 = scmp.eq.s32.totalorder %s12, 0
    %p32 = por %p30, %p31
    %p33 = scmp.ne.s32.totalorder %s22, %s25
    %p34 = scmp.eq.s32.totalorder %s17, 1
    %p35 = por %p33, %p34
    %p36 = scmp.ne.s32.totalorder %s25, %s26
    %p37 = scmp.eq.s32.totalorder %s17, 0
    %p38 = por %p36, %p37
    %p39 = scmp.ne.s32.totalorder %s25, %s26
    %p40 = scmp.eq.s32.totalorder %s18, 1
    %p41 = por %p39, %p40
    %p43 = scmp.ne.s32.totalorder %s26, %s42
    %p44 = scmp.eq.s32.totalorder %s18, 0
    %p45 = por %p43, %p44
    %s47 = sadd.s32 %s46, 1
    %p50 = scmp.eq.s32.totalorder %s12, 1
    %p51 = scmp.ne.s32.totalorder %s46, %s48
    %p52 = scmp.eq.s32.totalorder %s12, 0
    %p53 = por %p51, %p52
    %p54 = scmp.ne.s32.totalorder %s46, %s48
    %p55 = scmp.eq.s32.totalorder %s17, 1
    %p56 = por %p54, %p55
    %p57 = scmp.ne.s32.totalorder %s48, %s49
    %p58 = scmp.eq.s32.totalorder %s17, 0
    %p59 = por %p57, %p58
    %p60 = scmp.ne.s32.totalorder %s48, %s49
    %p61 = scmp.eq.s32.totalorder %s18, 1
    %p62 = por %p60, %p61
    %p64 = scmp.ne.s32.totalorder %s49, %s63
    %p65 = scmp.eq.s32.totalorder %s18, 0
    %p66 = por %p64, %p65
    %s68 = sadd.s32 %s67, 1
    %p71 = scmp.eq.s32.totalorder %s12, 1
    %p72 = scmp.ne.s32.totalorder %s67, %s69
    %p73 = scmp.eq.s32.totalorder %s12, 0
    %p74 = por %p72, %p73
    %p75 = scmp.ne.s32.totalorder %s67, %s69
    %p76 = scmp.eq.s32.totalorder %s17, 1
    %p77 = por %p75, %p76
    %p78 = scmp.ne.s32.totalorder %s69, %s70
    %p79 = scmp.eq.s32.totalorder %s17, 0
    %p80 = por %p78, %p79
    %p81 = scmp.ne.s32.totalorder %s69, %s70
    %p82 = scmp.eq.s32.totalorder %s18, 1
    %p83 = por %p81, %p82
    %p85 = scmp.ne.s32.totalorder %s70, %s84
    %p86 = scmp.eq.s32.totalorder %s18, 0
    %p87 = por %p85, %p86
    %s89 = sadd.s32 %s88, 1
    %p92 = scmp.eq.s32.totalorder %s12, 1
    %p93 = scmp.ne.s32.totalorder %s88, %s90
    %p94 = scmp.eq.s32.totalorder %s12, 0
    %p95 = por %p93, %p94
    %p96 = scmp.ne.s32.totalorder %s88, %s90
    %p97 = scmp.eq.s32.totalorder %s17, 1
    %p98 = por %p96, %p97
    %p99 = scmp.ne.s32.totalorder %s90, %s91
    %p100 = scmp.eq.s32.totalorder %s17, 0
    %p101 = por %p99, %p100
    %p102 = scmp.ne.s32.totalorder %s90, %s91
    %p103 = scmp.eq.s32.totalorder %s18, 1
    %p104 = por %p102, %p103
    %p106 = scmp.ne.s32.totalorder %s91, %s105
    %p107 = scmp.eq.s32.totalorder %s18, 0
    %p108 = por %p106, %p107
    %s109 = ssub.s32 %s12, %s19
    %p110 = scmp.eq.s32.totalorder %s109, 0
    %s112 = sadd.s32 %s111, 1
    %s113 = scalar_select %p110, %s111, %s112
    %p116 = pneg %p110
    %p117 = scmp.eq.s32.totalorder %s12, 1
    %p118 = por %p116, %p117
    %p119 = scmp.ne.s32.totalorder %s111, %s114
    %p120 = scmp.eq.s32.totalorder %s12, 0
    %p121 = por %p119, %p120
    %p122 = scmp.ne.s32.totalorder %s111, %s114
    %p123 = scmp.eq.s32.totalorder %s17, 1
    %p124 = por %p122, %p123
    %p125 = scmp.ne.s32.totalorder %s114, %s115
    %p126 = scmp.eq.s32.totalorder %s17, 0
    %p127 = por %p125, %p126
    %p128 = scmp.ne.s32.totalorder %s114, %s115
    %p129 = scmp.eq.s32.totalorder %s18, 1
    %p130 = por %p128, %p129
    %p132 = scmp.ne.s32.totalorder %s115, %s131
    %p133 = scmp.eq.s32.totalorder %s18, 0
    %p134 = por %p132, %p133
    %s135 = ssub.s32 %s12, %s19
    %p136 = scmp.eq.s32.totalorder %s135, 0
    %s138 = sadd.s32 %s137, 1
    %s139 = scalar_select %p136, %s137, %s138
    %p142 = pneg %p136
    %p143 = scmp.eq.s32.totalorder %s12, 1
    %p144 = por %p142, %p143
    %p145 = scmp.ne.s32.totalorder %s137, %s140
    %p146 = scmp.eq.s32.totalorder %s12, 0
    %p147 = por %p145, %p146
    %p148 = scmp.ne.s32.totalorder %s137, %s140
    %p149 = scmp.eq.s32.totalorder %s17, 1
    %p150 = por %p148, %p149
    %p151 = scmp.ne.s32.totalorder %s140, %s141
    %p152 = scmp.eq.s32.totalorder %s17, 0
    %p153 = por %p151, %p152
    %p154 = scmp.ne.s32.totalorder %s140, %s141
    %p155 = scmp.eq.s32.totalorder %s18, 1
    %p156 = por %p154, %p155
    %p158 = scmp.ne.s32.totalorder %s141, %s157
    %p159 = scmp.eq.s32.totalorder %s18, 0
    %p160 = por %p158, %p159
    %p161 = scmp.le.s32.totalorder 1, %s12
    %p162 = scmp.lt.s32.totalorder %s12, 3
    %p163 = pnand %p161, %p162
    %p164 = pneg %p163
    // Predicated region
    $region9: #{bottleneck_forward.5} parent=5 // pred_check
      _
    $region10: #{bottleneck_forward.5} parent=5 // pred_check_branch
      %166 = sbr.rel (%p163) target = $region12
    $region11: #{bottleneck_forward.5} parent=5 // pred_region
      %s167 = ssub.s32 %s12, 1
      // Predicated region
      $region13: #{bottleneck_forward.5} parent=11 // pred_check
        %p168 = pneg %p59
      $region14: #{bottleneck_forward.5} parent=11 // pred_check_branch
        %170 = sbr.rel (%p168) target = $region16
      $region15: #{bottleneck_forward.5} parent=11 // pred_region
        _
      $region16: #{bottleneck_forward.5} parent=11 // pred_fallthru
        _
      // Predicated region
      $region17: #{bottleneck_forward.5} parent=11 // pred_check
        %p171 = pneg %p80
      $region18: #{bottleneck_forward.5} parent=11 // pred_check_branch
        %173 = sbr.rel (%p171) target = $region20
      $region19: #{bottleneck_forward.5} parent=11 // pred_region
        _
      $region20: #{bottleneck_forward.5} parent=11 // pred_fallthru
        _
      // Predicated region
      $region21: #{bottleneck_forward.5} parent=11 // pred_check
        %p174 = pneg %p101
      $region22: #{bottleneck_forward.5} parent=11 // pred_check_branch
        %176 = sbr.rel (%p174) target = $region24
      $region23: #{bottleneck_forward.5} parent=11 // pred_region
        _
      $region24: #{bottleneck_forward.5} parent=11 // pred_fallthru
        _
    $region12: #{bottleneck_forward.5} parent=5 // pred_fallthru
      _
    %p177 = scmp.lt.s32.totalorder %s12, 2
    // Predicated region
    $region25: #{bottleneck_forward.5} parent=5 // pred_check
      %p178 = pneg %p177
    $region26: #{bottleneck_forward.5} parent=5 // pred_check_branch
      %180 = sbr.rel (%p178) target = $region28
    $region27: #{bottleneck_forward.5} parent=5 // pred_region
      // Predicated region
      $region29: #{bottleneck_forward.5} parent=27 // pred_check
        %p181 = pneg %p32
      $region30: #{bottleneck_forward.5} parent=27 // pred_check_branch
        %183 = sbr.rel (%p181) target = $region32
      $region31: #{bottleneck_forward.5} parent=27 // pred_region
        %s184 = smul.u32 32, %s12
        %p185 = scmp.lt.s32.totalorder %s184, 63
        %s186 = scalar_select %p185, %s184, 63
        %s187 = smul.addr %s186, 8
        %s188 = scalar_lea.vmem %s0, %s187
        %s189 = smul.u32 32, %s12
      $region32: #{bottleneck_forward.5} parent=27 // pred_fallthru
        _
    $region28: #{bottleneck_forward.5} parent=5 // pred_fallthru
      _
    %p190 = scmp.le.s32.totalorder 1, %s12
    %p191 = scmp.lt.s32.totalorder %s12, 3
    %p192 = pnand %p190, %p191
    %p193 = pneg %p192
    // Predicated region
    $region33: #{bottleneck_forward.5} parent=5 // pred_check
      _
    $region34: #{bottleneck_forward.5} parent=5 // pred_check_branch
      %195 = sbr.rel (%p192) target = $region36
    $region35: #{bottleneck_forward.5} parent=5 // pred_region
      %s196 = ssub.s32 %s12, 1
      %s197 = smul.u32 32, %s17
      %p198 = scmp.lt.s32.totalorder %s197, 63
      %s199 = scalar_select %p198, %s197, 63
      %s200 = smul.addr %s199, 8
      %s201 = scalar_lea.vmem %s0, %s200
      %p202 = pneg %p38
      %p203 = pneg %p35
      %p204 = pneg %p59
      %p205 = pneg %p56
      %p206 = pneg %p80
      %p207 = pneg %p77
      %p208 = pneg %p101
      %p209 = pneg %p98
      %p210 = pneg %p127
      %p211 = pneg %p124
      %s212 = smul.u32 32, %s17
      %p213 = scmp.lt.s32.totalorder %s212, 63
      %s214 = scalar_select %p213, %s212, 63
      %s215 = smul.addr %s214, 8
      %s216 = scalar_lea.vmem %s4, %s215
      %p217 = pneg %p153
      %p218 = pneg %p150
      %p219 = scmp.lt.s32.totalorder %s17, 1
      %s220 = scalar_select %p219, %s17, 1
      %s221 = smul.addr %s220, 8
      %s222 = scalar_lea.vmem %s5, %s221
      %s223 = smul.u32 32, %s17
      %p224 = scmp.lt.s32.totalorder %s223, 63
      %s225 = scalar_select %p224, %s223, 63
      %s226 = smul.addr %s225, 8
      %s227 = scalar_lea.vmem %s0, %s226
      %s228 = smul.u32 32, %s17
      %s229 = smul.u32 32, %s17
      %p230 = scmp.lt.s32.totalorder %s229, 63
      %s231 = scalar_select %p230, %s229, 63
      %s232 = smul.addr %s231, 8
      %s233 = scalar_lea.vmem %s4, %s232
      %s234 = smul.u32 32, %s17
      %p235 = scmp.lt.s32.totalorder %s17, 1
      %s236 = scalar_select %p235, %s17, 1
      %s237 = smul.addr %s236, 8
      %s238 = scalar_lea.vmem %s5, %s237
      %v240 = vld [vmem:[%s227] sm:$0xff]
      %v241 = vld [vmem:[%s227 + $0x8] sm:$0xff]
      %v242 = vld [vmem:[%s227 + $0x10] sm:$0xff]
      %v243 = vld [vmem:[%s227 + $0x18] sm:$0xff]
      %v244 = vld [vmem:[%s227 + $0x20] sm:$0xff]
      %v245 = vld [vmem:[%s227 + $0x28] sm:$0xff]
      %v246 = vld [vmem:[%s227 + $0x30] sm:$0xff]
      %v247 = vld [vmem:[%s227 + $0x38] sm:$0xff]
      %v248 = vld [vmem:[%s227 + $0x40] sm:$0xff]
      %v249 = vld [vmem:[%s227 + $0x48] sm:$0xff]
      %v250 = vld [vmem:[%s227 + $0x50] sm:$0xff]
      %v251 = vld [vmem:[%s227 + $0x58] sm:$0xff]
      %v252 = vld [vmem:[%s227 + $0x60] sm:$0xff]
      %v253 = vld [vmem:[%s227 + $0x68] sm:$0xff]
      %v254 = vld [vmem:[%s227 + $0x70] sm:$0xff]
      %v255 = vld [vmem:[%s227 + $0x78] sm:$0xff]
      %v256 = vld [vmem:[%s227 + $0x80] sm:$0xff]
      %v257 = vld [vmem:[%s227 + $0x88] sm:$0xff]
      %v258 = vld [vmem:[%s227 + $0x90] sm:$0xff]
      %v259 = vld [vmem:[%s227 + $0x98] sm:$0xff]
      %v260 = vld [vmem:[%s227 + $0xa0] sm:$0xff]
      %v261 = vld [vmem:[%s227 + $0xa8] sm:$0xff]
      %v262 = vld [vmem:[%s227 + $0xb0] sm:$0xff]
      %v263 = vld [vmem:[%s227 + $0xb8] sm:$0xff]
      %v264 = vld [vmem:[%s227 + $0xc0] sm:$0xff]
      %v265 = vld [vmem:[%s227 + $0xc8] sm:$0xff]
      %v266 = vld [vmem:[%s227 + $0xd0] sm:$0xff]
      %v267 = vld [vmem:[%s227 + $0xd8] sm:$0xff]
      %v268 = vld [vmem:[%s227 + $0xe0] sm:$0xff]
      %v269 = vld [vmem:[%s227 + $0xe8] sm:$0xff]
      %v270 = vld [vmem:[%s227 + $0xf0] sm:$0xff]
      %v271 = vld [vmem:[%s227 + $0xf8] sm:$0xff]
      %v272 = vld [vmem:[%s1] sm:$0x1]
      %v274 = vlaneseq
      %v275 = vshrl.u32 %v274, 7
      %v276 = vsub.s32 0, %v275
      %v277 = vrot.slane %v272, %v276
      %v279 = vmul.f32 %v240, %v277
      %v280 = vmul.f32 %v241, %v277
      %v281 = vmul.f32 %v242, %v277
      %v282 = vmul.f32 %v243, %v277
      %v283 = vmul.f32 %v244, %v277
      %v284 = vmul.f32 %v245, %v277
      %v285 = vmul.f32 %v246, %v277
      %v286 = vmul.f32 %v247, %v277
      %v287 = vmul.f32 %v248, %v277
      %v288 = vmul.f32 %v249, %v277
      %v289 = vmul.f32 %v250, %v277
      %v290 = vmul.f32 %v251, %v277
      %v291 = vmul.f32 %v252, %v277
      %v292 = vmul.f32 %v253, %v277
      %v293 = vmul.f32 %v254, %v277
      %v294 = vmul.f32 %v255, %v277
      %v295 = vmul.f32 %v256, %v277
      %v296 = vmul.f32 %v257, %v277
      %v297 = vmul.f32 %v258, %v277
      %v298 = vmul.f32 %v259, %v277
      %v299 = vmul.f32 %v260, %v277
      %v300 = vmul.f32 %v261, %v277
      %v301 = vmul.f32 %v262, %v277
      %v302 = vmul.f32 %v263, %v277
      %v303 = vmul.f32 %v264, %v277
      %v304 = vmul.f32 %v265, %v277
      %v305 = vmul.f32 %v266, %v277
      %v306 = vmul.f32 %v267, %v277
      %v307 = vmul.f32 %v268, %v277
      %v308 = vmul.f32 %v269, %v277
      %v309 = vmul.f32 %v270, %v277
      %v310 = vmul.f32 %v271, %v277
      %v311 = vld [vmem:[%s2] sm:$0x1]
      %v313 = vlaneseq
      %v314 = vshrl.u32 %v313, 7
      %v315 = vsub.s32 0, %v314
      %v316 = vrot.slane %v311, %v315
      %v318 = vadd.f32 %v279, %v316
      %v319 = vadd.f32 %v280, %v316
      %v320 = vadd.f32 %v281, %v316
      %v321 = vadd.f32 %v282, %v316
      %v322 = vadd.f32 %v283, %v316
      %v323 = vadd.f32 %v284, %v316
      %v324 = vadd.f32 %v285, %v316
      %v325 = vadd.f32 %v286, %v316
      %v326 = vadd.f32 %v287, %v316
      %v327 = vadd.f32 %v288, %v316
      %v328 = vadd.f32 %v289, %v316
      %v329 = vadd.f32 %v290, %v316
      %v330 = vadd.f32 %v291, %v316
      %v331 = vadd.f32 %v292, %v316
      %v332 = vadd.f32 %v293, %v316
      %v333 = vadd.f32 %v294, %v316
      %v334 = vadd.f32 %v295, %v316
      %v335 = vadd.f32 %v296, %v316
      %v336 = vadd.f32 %v297, %v316
      %v337 = vadd.f32 %v298, %v316
      %v338 = vadd.f32 %v299, %v316
      %v339 = vadd.f32 %v300, %v316
      %v340 = vadd.f32 %v301, %v316
      %v341 = vadd.f32 %v302, %v316
      %v342 = vadd.f32 %v303, %v316
      %v343 = vadd.f32 %v304, %v316
      %v344 = vadd.f32 %v305, %v316
      %v345 = vadd.f32 %v306, %v316
      %v346 = vadd.f32 %v307, %v316
      %v347 = vadd.f32 %v308, %v316
      %v348 = vadd.f32 %v309, %v316
      %v349 = vadd.f32 %v310, %v316
      %v350 = vmax.f32 %v318, 0.0
      %v351 = vmax.f32 %v319, 0.0
      %v352 = vmax.f32 %v320, 0.0
      %v353 = vmax.f32 %v321, 0.0
      %v354 = vmax.f32 %v322, 0.0
      %v355 = vmax.f32 %v323, 0.0
      %v356 = vmax.f32 %v324, 0.0
      %v357 = vmax.f32 %v325, 0.0
      %v358 = vmax.f32 %v326, 0.0
      %v359 = vmax.f32 %v327, 0.0
      %v360 = vmax.f32 %v328, 0.0
      %v361 = vmax.f32 %v329, 0.0
      %v362 = vmax.f32 %v330, 0.0
      %v363 = vmax.f32 %v331, 0.0
      %v364 = vmax.f32 %v332, 0.0
      %v365 = vmax.f32 %v333, 0.0
      %v366 = vmax.f32 %v334, 0.0
      %v367 = vmax.f32 %v335, 0.0
      %v368 = vmax.f32 %v336, 0.0
      %v369 = vmax.f32 %v337, 0.0
      %v370 = vmax.f32 %v338, 0.0
      %v371 = vmax.f32 %v339, 0.0
      %v372 = vmax.f32 %v340, 0.0
      %v373 = vmax.f32 %v341, 0.0
      %v374 = vmax.f32 %v342, 0.0
      %v375 = vmax.f32 %v343, 0.0
      %v376 = vmax.f32 %v344, 0.0
      %v377 = vmax.f32 %v345, 0.0
      %v378 = vmax.f32 %v346, 0.0
      %v379 = vmax.f32 %v347, 0.0
      %v380 = vmax.f32 %v348, 0.0
      %v381 = vmax.f32 %v349, 0.0
      %v382 = vpack.c.bf16 %v351, %v350
      %v383 = vpack.c.bf16 %v353, %v352
      %v384 = vpack.c.bf16 %v355, %v354
      %v385 = vpack.c.bf16 %v357, %v356
      %v386 = vpack.c.bf16 %v359, %v358
      %v387 = vpack.c.bf16 %v361, %v360
      %v388 = vpack.c.bf16 %v363, %v362
      %v389 = vpack.c.bf16 %v365, %v364
      %v390 = vpack.c.bf16 %v367, %v366
      %v391 = vpack.c.bf16 %v369, %v368
      %v392 = vpack.c.bf16 %v371, %v370
      %v393 = vpack.c.bf16 %v373, %v372
      %v394 = vpack.c.bf16 %v375, %v374
      %v395 = vpack.c.bf16 %v377, %v376
      %v396 = vpack.c.bf16 %v379, %v378
      %v397 = vpack.c.bf16 %v381, %v380
      %v398 = vld [vmem:[%s3] sm:$0x3]
      %vm399 = vcmask 31744
      %v401 = vsel %vm399, %v382, 0
      %v404 = vsel %vm399, %v383, 0
      %v407 = vsel %vm399, %v384, 0
      %v410 = vsel %vm399, %v385, 0
      %v413 = vsel %vm399, %v386, 0
      %v416 = vsel %vm399, %v387, 0
      %v419 = vsel %vm399, %v388, 0
      %v422 = vsel %vm399, %v389, 0
      %v425 = vsel %vm399, %v390, 0
      %v428 = vsel %vm399, %v391, 0
      %v431 = vsel %vm399, %v392, 0
      %v434 = vsel %vm399, %v393, 0
      %v437 = vsel %vm399, %v394, 0
      %v440 = vsel %vm399, %v395, 0
      %v443 = vsel %vm399, %v396, 0
      %v446 = vsel %vm399, %v397, 0
      %vm448 = vcmask 1041408
      %v450 = vsel %vm448, %v398, 0
      %452 = vmatprep.subr.bf16.mxu0 0
      %453 = vmatpush1.bf16.msra.mxu0 %v450
      %454 = vmatprep.subr.bf16.mxu0 0
      %455 = vmatpush1.bf16.msra.mxu0 0
      %456 = vmatprep.subr.bf16.mxu0 0
      %457 = vmatpush1.bf16.msra.mxu0 0
      %458 = vmatprep.subr.bf16.mxu0 0
      %459 = vmatpush1.bf16.msra.mxu0 0
      %460 = vmatprep.subr.bf16.mxu0 0
      %461 = vmatpush1.bf16.msra.mxu0 0
      %462 = vmatprep.subr.bf16.mxu0 0
      %463 = vmatpush1.bf16.msra.mxu0 0
      %464 = vmatprep.subr.bf16.mxu0 0
      %465 = vmatpush1.bf16.msra.mxu0 0
      %466 = vmatprep.subr.bf16.mxu0 0
      %467 = vmatpush1.bf16.msra.mxu0 0
      %468 = vmatprep.subr.bf16.mxu0 0
      %469 = vmatpush1.bf16.msra.mxu0 0
      %470 = vmatprep.subr.bf16.mxu0 0
      %471 = vmatpush1.bf16.msra.mxu0 0
      %472 = vmatprep.subr.bf16.mxu0 0
      %473 = vmatpush1.bf16.msra.mxu0 0
      %474 = vmatprep.subr.bf16.mxu0 0
      %475 = vmatpush1.bf16.msra.mxu0 0
      %476 = vmatprep.subr.bf16.mxu0 0
      %477 = vmatpush1.bf16.msra.mxu0 0
      %478 = vmatprep.subr.bf16.mxu0 0
      %479 = vmatpush1.bf16.msra.mxu0 0
      %480 = vmatprep.subr.bf16.mxu0 0
      %481 = vmatpush1.bf16.msra.mxu0 0
      %482 = vmatprep.subr.bf16.mxu0 0
      %483 = vmatpush1.bf16.msra.mxu0 0
      %484 = vmatprep.mubr.bf16.mxu0 0
      %485 = vmatmul.mubr.bf16.gmra.mrb[0].mxu0 %v401
      %v486 = vpop.f32.mrb[0].mxu0
      %v487 = vadd.f32 0.0, %v486
      %v488 = vpop.f32.mrb[0].mxu0
      %v489 = vpop.f32.mrb[0].mxu0
      %v490 = vadd.f32 0.0, %v489
      %v491 = vpop.f32.mrb[0].mxu0
      %492 = vmatprep.mubr.bf16.mxu0 0
      %493 = vmatmul.mubr.bf16.gmra.mrb[0].mxu0 %v404
      %v494 = vpop.f32.mrb[0].mxu0
      %v495 = vadd.f32 0.0, %v494
      %v496 = vpop.f32.mrb[0].mxu0
      %v497 = vpop.f32.mrb[0].mxu0
      %v498 = vadd.f32 0.0, %v497
      %v499 = vpop.f32.mrb[0].mxu0
      %500 = vmatprep.mubr.bf16.mxu0 0
      %501 = vmatmul.mubr.bf16.gmra.mrb[0].mxu0 %v407
      %v502 = vpop.f32.mrb[0].mxu0
      %v503 = vadd.f32 0.0, %v502
      %v504 = vpop.f32.mrb[0].mxu0
      %v505 = vpop.f32.mrb[0].mxu0
      %v506 = vadd.f32 0.0, %v505
      %v507 = vpop.f32.mrb[0].mxu0
      %508 = vmatprep.mubr.bf16.mxu0 0
      %509 = vmatmul.mubr.bf16.gmra.mrb[0].mxu0 %v410
      %v510 = vpop.f32.mrb[0].mxu0
      %v511 = vadd.f32 0.0, %v510
      %v512 = vpop.f32.mrb[0].mxu0
      %v513 = vpop.f32.mrb[0].mxu0
      %v514 = vadd.f32 0.0, %v513
      %v515 = vpop.f32.mrb[0].mxu0
      %516 = vmatprep.mubr.bf16.mxu0 0
      %517 = vmatmul.mubr.bf16.gmra.mrb[0].mxu0 %v413
      %v518 = vpop.f32.mrb[0].mxu0
      %v519 = vadd.f32 0.0, %v518
      %v520 = vpop.f32.mrb[0].mxu0
      %v521 = vpop.f32.mrb[0].mxu0
      %v522 = vadd.f32 0.0, %v521
      %v523 = vpop.f32.mrb[0].mxu0
      %524 = vmatprep.mubr.bf16.mxu0 0
      %525 = vmatmul.mubr.bf16.gmra.mrb[0].mxu0 %v416
      %v526 = vpop.f32.mrb[0].mxu0
      %v527 = vadd.f32 0.0, %v526
      %v528 = vpop.f32.mrb[0].mxu0
      %v529 = vpop.f32.mrb[0].mxu0
      %v530 = vadd.f32 0.0, %v529
      %v531 = vpop.f32.mrb[0].mxu0
      %532 = vmatprep.mubr.bf16.mxu0 0
      %533 = vmatmul.mubr.bf16.gmra.mrb[0].mxu0 %v419
      %v534 = vpop.f32.mrb[0].mxu0
      %v535 = vadd.f32 0.0, %v534
      %v536 = vpop.f32.mrb[0].mxu0
      %v537 = vpop.f32.mrb[0].mxu0
      %v538 = vadd.f32 0.0, %v537
      %v539 = vpop.f32.mrb[0].mxu0
      %540 = vmatprep.mubr.bf16.mxu0 0
      %541 = vmatmul.mubr.bf16.gmra.mrb[0].mxu0 %v422
      %v542 = vpop.f32.mrb[0].mxu0
      %v543 = vadd.f32 0.0, %v542
      %v544 = vpop.f32.mrb[0].mxu0
      %v545 = vpop.f32.mrb[0].mxu0
      %v546 = vadd.f32 0.0, %v545
      %v547 = vpop.f32.mrb[0].mxu0
      %548 = vmatprep.mubr.bf16.mxu0 0
      %549 = vmatmul.mubr.bf16.gmra.mrb[0].mxu0 %v425
      %v550 = vpop.f32.mrb[0].mxu0
      %v551 = vadd.f32 0.0, %v550
      %v552 = vpop.f32.mrb[0].mxu0
      %v553 = vpop.f32.mrb[0].mxu0
      %v554 = vadd.f32 0.0, %v553
      %v555 = vpop.f32.mrb[0].mxu0
      %556 = vmatprep.mubr.bf16.mxu0 0
      %557 = vmatmul.mubr.bf16.gmra.mrb[0].mxu0 %v428
      %v558 = vpop.f32.mrb[0].mxu0
      %v559 = vadd.f32 0.0, %v558
      %v560 = vpop.f32.mrb[0].mxu0
      %v561 = vpop.f32.mrb[0].mxu0
      %v562 = vadd.f32 0.0, %v561
      %v563 = vpop.f32.mrb[0].mxu0
      %564 = vmatprep.mubr.bf16.mxu0 0
      %565 = vmatmul.mubr.bf16.gmra.mrb[0].mxu0 %v431
      %v566 = vpop.f32.mrb[0].mxu0
      %v567 = vadd.f32 0.0, %v566
      %v568 = vpop.f32.mrb[0].mxu0
      %v569 = vpop.f32.mrb[0].mxu0
      %v570 = vadd.f32 0.0, %v569
      %v571 = vpop.f32.mrb[0].mxu0
      %572 = vmatprep.mubr.bf16.mxu0 0
      %573 = vmatmul.mubr.bf16.gmra.mrb[0].mxu0 %v434
      %v574 = vpop.f32.mrb[0].mxu0
      %v575 = vadd.f32 0.0, %v574
      %v576 = vpop.f32.mrb[0].mxu0
      %v577 = vpop.f32.mrb[0].mxu0
      %v578 = vadd.f32 0.0, %v577
      %v579 = vpop.f32.mrb[0].mxu0
      %580 = vmatprep.mubr.bf16.mxu0 0
      %581 = vmatmul.mubr.bf16.gmra.mrb[0].mxu0 %v437
      %v582 = vpop.f32.mrb[0].mxu0
      %v583 = vadd.f32 0.0, %v582
      %v584 = vpop.f32.mrb[0].mxu0
      %v585 = vpop.f32.mrb[0].mxu0
      %v586 = vadd.f32 0.0, %v585
      %v587 = vpop.f32.mrb[0].mxu0
      %588 = vmatprep.mubr.bf16.mxu0 0
      %589 = vmatmul.mubr.bf16.gmra.mrb[0].mxu0 %v440
      %v590 = vpop.f32.mrb[0].mxu0
      %v591 = vadd.f32 0.0, %v590
      %v592 = vpop.f32.mrb[0].mxu0
      %v593 = vpop.f32.mrb[0].mxu0
      %v594 = vadd.f32 0.0, %v593
      %v595 = vpop.f32.mrb[0].mxu0
      %596 = vmatprep.mubr.bf16.mxu0 0
      %597 = vmatmul.mubr.bf16.gmra.mrb[0].mxu0 %v443
      %v598 = vpop.f32.mrb[0].mxu0
      %v599 = vadd.f32 0.0, %v598
      %v600 = vpop.f32.mrb[0].mxu0
      %v601 = vpop.f32.mrb[0].mxu0
      %v602 = vadd.f32 0.0, %v601
      %v603 = vpop.f32.mrb[0].mxu0
      %604 = vmatprep.mubr.bf16.mxu0 0
      %605 = vmatmul.mubr.bf16.gmra.mrb[0].mxu0 %v446
      %v606 = vpop.f32.mrb[0].mxu0
      %v607 = vadd.f32 0.0, %v606
      %v608 = vpop.f32.mrb[0].mxu0
      %v609 = vpop.f32.mrb[0].mxu0
      %v610 = vadd.f32 0.0, %v609
      %v611 = vpop.f32.mrb[0].mxu0
      %612 = vdwg.mxu0
      %613 = vst [vmem:[%s233] sm:$0xff] %v487
      %614 = vst [vmem:[%s233 + $0x8] sm:$0xff] %v490
      %615 = vst [vmem:[%s233 + $0x10] sm:$0xff] %v495
      %616 = vst [vmem:[%s233 + $0x18] sm:$0xff] %v498
      %617 = vst [vmem:[%s233 + $0x20] sm:$0xff] %v503
      %618 = vst [vmem:[%s233 + $0x28] sm:$0xff] %v506
      %619 = vst [vmem:[%s233 + $0x30] sm:$0xff] %v511
      %620 = vst [vmem:[%s233 + $0x38] sm:$0xff] %v514
      %621 = vst [vmem:[%s233 + $0x40] sm:$0xff] %v519
      %622 = vst [vmem:[%s233 + $0x48] sm:$0xff] %v522
      %623 = vst [vmem:[%s233 + $0x50] sm:$0xff] %v527
      %624 = vst [vmem:[%s233 + $0x58] sm:$0xff] %v530
      %625 = vst [vmem:[%s233 + $0x60] sm:$0xff] %v535
      %626 = vst [vmem:[%s233 + $0x68] sm:$0xff] %v538
      %627 = vst [vmem:[%s233 + $0x70] sm:$0xff] %v543
      %628 = vst [vmem:[%s233 + $0x78] sm:$0xff] %v546
      %629 = vst [vmem:[%s233 + $0x80] sm:$0xff] %v551
      %630 = vst [vmem:[%s233 + $0x88] sm:$0xff] %v554
      %631 = vst [vmem:[%s233 + $0x90] sm:$0xff] %v559
      %632 = vst [vmem:[%s233 + $0x98] sm:$0xff] %v562
      %633 = vst [vmem:[%s233 + $0xa0] sm:$0xff] %v567
      %634 = vst [vmem:[%s233 + $0xa8] sm:$0xff] %v570
      %635 = vst [vmem:[%s233 + $0xb0] sm:$0xff] %v575
      %636 = vst [vmem:[%s233 + $0xb8] sm:$0xff] %v578
      %637 = vst [vmem:[%s233 + $0xc0] sm:$0xff] %v583
      %638 = vst [vmem:[%s233 + $0xc8] sm:$0xff] %v586
      %639 = vst [vmem:[%s233 + $0xd0] sm:$0xff] %v591
      %640 = vst [vmem:[%s233 + $0xd8] sm:$0xff] %v594
      %641 = vst [vmem:[%s233 + $0xe0] sm:$0xff] %v599
      %642 = vst [vmem:[%s233 + $0xe8] sm:$0xff] %v602
      %643 = vst [vmem:[%s233 + $0xf0] sm:$0xff] %v607
      %644 = vst [vmem:[%s233 + $0xf8] sm:$0xff] %v610
      %v645 = vadd.f32 %v487, %v490
      %v646 = vadd.f32 %v645, %v495
      %v647 = vadd.f32 %v646, %v498
      %v648 = vadd.f32 %v647, %v503
      %v649 = vadd.f32 %v648, %v506
      %v650 = vadd.f32 %v649, %v511
      %v651 = vadd.f32 %v650, %v514
      %v652 = vadd.f32 %v651, %v519
      %v653 = vadd.f32 %v652, %v522
      %v654 = vadd.f32 %v653, %v527
      %v655 = vadd.f32 %v654, %v530
      %v656 = vadd.f32 %v655, %v535
      %v657 = vadd.f32 %v656, %v538
      %v658 = vadd.f32 %v657, %v543
      %v659 = vadd.f32 %v658, %v546
      %v660 = vadd.f32 %v659, %v551
      %v661 = vadd.f32 %v660, %v554
      %v662 = vadd.f32 %v661, %v559
      %v663 = vadd.f32 %v662, %v562
      %v664 = vadd.f32 %v663, %v567
      %v665 = vadd.f32 %v664, %v570
      %v666 = vadd.f32 %v665, %v575
      %v667 = vadd.f32 %v666, %v578
      %v668 = vadd.f32 %v667, %v583
      %v669 = vadd.f32 %v668, %v586
      %v670 = vadd.f32 %v669, %v591
      %v671 = vadd.f32 %v670, %v594
      %v672 = vadd.f32 %v671, %v599
      %v673 = vadd.f32 %v672, %v602
      %v674 = vadd.f32 %v673, %v607
      %v675 = vadd.f32 %v674, %v610
      %v676 = vrot.slane %v675, 4
      %v677 = vadd.f32 %v675, %v676
      %v678 = vrot.slane %v677, 2
      %v679 = vadd.f32 %v677, %v678
      %v680 = vrot.slane %v679, 1
      %v681 = vadd.f32 %v679, %v680
      %v682 = vmul.f32 %v487, %v487
      %v683 = vmul.f32 %v490, %v490
      %v684 = vmul.f32 %v495, %v495
      %v685 = vmul.f32 %v498, %v498
      %v686 = vmul.f32 %v503, %v503
      %v687 = vmul.f32 %v506, %v506
      %v688 = vmul.f32 %v511, %v511
      %v689 = vmul.f32 %v514, %v514
      %v690 = vmul.f32 %v519, %v519
      %v691 = vmul.f32 %v522, %v522
      %v692 = vmul.f32 %v527, %v527
      %v693 = vmul.f32 %v530, %v530
      %v694 = vmul.f32 %v535, %v535
      %v695 = vmul.f32 %v538, %v538
      %v696 = vmul.f32 %v543, %v543
      %v697 = vmul.f32 %v546, %v546
      %v698 = vmul.f32 %v551, %v551
      %v699 = vmul.f32 %v554, %v554
      %v700 = vmul.f32 %v559, %v559
      %v701 = vmul.f32 %v562, %v562
      %v702 = vmul.f32 %v567, %v567
      %v703 = vmul.f32 %v570, %v570
      %v704 = vmul.f32 %v575, %v575
      %v705 = vmul.f32 %v578, %v578
      %v706 = vmul.f32 %v583, %v583
      %v707 = vmul.f32 %v586, %v586
      %v708 = vmul.f32 %v591, %v591
      %v709 = vmul.f32 %v594, %v594
      %v710 = vmul.f32 %v599, %v599
      %v711 = vmul.f32 %v602, %v602
      %v712 = vmul.f32 %v607, %v607
      %v713 = vmul.f32 %v610, %v610
      %v714 = vadd.f32 %v682, %v683
      %v715 = vadd.f32 %v714, %v684
      %v716 = vadd.f32 %v715, %v685
      %v717 = vadd.f32 %v716, %v686
      %v718 = vadd.f32 %v717, %v687
      %v719 = vadd.f32 %v718, %v688
      %v720 = vadd.f32 %v719, %v689
      %v721 = vadd.f32 %v720, %v690
      %v722 = vadd.f32 %v721, %v691
      %v723 = vadd.f32 %v722, %v692
      %v724 = vadd.f32 %v723, %v693
      %v725 = vadd.f32 %v724, %v694
      %v726 = vadd.f32 %v725, %v695
      %v727 = vadd.f32 %v726, %v696
      %v728 = vadd.f32 %v727, %v697
      %v729 = vadd.f32 %v728, %v698
      %v730 = vadd.f32 %v729, %v699
      %v731 = vadd.f32 %v730, %v700
      %v732 = vadd.f32 %v731, %v701
      %v733 = vadd.f32 %v732, %v702
      %v734 = vadd.f32 %v733, %v703
      %v735 = vadd.f32 %v734, %v704
      %v736 = vadd.f32 %v735, %v705
      %v737 = vadd.f32 %v736, %v706
      %v738 = vadd.f32 %v737, %v707
      %v739 = vadd.f32 %v738, %v708
      %v740 = vadd.f32 %v739, %v709
      %v741 = vadd.f32 %v740, %v710
      %v742 = vadd.f32 %v741, %v711
      %v743 = vadd.f32 %v742, %v712
      %v744 = vadd.f32 %v743, %v713
      %v745 = vrot.slane %v744, 4
      %v746 = vadd.f32 %v744, %v745
      %v747 = vrot.slane %v746, 2
      %v748 = vadd.f32 %v746, %v747
      %v749 = vrot.slane %v748, 1
      %v750 = vadd.f32 %v748, %v749
      %v751 = vlaneseq
      %v752 = vshrl.u32 %v751, 7
      %vm753 = vcmp.lt.s32.totalorder %v752, 4
      %v754 = vsel %vm753, %v681, %v750
      %755 = vst [vmem:[%s238] sm:$0xff] %v754
      %s756 = smul.u32 32, %s17
      %p757 = scmp.lt.s32.totalorder %s756, 63
      %s758 = scalar_select %p757, %s756, 63
      %s759 = smul.addr %s758, 8
      %s760 = scalar_lea.vmem %s4, %s759
      %p761 = scmp.lt.s32.totalorder %s17, 1
      %s762 = scalar_select %p761, %s17, 1
      %s763 = smul.addr %s762, 8
      %s764 = scalar_lea.vmem %s5, %s763
      // Predicated region
      $region37: #{bottleneck_forward.5} parent=35 // pred_check
        %p765 = pneg %p124
      $region38: #{bottleneck_forward.5} parent=35 // pred_check_branch
        %767 = sbr.rel (%p765) target = $region40
      $region39: #{bottleneck_forward.5} parent=35 // pred_region
        %s768 = smul.u32 32, %s17
      $region40: #{bottleneck_forward.5} parent=35 // pred_fallthru
        _
      // Predicated region
      $region41: #{bottleneck_forward.5} parent=35 // pred_check
        %p769 = pneg %p150
      $region42: #{bottleneck_forward.5} parent=35 // pred_check_branch
        %771 = sbr.rel (%p769) target = $region44
      $region43: #{bottleneck_forward.5} parent=35 // pred_region
        _
      $region44: #{bottleneck_forward.5} parent=35 // pred_fallthru
        _
    $region36: #{bottleneck_forward.5} parent=5 // pred_fallthru
      _
    %p772 = scmp.le.s32.totalorder 2, %s12
    // Predicated region
    $region45: #{bottleneck_forward.5} parent=5 // pred_check
      %p773 = pneg %p772
    $region46: #{bottleneck_forward.5} parent=5 // pred_check_branch
      %775 = sbr.rel (%p773) target = $region48
    $region47: #{bottleneck_forward.5} parent=5 // pred_region
      %s776 = ssub.s32 %s12, 2
      // Predicated region
      $region49: #{bottleneck_forward.5} parent=47 // pred_check
        %p777 = pneg %p130
      $region50: #{bottleneck_forward.5} parent=47 // pred_check_branch
        %779 = sbr.rel (%p777) target = $region52
      $region51: #{bottleneck_forward.5} parent=47 // pred_region
        %s780 = smul.u32 32, %s18
        %p781 = scmp.lt.s32.totalorder %s780, 63
        %s782 = scalar_select %p781, %s780, 63
        %s783 = smul.addr %s782, 8
        %s784 = scalar_lea.vmem %s4, %s783
      $region52: #{bottleneck_forward.5} parent=47 // pred_fallthru
        _
      // Predicated region
      $region53: #{bottleneck_forward.5} parent=47 // pred_check
        %p785 = pneg %p156
      $region54: #{bottleneck_forward.5} parent=47 // pred_check_branch
        %787 = sbr.rel (%p785) target = $region56
      $region55: #{bottleneck_forward.5} parent=47 // pred_region
        %p788 = scmp.lt.s32.totalorder %s18, 1
        %s789 = scalar_select %p788, %s18, 1
        %s790 = smul.addr %s789, 8
        %s791 = scalar_lea.vmem %s5, %s790
      $region56: #{bottleneck_forward.5} parent=47 // pred_fallthru
        _
    $region48: #{bottleneck_forward.5} parent=5 // pred_fallthru
      _
  $region6: #{bottleneck_forward.5} parent=0 // loop_footer
    %s16 = sadd.s32 1, %s12
  $region7: #{bottleneck_forward.5} parent=0 // loop_footer_branch
    %11 = sbr.rel target = $region3
  $region8: #{bottleneck_forward.5} parent=0 // loop_exit
    _

// kernel: bottleneck_forward.6
$region0: #{bottleneck_forward.6}
  #allocation0 [shape = 'u32[]', space=smem, size = 0x4, offset = 0x4, fixed_abs, tag = 'smem constant byte address 0x4 - core index']
  #allocation1 [shape = 'u32[144,128]{1,0:T(1,128)}', space=vmem, size = 0x12000, scoped, tag = 'internal scratch']
  %s0 = inlined_call_operand.vmem [shape: f32[512,128], index: 0, kind: input, shape index: {}]
  %s1 = inlined_call_operand.vmem [shape: f32[1,128], index: 1, kind: input, shape index: {}]
  %s2 = inlined_call_operand.vmem [shape: f32[1,128], index: 2, kind: input, shape index: {}]
  %s3 = inlined_call_operand.vmem [shape: bf16[512,128], index: 3, kind: output, shape index: {}]
  %s4 = sld [smem:[#allocation0]]
  $region45: #{bottleneck_forward.6} parent=0
    _
  %s6 = ssub.s32 1, %s4
  %s7 = scalar_select 0, %s6, %s4
  loop: start=0, step=1, limit=4
  $region2: #{bottleneck_forward.6} parent=0 // loop_pre_header
    _
  $region3: #{bottleneck_forward.6} parent=0 // loop_header
    %s9 = sphi 0, %s13
    %p10 = scmp.ge.s32.totalorder %s9, 4
    %s19 = sphi 0, %s21
    %s22 = sphi 0, %s19
    %s23 = sphi 0, %s22
    %s39 = sphi 0, %s23
    %s43 = sphi 0, %s43
    %s45 = sphi 0, %s43
    %s46 = sphi 0, %s45
    %s60 = sphi 0, %s46
    %s64 = sphi 0, %s64
    %s66 = sphi 0, %s64
    %s67 = sphi 0, %s66
    %s81 = sphi 0, %s67
    %s87 = sphi 0, %s89
    %s90 = sphi 0, %s87
    %s91 = sphi 0, %s90
    %s107 = sphi 0, %s91
  $region4: #{bottleneck_forward.6} parent=0 // loop_header_branch
    %12 = sbr.rel (%p10) target = $region8
  $region5: #{bottleneck_forward.6} parent=0 // loop_body
    %s14 = ssub.s32 %s9, 1
    %s15 = ssub.s32 %s9, 2
    %s16 = sadd.s32 %s9, 1
    %s17 = ssub.s32 %s9, %s16
    %p18 = scmp.eq.s32.totalorder %s17, 0
    %s20 = sadd.s32 %s19, 1
    %s21 = scalar_select %p18, %s19, %s20
    %p24 = pneg %p18
    %p25 = scmp.eq.s32.totalorder %s9, 1
    %p26 = por %p24, %p25
    %p27 = scmp.ne.s32.totalorder %s19, %s22
    %p28 = scmp.eq.s32.totalorder %s9, 0
    %p29 = por %p27, %p28
    %p30 = scmp.ne.s32.totalorder %s19, %s22
    %p31 = scmp.eq.s32.totalorder %s14, 1
    %p32 = por %p30, %p31
    %p33 = scmp.ne.s32.totalorder %s22, %s23
    %p34 = scmp.eq.s32.totalorder %s14, 0
    %p35 = por %p33, %p34
    %p36 = scmp.ne.s32.totalorder %s22, %s23
    %p37 = scmp.eq.s32.totalorder %s15, 1
    %p38 = por %p36, %p37
    %p40 = scmp.ne.s32.totalorder %s23, %s39
    %p41 = scmp.eq.s32.totalorder %s15, 0
    %p42 = por %p40, %p41
    %s44 = sadd.s32 %s43, 1
    %p47 = scmp.eq.s32.totalorder %s9, 1
    %p48 = scmp.ne.s32.totalorder %s43, %s45
    %p49 = scmp.eq.s32.totalorder %s9, 0
    %p50 = por %p48, %p49
    %p51 = scmp.ne.s32.totalorder %s43, %s45
    %p52 = scmp.eq.s32.totalorder %s14, 1
    %p53 = por %p51, %p52
    %p54 = scmp.ne.s32.totalorder %s45, %s46
    %p55 = scmp.eq.s32.totalorder %s14, 0
    %p56 = por %p54, %p55
    %p57 = scmp.ne.s32.totalorder %s45, %s46
    %p58 = scmp.eq.s32.totalorder %s15, 1
    %p59 = por %p57, %p58
    %p61 = scmp.ne.s32.totalorder %s46, %s60
    %p62 = scmp.eq.s32.totalorder %s15, 0
    %p63 = por %p61, %p62
    %s65 = sadd.s32 %s64, 1
    %p68 = scmp.eq.s32.totalorder %s9, 1
    %p69 = scmp.ne.s32.totalorder %s64, %s66
    %p70 = scmp.eq.s32.totalorder %s9, 0
    %p71 = por %p69, %p70
    %p72 = scmp.ne.s32.totalorder %s64, %s66
    %p73 = scmp.eq.s32.totalorder %s14, 1
    %p74 = por %p72, %p73
    %p75 = scmp.ne.s32.totalorder %s66, %s67
    %p76 = scmp.eq.s32.totalorder %s14, 0
    %p77 = por %p75, %p76
    %p78 = scmp.ne.s32.totalorder %s66, %s67
    %p79 = scmp.eq.s32.totalorder %s15, 1
    %p80 = por %p78, %p79
    %p82 = scmp.ne.s32.totalorder %s67, %s81
    %p83 = scmp.eq.s32.totalorder %s15, 0
    %p84 = por %p82, %p83
    %s85 = ssub.s32 %s9, %s16
    %p86 = scmp.eq.s32.totalorder %s85, 0
    %s88 = sadd.s32 %s87, 1
    %s89 = scalar_select %p86, %s87, %s88
    %p92 = pneg %p86
    %p93 = scmp.eq.s32.totalorder %s9, 1
    %p94 = por %p92, %p93
    %p95 = scmp.ne.s32.totalorder %s87, %s90
    %p96 = scmp.eq.s32.totalorder %s9, 0
    %p97 = por %p95, %p96
    %p98 = scmp.ne.s32.totalorder %s87, %s90
    %p99 = scmp.eq.s32.totalorder %s14, 1
    %p100 = por %p98, %p99
    %p101 = scmp.ne.s32.totalorder %s90, %s91
    %p102 = scmp.eq.s32.totalorder %s14, 0
    %p103 = por %p101, %p102
    %p104 = scmp.ne.s32.totalorder %s90, %s91
    %p105 = scmp.eq.s32.totalorder %s15, 1
    %p106 = por %p104, %p105
    %p108 = scmp.ne.s32.totalorder %s91, %s107
    %p109 = scmp.eq.s32.totalorder %s15, 0
    %p110 = por %p108, %p109
    %p111 = scmp.le.s32.totalorder 1, %s9
    %p112 = scmp.lt.s32.totalorder %s9, 3
    %p113 = pnand %p111, %p112
    %p114 = pneg %p113
    // Predicated region
    $region9: #{bottleneck_forward.6} parent=5 // pred_check
      _
    $region10: #{bottleneck_forward.6} parent=5 // pred_check_branch
      %116 = sbr.rel (%p113) target = $region12
    $region11: #{bottleneck_forward.6} parent=5 // pred_region
      %s117 = ssub.s32 %s9, 1
      // Predicated region
      $region13: #{bottleneck_forward.6} parent=11 // pred_check
        %p118 = pneg %p56
      $region14: #{bottleneck_forward.6} parent=11 // pred_check_branch
        %120 = sbr.rel (%p118) target = $region16
      $region15: #{bottleneck_forward.6} parent=11 // pred_region
        _
      $region16: #{bottleneck_forward.6} parent=11 // pred_fallthru
        _
      // Predicated region
      $region17: #{bottleneck_forward.6} parent=11 // pred_check
        %p121 = pneg %p77
      $region18: #{bottleneck_forward.6} parent=11 // pred_check_branch
        %123 = sbr.rel (%p121) target = $region20
      $region19: #{bottleneck_forward.6} parent=11 // pred_region
        _
      $region20: #{bottleneck_forward.6} parent=11 // pred_fallthru
        _
    $region12: #{bottleneck_forward.6} parent=5 // pred_fallthru
      _
    %p124 = scmp.lt.s32.totalorder %s9, 2
    // Predicated region
    $region21: #{bottleneck_forward.6} parent=5 // pred_check
      %p125 = pneg %p124
    $region22: #{bottleneck_forward.6} parent=5 // pred_check_branch
      %127 = sbr.rel (%p125) target = $region24
    $region23: #{bottleneck_forward.6} parent=5 // pred_region
      // Predicated region
      $region25: #{bottleneck_forward.6} parent=23 // pred_check
        %p128 = pneg %p29
      $region26: #{bottleneck_forward.6} parent=23 // pred_check_branch
        %130 = sbr.rel (%p128) target = $region28
      $region27: #{bottleneck_forward.6} parent=23 // pred_region
        %s131 = smul.u32 32, %s9
        %p132 = scmp.lt.s32.totalorder %s131, 63
        %s133 = scalar_select %p132, %s131, 63
        %s134 = smul.addr %s133, 8
        %s135 = scalar_lea.vmem %s0, %s134
        %s136 = smul.u32 32, %s9
      $region28: #{bottleneck_forward.6} parent=23 // pred_fallthru
        _
    $region24: #{bottleneck_forward.6} parent=5 // pred_fallthru
      _
    %p137 = scmp.le.s32.totalorder 1, %s9
    %p138 = scmp.lt.s32.totalorder %s9, 3
    %p139 = pnand %p137, %p138
    %p140 = pneg %p139
    // Predicated region
    $region29: #{bottleneck_forward.6} parent=5 // pred_check
      _
    $region30: #{bottleneck_forward.6} parent=5 // pred_check_branch
      %142 = sbr.rel (%p139) target = $region32
    $region31: #{bottleneck_forward.6} parent=5 // pred_region
      %s143 = ssub.s32 %s9, 1
      %s144 = smul.u32 32, %s14
      %p145 = scmp.lt.s32.totalorder %s144, 63
      %s146 = scalar_select %p145, %s144, 63
      %s147 = smul.addr %s146, 8
      %s148 = scalar_lea.vmem %s0, %s147
      %p149 = pneg %p35
      %p150 = pneg %p32
      %p151 = pneg %p56
      %p152 = pneg %p53
      %p153 = pneg %p77
      %p154 = pneg %p74
      %p155 = pneg %p103
      %p156 = pneg %p100
      %s157 = smul.u32 32, %s14
      %p158 = scmp.lt.s32.totalorder %s157, 63
      %s159 = scalar_select %p158, %s157, 63
      %s160 = smul.addr %s159, 4
      %s161 = scalar_lea.vmem %s3, %s160
      %s162 = smul.u32 32, %s14
      %p163 = scmp.lt.s32.totalorder %s162, 63
      %s164 = scalar_select %p163, %s162, 63
      %s165 = smul.addr %s164, 8
      %s166 = scalar_lea.vmem %s0, %s165
      %s167 = smul.u32 32, %s14
      %s168 = smul.u32 32, %s14
      %p169 = scmp.lt.s32.totalorder %s168, 63
      %s170 = scalar_select %p169, %s168, 63
      %s171 = smul.addr %s170, 4
      %s172 = scalar_lea.vmem %s3, %s171
      %s173 = smul.u32 32, %s14
      %v174 = vld [vmem:[%s166] sm:$0xff]
      %v175 = vld [vmem:[%s166 + $0x8] sm:$0xff]
      %v176 = vld [vmem:[%s166 + $0x10] sm:$0xff]
      %v177 = vld [vmem:[%s166 + $0x18] sm:$0xff]
      %v178 = vld [vmem:[%s166 + $0x20] sm:$0xff]
      %v179 = vld [vmem:[%s166 + $0x28] sm:$0xff]
      %v180 = vld [vmem:[%s166 + $0x30] sm:$0xff]
      %v181 = vld [vmem:[%s166 + $0x38] sm:$0xff]
      %v182 = vld [vmem:[%s166 + $0x40] sm:$0xff]
      %v183 = vld [vmem:[%s166 + $0x48] sm:$0xff]
      %v184 = vld [vmem:[%s166 + $0x50] sm:$0xff]
      %v185 = vld [vmem:[%s166 + $0x58] sm:$0xff]
      %v186 = vld [vmem:[%s166 + $0x60] sm:$0xff]
      %v187 = vld [vmem:[%s166 + $0x68] sm:$0xff]
      %v188 = vld [vmem:[%s166 + $0x70] sm:$0xff]
      %v189 = vld [vmem:[%s166 + $0x78] sm:$0xff]
      %v190 = vld [vmem:[%s166 + $0x80] sm:$0xff]
      %v191 = vld [vmem:[%s166 + $0x88] sm:$0xff]
      %v192 = vld [vmem:[%s166 + $0x90] sm:$0xff]
      %v193 = vld [vmem:[%s166 + $0x98] sm:$0xff]
      %v194 = vld [vmem:[%s166 + $0xa0] sm:$0xff]
      %v195 = vld [vmem:[%s166 + $0xa8] sm:$0xff]
      %v196 = vld [vmem:[%s166 + $0xb0] sm:$0xff]
      %v197 = vld [vmem:[%s166 + $0xb8] sm:$0xff]
      %v198 = vld [vmem:[%s166 + $0xc0] sm:$0xff]
      %v199 = vld [vmem:[%s166 + $0xc8] sm:$0xff]
      %v200 = vld [vmem:[%s166 + $0xd0] sm:$0xff]
      %v201 = vld [vmem:[%s166 + $0xd8] sm:$0xff]
      %v202 = vld [vmem:[%s166 + $0xe0] sm:$0xff]
      %v203 = vld [vmem:[%s166 + $0xe8] sm:$0xff]
      %v204 = vld [vmem:[%s166 + $0xf0] sm:$0xff]
      %v205 = vld [vmem:[%s166 + $0xf8] sm:$0xff]
      %v206 = vld [vmem:[%s1] sm:$0x1]
      %v208 = vlaneseq
      %v209 = vshrl.u32 %v208, 7
      %v210 = vsub.s32 0, %v209
      %v211 = vrot.slane %v206, %v210
      %v213 = vmul.f32 %v174, %v211
      %v214 = vmul.f32 %v175, %v211
      %v215 = vmul.f32 %v176, %v211
      %v216 = vmul.f32 %v177, %v211
      %v217 = vmul.f32 %v178, %v211
      %v218 = vmul.f32 %v179, %v211
      %v219 = vmul.f32 %v180, %v211
      %v220 = vmul.f32 %v181, %v211
      %v221 = vmul.f32 %v182, %v211
      %v222 = vmul.f32 %v183, %v211
      %v223 = vmul.f32 %v184, %v211
      %v224 = vmul.f32 %v185, %v211
      %v225 = vmul.f32 %v186, %v211
      %v226 = vmul.f32 %v187, %v211
      %v227 = vmul.f32 %v188, %v211
      %v228 = vmul.f32 %v189, %v211
      %v229 = vmul.f32 %v190, %v211
      %v230 = vmul.f32 %v191, %v211
      %v231 = vmul.f32 %v192, %v211
      %v232 = vmul.f32 %v193, %v211
      %v233 = vmul.f32 %v194, %v211
      %v234 = vmul.f32 %v195, %v211
      %v235 = vmul.f32 %v196, %v211
      %v236 = vmul.f32 %v197, %v211
      %v237 = vmul.f32 %v198, %v211
      %v238 = vmul.f32 %v199, %v211
      %v239 = vmul.f32 %v200, %v211
      %v240 = vmul.f32 %v201, %v211
      %v241 = vmul.f32 %v202, %v211
      %v242 = vmul.f32 %v203, %v211
      %v243 = vmul.f32 %v204, %v211
      %v244 = vmul.f32 %v205, %v211
      %v245 = vld [vmem:[%s2] sm:$0x1]
      %v247 = vlaneseq
      %v248 = vshrl.u32 %v247, 7
      %v249 = vsub.s32 0, %v248
      %v250 = vrot.slane %v245, %v249
      %v252 = vadd.f32 %v213, %v250
      %v253 = vadd.f32 %v214, %v250
      %v254 = vadd.f32 %v215, %v250
      %v255 = vadd.f32 %v216, %v250
      %v256 = vadd.f32 %v217, %v250
      %v257 = vadd.f32 %v218, %v250
      %v258 = vadd.f32 %v219, %v250
      %v259 = vadd.f32 %v220, %v250
      %v260 = vadd.f32 %v221, %v250
      %v261 = vadd.f32 %v222, %v250
      %v262 = vadd.f32 %v223, %v250
      %v263 = vadd.f32 %v224, %v250
      %v264 = vadd.f32 %v225, %v250
      %v265 = vadd.f32 %v226, %v250
      %v266 = vadd.f32 %v227, %v250
      %v267 = vadd.f32 %v228, %v250
      %v268 = vadd.f32 %v229, %v250
      %v269 = vadd.f32 %v230, %v250
      %v270 = vadd.f32 %v231, %v250
      %v271 = vadd.f32 %v232, %v250
      %v272 = vadd.f32 %v233, %v250
      %v273 = vadd.f32 %v234, %v250
      %v274 = vadd.f32 %v235, %v250
      %v275 = vadd.f32 %v236, %v250
      %v276 = vadd.f32 %v237, %v250
      %v277 = vadd.f32 %v238, %v250
      %v278 = vadd.f32 %v239, %v250
      %v279 = vadd.f32 %v240, %v250
      %v280 = vadd.f32 %v241, %v250
      %v281 = vadd.f32 %v242, %v250
      %v282 = vadd.f32 %v243, %v250
      %v283 = vadd.f32 %v244, %v250
      %v284 = vmax.f32 %v252, 0.0
      %v285 = vmax.f32 %v253, 0.0
      %v286 = vmax.f32 %v254, 0.0
      %v287 = vmax.f32 %v255, 0.0
      %v288 = vmax.f32 %v256, 0.0
      %v289 = vmax.f32 %v257, 0.0
      %v290 = vmax.f32 %v258, 0.0
      %v291 = vmax.f32 %v259, 0.0
      %v292 = vmax.f32 %v260, 0.0
      %v293 = vmax.f32 %v261, 0.0
      %v294 = vmax.f32 %v262, 0.0
      %v295 = vmax.f32 %v263, 0.0
      %v296 = vmax.f32 %v264, 0.0
      %v297 = vmax.f32 %v265, 0.0
      %v298 = vmax.f32 %v266, 0.0
      %v299 = vmax.f32 %v267, 0.0
      %v300 = vmax.f32 %v268, 0.0
      %v301 = vmax.f32 %v269, 0.0
      %v302 = vmax.f32 %v270, 0.0
      %v303 = vmax.f32 %v271, 0.0
      %v304 = vmax.f32 %v272, 0.0
      %v305 = vmax.f32 %v273, 0.0
      %v306 = vmax.f32 %v274, 0.0
      %v307 = vmax.f32 %v275, 0.0
      %v308 = vmax.f32 %v276, 0.0
      %v309 = vmax.f32 %v277, 0.0
      %v310 = vmax.f32 %v278, 0.0
      %v311 = vmax.f32 %v279, 0.0
      %v312 = vmax.f32 %v280, 0.0
      %v313 = vmax.f32 %v281, 0.0
      %v314 = vmax.f32 %v282, 0.0
      %v315 = vmax.f32 %v283, 0.0
      %v316 = vpack.c.bf16 %v285, %v284
      %v317 = vpack.c.bf16 %v287, %v286
      %v318 = vpack.c.bf16 %v289, %v288
      %v319 = vpack.c.bf16 %v291, %v290
      %v320 = vpack.c.bf16 %v293, %v292
      %v321 = vpack.c.bf16 %v295, %v294
      %v322 = vpack.c.bf16 %v297, %v296
      %v323 = vpack.c.bf16 %v299, %v298
      %v324 = vpack.c.bf16 %v301, %v300
      %v325 = vpack.c.bf16 %v303, %v302
      %v326 = vpack.c.bf16 %v305, %v304
      %v327 = vpack.c.bf16 %v307, %v306
      %v328 = vpack.c.bf16 %v309, %v308
      %v329 = vpack.c.bf16 %v311, %v310
      %v330 = vpack.c.bf16 %v313, %v312
      %v331 = vpack.c.bf16 %v315, %v314
      %v348 = vunpack.c.l.b16 %v316
      %v349 = vunpack.c.h.b16 %v316
      %v350 = vunpack.c.l.b16 %v317
      %v351 = vunpack.c.h.b16 %v317
      %v352 = vunpack.c.l.b16 %v318
      %v353 = vunpack.c.h.b16 %v318
      %v354 = vunpack.c.l.b16 %v319
      %v355 = vunpack.c.h.b16 %v319
      %v356 = vunpack.c.l.b16 %v320
      %v357 = vunpack.c.h.b16 %v320
      %v358 = vunpack.c.l.b16 %v321
      %v359 = vunpack.c.h.b16 %v321
      %v360 = vunpack.c.l.b16 %v322
      %v361 = vunpack.c.h.b16 %v322
      %v362 = vunpack.c.l.b16 %v323
      %v363 = vunpack.c.h.b16 %v323
      %v364 = vunpack.c.l.b16 %v324
      %v365 = vunpack.c.h.b16 %v324
      %v366 = vunpack.c.l.b16 %v325
      %v367 = vunpack.c.h.b16 %v325
      %v368 = vunpack.c.l.b16 %v326
      %v369 = vunpack.c.h.b16 %v326
      %v370 = vunpack.c.l.b16 %v327
      %v371 = vunpack.c.h.b16 %v327
      %v372 = vunpack.c.l.b16 %v328
      %v373 = vunpack.c.h.b16 %v328
      %v374 = vunpack.c.l.b16 %v329
      %v375 = vunpack.c.h.b16 %v329
      %v376 = vunpack.c.l.b16 %v330
      %v377 = vunpack.c.h.b16 %v330
      %v378 = vunpack.c.l.b16 %v331
      %v379 = vunpack.c.h.b16 %v331
      %v380 = vpack.c.b16 %v348, %v348
      %v381 = vpack.c.b16 %v349, %v349
      %v382 = vpack.c.b16 %v350, %v350
      %v383 = vpack.c.b16 %v351, %v351
      %v384 = vpack.c.b16 %v352, %v352
      %v385 = vpack.c.b16 %v353, %v353
      %v386 = vpack.c.b16 %v354, %v354
      %v387 = vpack.c.b16 %v355, %v355
      %v388 = vpack.c.b16 %v356, %v356
      %v389 = vpack.c.b16 %v357, %v357
      %v390 = vpack.c.b16 %v358, %v358
      %v391 = vpack.c.b16 %v359, %v359
      %v392 = vpack.c.b16 %v360, %v360
      %v393 = vpack.c.b16 %v361, %v361
      %v394 = vpack.c.b16 %v362, %v362
      %v395 = vpack.c.b16 %v363, %v363
      %v396 = vpack.c.b16 %v364, %v364
      %v397 = vpack.c.b16 %v365, %v365
      %v398 = vpack.c.b16 %v366, %v366
      %v399 = vpack.c.b16 %v367, %v367
      %v400 = vpack.c.b16 %v368, %v368
      %v401 = vpack.c.b16 %v369, %v369
      %v402 = vpack.c.b16 %v370, %v370
      %v403 = vpack.c.b16 %v371, %v371
      %v404 = vpack.c.b16 %v372, %v372
      %v405 = vpack.c.b16 %v373, %v373
      %v406 = vpack.c.b16 %v374, %v374
      %v407 = vpack.c.b16 %v375, %v375
      %v408 = vpack.c.b16 %v376, %v376
      %v409 = vpack.c.b16 %v377, %v377
      %v410 = vpack.c.b16 %v378, %v378
      %v411 = vpack.c.b16 %v379, %v379
      %444 = vst [vmem:[%s172] sm:$0xf] %v380
      %445 = vst [vmem:[%s172 + $0x4] sm:$0xf] %v381
      %446 = vst [vmem:[%s172 + $0x8] sm:$0xf] %v382
      %447 = vst [vmem:[%s172 + $0xc] sm:$0xf] %v383
      %448 = vst [vmem:[%s172 + $0x10] sm:$0xf] %v384
      %449 = vst [vmem:[%s172 + $0x14] sm:$0xf] %v385
      %450 = vst [vmem:[%s172 + $0x18] sm:$0xf] %v386
      %451 = vst [vmem:[%s172 + $0x1c] sm:$0xf] %v387
      %452 = vst [vmem:[%s172 + $0x20] sm:$0xf] %v388
      %453 = vst [vmem:[%s172 + $0x24] sm:$0xf] %v389
      %454 = vst [vmem:[%s172 + $0x28] sm:$0xf] %v390
      %455 = vst [vmem:[%s172 + $0x2c] sm:$0xf] %v391
      %456 = vst [vmem:[%s172 + $0x30] sm:$0xf] %v392
      %457 = vst [vmem:[%s172 + $0x34] sm:$0xf] %v393
      %458 = vst [vmem:[%s172 + $0x38] sm:$0xf] %v394
      %459 = vst [vmem:[%s172 + $0x3c] sm:$0xf] %v395
      %460 = vst [vmem:[%s172 + $0x40] sm:$0xf] %v396
      %461 = vst [vmem:[%s172 + $0x44] sm:$0xf] %v397
      %462 = vst [vmem:[%s172 + $0x48] sm:$0xf] %v398
      %463 = vst [vmem:[%s172 + $0x4c] sm:$0xf] %v399
      %464 = vst [vmem:[%s172 + $0x50] sm:$0xf] %v400
      %465 = vst [vmem:[%s172 + $0x54] sm:$0xf] %v401
      %466 = vst [vmem:[%s172 + $0x58] sm:$0xf] %v402
      %467 = vst [vmem:[%s172 + $0x5c] sm:$0xf] %v403
      %468 = vst [vmem:[%s172 + $0x60] sm:$0xf] %v404
      %469 = vst [vmem:[%s172 + $0x64] sm:$0xf] %v405
      %470 = vst [vmem:[%s172 + $0x68] sm:$0xf] %v406
      %471 = vst [vmem:[%s172 + $0x6c] sm:$0xf] %v407
      %472 = vst [vmem:[%s172 + $0x70] sm:$0xf] %v408
      %473 = vst [vmem:[%s172 + $0x74] sm:$0xf] %v409
      %474 = vst [vmem:[%s172 + $0x78] sm:$0xf] %v410
      %475 = vst [vmem:[%s172 + $0x7c] sm:$0xf] %v411
      %s476 = smul.u32 32, %s14
      %p477 = scmp.lt.s32.totalorder %s476, 63
      %s478 = scalar_select %p477, %s476, 63
      %s479 = smul.addr %s478, 4
      %s480 = scalar_lea.vmem %s3, %s479
      // Predicated region
      $region33: #{bottleneck_forward.6} parent=31 // pred_check
        %p481 = pneg %p100
      $region34: #{bottleneck_forward.6} parent=31 // pred_check_branch
        %483 = sbr.rel (%p481) target = $region36
      $region35: #{bottleneck_forward.6} parent=31 // pred_region
        %s484 = smul.u32 32, %s14
      $region36: #{bottleneck_forward.6} parent=31 // pred_fallthru
        _
    $region32: #{bottleneck_forward.6} parent=5 // pred_fallthru
      _
    %p485 = scmp.le.s32.totalorder 2, %s9
    // Predicated region
    $region37: #{bottleneck_forward.6} parent=5 // pred_check
      %p486 = pneg %p485
    $region38: #{bottleneck_forward.6} parent=5 // pred_check_branch
      %488 = sbr.rel (%p486) target = $region40
    $region39: #{bottleneck_forward.6} parent=5 // pred_region
      %s489 = ssub.s32 %s9, 2
      // Predicated region
      $region41: #{bottleneck_forward.6} parent=39 // pred_check
        %p490 = pneg %p106
      $region42: #{bottleneck_forward.6} parent=39 // pred_check_branch
        %492 = sbr.rel (%p490) target = $region44
      $region43: #{bottleneck_forward.6} parent=39 // pred_region
        %s493 = smul.u32 32, %s15
        %p494 = scmp.lt.s32.totalorder %s493, 63
        %s495 = scalar_select %p494, %s493, 63
        %s496 = smul.addr %s495, 4
        %s497 = scalar_lea.vmem %s3, %s496
      $region44: #{bottleneck_forward.6} parent=39 // pred_fallthru
        _
    $region40: #{bottleneck_forward.6} parent=5 // pred_fallthru
      _
  $region6: #{bottleneck_forward.6} parent=0 // loop_footer
    %s13 = sadd.s32 1, %s9
  $region7: #{bottleneck_forward.6} parent=0 // loop_footer_branch
    %8 = sbr.rel target = $region3
  $region8: #{bottleneck_forward.6} parent=0 // loop_exit
    _

// kernel: bottleneck_forward.7
$region0: #{bottleneck_forward.7}
  #allocation0 [shape = 'u32[]', space=smem, size = 0x4, offset = 0x4, fixed_abs, tag = 'smem constant byte address 0x4 - core index']
  #allocation1 [shape = 'u32[144,128]{1,0:T(1,128)}', space=vmem, size = 0x12000, scoped, tag = 'internal scratch']
  %s0 = inlined_call_operand.vmem [shape: bf16[512,1152], index: 0, kind: input, shape index: {}]
  %s1 = inlined_call_operand.vmem [shape: bf16[1152,128], index: 1, kind: input, shape index: {}]
  %s2 = inlined_call_operand.vmem [shape: f32[512,128], index: 2, kind: output, shape index: {}]
  %s3 = sld [smem:[#allocation0]]
  $region41: #{bottleneck_forward.7} parent=0
    _
  %s5 = ssub.s32 1, %s3
  %s6 = scalar_select 0, %s5, %s3
  loop: start=0, step=1, limit=4
  $region2: #{bottleneck_forward.7} parent=0 // loop_pre_header
    _
  $region3: #{bottleneck_forward.7} parent=0 // loop_header
    %s8 = sphi 0, %s12
    %p9 = scmp.ge.s32.totalorder %s8, 4
    %s18 = sphi 0, %s20
    %s21 = sphi 0, %s18
    %s22 = sphi 0, %s21
    %s38 = sphi 0, %s22
    %s42 = sphi 0, %s42
    %s44 = sphi 0, %s42
    %s45 = sphi 0, %s44
    %s59 = sphi 0, %s45
    %s65 = sphi 0, %s67
    %s68 = sphi 0, %s65
    %s69 = sphi 0, %s68
    %s85 = sphi 0, %s69
  $region4: #{bottleneck_forward.7} parent=0 // loop_header_branch
    %11 = sbr.rel (%p9) target = $region8
  $region5: #{bottleneck_forward.7} parent=0 // loop_body
    %s13 = ssub.s32 %s8, 1
    %s14 = ssub.s32 %s8, 2
    %s15 = sadd.s32 %s8, 1
    %s16 = ssub.s32 %s8, %s15
    %p17 = scmp.eq.s32.totalorder %s16, 0
    %s19 = sadd.s32 %s18, 1
    %s20 = scalar_select %p17, %s18, %s19
    %p23 = pneg %p17
    %p24 = scmp.eq.s32.totalorder %s8, 1
    %p25 = por %p23, %p24
    %p26 = scmp.ne.s32.totalorder %s18, %s21
    %p27 = scmp.eq.s32.totalorder %s8, 0
    %p28 = por %p26, %p27
    %p29 = scmp.ne.s32.totalorder %s18, %s21
    %p30 = scmp.eq.s32.totalorder %s13, 1
    %p31 = por %p29, %p30
    %p32 = scmp.ne.s32.totalorder %s21, %s22
    %p33 = scmp.eq.s32.totalorder %s13, 0
    %p34 = por %p32, %p33
    %p35 = scmp.ne.s32.totalorder %s21, %s22
    %p36 = scmp.eq.s32.totalorder %s14, 1
    %p37 = por %p35, %p36
    %p39 = scmp.ne.s32.totalorder %s22, %s38
    %p40 = scmp.eq.s32.totalorder %s14, 0
    %p41 = por %p39, %p40
    %s43 = sadd.s32 %s42, 1
    %p46 = scmp.eq.s32.totalorder %s8, 1
    %p47 = scmp.ne.s32.totalorder %s42, %s44
    %p48 = scmp.eq.s32.totalorder %s8, 0
    %p49 = por %p47, %p48
    %p50 = scmp.ne.s32.totalorder %s42, %s44
    %p51 = scmp.eq.s32.totalorder %s13, 1
    %p52 = por %p50, %p51
    %p53 = scmp.ne.s32.totalorder %s44, %s45
    %p54 = scmp.eq.s32.totalorder %s13, 0
    %p55 = por %p53, %p54
    %p56 = scmp.ne.s32.totalorder %s44, %s45
    %p57 = scmp.eq.s32.totalorder %s14, 1
    %p58 = por %p56, %p57
    %p60 = scmp.ne.s32.totalorder %s45, %s59
    %p61 = scmp.eq.s32.totalorder %s14, 0
    %p62 = por %p60, %p61
    %s63 = ssub.s32 %s8, %s15
    %p64 = scmp.eq.s32.totalorder %s63, 0
    %s66 = sadd.s32 %s65, 1
    %s67 = scalar_select %p64, %s65, %s66
    %p70 = pneg %p64
    %p71 = scmp.eq.s32.totalorder %s8, 1
    %p72 = por %p70, %p71
    %p73 = scmp.ne.s32.totalorder %s65, %s68
    %p74 = scmp.eq.s32.totalorder %s8, 0
    %p75 = por %p73, %p74
    %p76 = scmp.ne.s32.totalorder %s65, %s68
    %p77 = scmp.eq.s32.totalorder %s13, 1
    %p78 = por %p76, %p77
    %p79 = scmp.ne.s32.totalorder %s68, %s69
    %p80 = scmp.eq.s32.totalorder %s13, 0
    %p81 = por %p79, %p80
    %p82 = scmp.ne.s32.totalorder %s68, %s69
    %p83 = scmp.eq.s32.totalorder %s14, 1
    %p84 = por %p82, %p83
    %p86 = scmp.ne.s32.totalorder %s69, %s85
    %p87 = scmp.eq.s32.totalorder %s14, 0
    %p88 = por %p86, %p87
    %p89 = scmp.le.s32.totalorder 1, %s8
    %p90 = scmp.lt.s32.totalorder %s8, 3
    %p91 = pnand %p89, %p90
    %p92 = pneg %p91
    // Predicated region
    $region9: #{bottleneck_forward.7} parent=5 // pred_check
      _
    $region10: #{bottleneck_forward.7} parent=5 // pred_check_branch
      %94 = sbr.rel (%p91) target = $region12
    $region11: #{bottleneck_forward.7} parent=5 // pred_region
      %s95 = ssub.s32 %s8, 1
      // Predicated region
      $region13: #{bottleneck_forward.7} parent=11 // pred_check
        %p96 = pneg %p55
      $region14: #{bottleneck_forward.7} parent=11 // pred_check_branch
        %98 = sbr.rel (%p96) target = $region16
      $region15: #{bottleneck_forward.7} parent=11 // pred_region
        _
      $region16: #{bottleneck_forward.7} parent=11 // pred_fallthru
        _
    $region12: #{bottleneck_forward.7} parent=5 // pred_fallthru
      _
    %p99 = scmp.lt.s32.totalorder %s8, 2
    // Predicated region
    $region17: #{bottleneck_forward.7} parent=5 // pred_check
      %p100 = pneg %p99
    $region18: #{bottleneck_forward.7} parent=5 // pred_check_branch
      %102 = sbr.rel (%p100) target = $region20
    $region19: #{bottleneck_forward.7} parent=5 // pred_region
      // Predicated region
      $region21: #{bottleneck_forward.7} parent=19 // pred_check
        %p103 = pneg %p28
      $region22: #{bottleneck_forward.7} parent=19 // pred_check_branch
        %105 = sbr.rel (%p103) target = $region24
      $region23: #{bottleneck_forward.7} parent=19 // pred_region
        %s106 = smul.u32 32, %s8
        %p107 = scmp.lt.s32.totalorder %s106, 63
        %s108 = scalar_select %p107, %s106, 63
        %s109 = smul.addr %s108, 9
        %s110 = smul.addr %s109, 4
        %s111 = scalar_lea.vmem %s0, %s110
        %s112 = smul.u32 32, %s8
      $region24: #{bottleneck_forward.7} parent=19 // pred_fallthru
        _
    $region20: #{bottleneck_forward.7} parent=5 // pred_fallthru
      _
    %p113 = scmp.le.s32.totalorder 1, %s8
    %p114 = scmp.lt.s32.totalorder %s8, 3
    %p115 = pnand %p113, %p114
    %p116 = pneg %p115
    // Predicated region
    $region25: #{bottleneck_forward.7} parent=5 // pred_check
      _
    $region26: #{bottleneck_forward.7} parent=5 // pred_check_branch
      %118 = sbr.rel (%p115) target = $region28
    $region27: #{bottleneck_forward.7} parent=5 // pred_region
      %s119 = ssub.s32 %s8, 1
      %s120 = smul.u32 32, %s13
      %p121 = scmp.lt.s32.totalorder %s120, 63
      %s122 = scalar_select %p121, %s120, 63
      %s123 = smul.addr %s122, 9
      %s124 = smul.addr %s123, 4
      %s125 = scalar_lea.vmem %s0, %s124
      %p126 = pneg %p34
      %p127 = pneg %p31
      %p128 = pneg %p55
      %p129 = pneg %p52
      %p130 = pneg %p81
      %p131 = pneg %p78
      %s132 = smul.u32 32, %s13
      %p133 = scmp.lt.s32.totalorder %s132, 63
      %s134 = scalar_select %p133, %s132, 63
      %s135 = smul.addr %s134, 8
      %s136 = scalar_lea.vmem %s2, %s135
      %s137 = smul.u32 32, %s13
      %p138 = scmp.lt.s32.totalorder %s137, 63
      %s139 = scalar_select %p138, %s137, 63
      %s140 = smul.addr %s139, 9
      %s141 = smul.addr %s140, 4
      %s142 = scalar_lea.vmem %s0, %s141
      %s143 = smul.u32 32, %s13
      %s144 = smul.u32 32, %s13
      %p145 = scmp.lt.s32.totalorder %s144, 63
      %s146 = scalar_select %p145, %s144, 63
      %s147 = smul.addr %s146, 8
      %s148 = scalar_lea.vmem %s2, %s147
      %s149 = smul.u32 32, %s13
      %v151 = vld [vmem:[%s142] sm:$0xff]
      %v152 = vld [vmem:[%s142 + $0x8] sm:$0xff]
      %v153 = vld [vmem:[%s142 + $0x10] sm:$0xff]
      %v154 = vld [vmem:[%s142 + $0x18] sm:$0xff]
      %v155 = vld [vmem:[%s142 + $0x20] sm:$0xf]
      %v156 = vld [vmem:[%s142 + $0x24] sm:$0xff]
      %v157 = vld [vmem:[%s142 + $0x2c] sm:$0xff]
      %v158 = vld [vmem:[%s142 + $0x34] sm:$0xff]
      %v159 = vld [vmem:[%s142 + $0x3c] sm:$0xff]
      %v160 = vld [vmem:[%s142 + $0x44] sm:$0xf]
      %v161 = vld [vmem:[%s142 + $0x48] sm:$0xff]
      %v162 = vld [vmem:[%s142 + $0x50] sm:$0xff]
      %v163 = vld [vmem:[%s142 + $0x58] sm:$0xff]
      %v164 = vld [vmem:[%s142 + $0x60] sm:$0xff]
      %v165 = vld [vmem:[%s142 + $0x68] sm:$0xf]
      %v166 = vld [vmem:[%s142 + $0x6c] sm:$0xff]
      %v167 = vld [vmem:[%s142 + $0x74] sm:$0xff]
      %v168 = vld [vmem:[%s142 + $0x7c] sm:$0xff]
      %v169 = vld [vmem:[%s142 + $0x84] sm:$0xff]
      %v170 = vld [vmem:[%s142 + $0x8c] sm:$0xf]
      %v171 = vld [vmem:[%s142 + $0x90] sm:$0xff]
      %v172 = vld [vmem:[%s142 + $0x98] sm:$0xff]
      %v173 = vld [vmem:[%s142 + $0xa0] sm:$0xff]
      %v174 = vld [vmem:[%s142 + $0xa8] sm:$0xff]
      %v175 = vld [vmem:[%s142 + $0xb0] sm:$0xf]
      %v176 = vld [vmem:[%s142 + $0xb4] sm:$0xff]
      %v177 = vld [vmem:[%s142 + $0xbc] sm:$0xff]
      %v178 = vld [vmem:[%s142 + $0xc4] sm:$0xff]
      %v179 = vld [vmem:[%s142 + $0xcc] sm:$0xff]
      %v180 = vld [vmem:[%s142 + $0xd4] sm:$0xf]
      %v181 = vld [vmem:[%s142 + $0xd8] sm:$0xff]
      %v182 = vld [vmem:[%s142 + $0xe0] sm:$0xff]
      %v183 = vld [vmem:[%s142 + $0xe8] sm:$0xff]
      %v184 = vld [vmem:[%s142 + $0xf0] sm:$0xff]
      %v185 = vld [vmem:[%s142 + $0xf8] sm:$0xf]
      %v186 = vld [vmem:[%s142 + $0xfc] sm:$0xff]
      %v187 = vld [vmem:[%s142 + $0x104] sm:$0xff]
      %v188 = vld [vmem:[%s142 + $0x10c] sm:$0xff]
      %v189 = vld [vmem:[%s142 + $0x114] sm:$0xff]
      %v190 = vld [vmem:[%s142 + $0x11c] sm:$0xf]
      %v191 = vld [vmem:[%s142 + $0x120] sm:$0xff]
      %v192 = vld [vmem:[%s142 + $0x128] sm:$0xff]
      %v193 = vld [vmem:[%s142 + $0x130] sm:$0xff]
      %v194 = vld [vmem:[%s142 + $0x138] sm:$0xff]
      %v195 = vld [vmem:[%s142 + $0x140] sm:$0xf]
      %v196 = vld [vmem:[%s142 + $0x144] sm:$0xff]
      %v197 = vld [vmem:[%s142 + $0x14c] sm:$0xff]
      %v198 = vld [vmem:[%s142 + $0x154] sm:$0xff]
      %v199 = vld [vmem:[%s142 + $0x15c] sm:$0xff]
      %v200 = vld [vmem:[%s142 + $0x164] sm:$0xf]
      %v201 = vld [vmem:[%s142 + $0x168] sm:$0xff]
      %v202 = vld [vmem:[%s142 + $0x170] sm:$0xff]
      %v203 = vld [vmem:[%s142 + $0x178] sm:$0xff]
      %v204 = vld [vmem:[%s142 + $0x180] sm:$0xff]
      %v205 = vld [vmem:[%s142 + $0x188] sm:$0xf]
      %v206 = vld [vmem:[%s142 + $0x18c] sm:$0xff]
      %v207 = vld [vmem:[%s142 + $0x194] sm:$0xff]
      %v208 = vld [vmem:[%s142 + $0x19c] sm:$0xff]
      %v209 = vld [vmem:[%s142 + $0x1a4] sm:$0xff]
      %v210 = vld [vmem:[%s142 + $0x1ac] sm:$0xf]
      %v211 = vld [vmem:[%s142 + $0x1b0] sm:$0xff]
      %v212 = vld [vmem:[%s142 + $0x1b8] sm:$0xff]
      %v213 = vld [vmem:[%s142 + $0x1c0] sm:$0xff]
      %v214 = vld [vmem:[%s142 + $0x1c8] sm:$0xff]
      %v215 = vld [vmem:[%s142 + $0x1d0] sm:$0xf]
      %v216 = vld [vmem:[%s142 + $0x1d4] sm:$0xff]
      %v217 = vld [vmem:[%s142 + $0x1dc] sm:$0xff]
      %v218 = vld [vmem:[%s142 + $0x1e4] sm:$0xff]
      %v219 = vld [vmem:[%s142 + $0x1ec] sm:$0xff]
      %v220 = vld [vmem:[%s142 + $0x1f4] sm:$0xf]
      %v221 = vld [vmem:[%s142 + $0x1f8] sm:$0xff]
      %v222 = vld [vmem:[%s142 + $0x200] sm:$0xff]
      %v223 = vld [vmem:[%s142 + $0x208] sm:$0xff]
      %v224 = vld [vmem:[%s142 + $0x210] sm:$0xff]
      %v225 = vld [vmem:[%s142 + $0x218] sm:$0xf]
      %v226 = vld [vmem:[%s142 + $0x21c] sm:$0xff]
      %v227 = vld [vmem:[%s142 + $0x224] sm:$0xff]
      %v228 = vld [vmem:[%s142 + $0x22c] sm:$0xff]
      %v229 = vld [vmem:[%s142 + $0x234] sm:$0xff]
      %v230 = vld [vmem:[%s142 + $0x23c] sm:$0xf]
      %v231 = vld [vmem:[%s142 + $0x240] sm:$0xff]
      %v232 = vld [vmem:[%s142 + $0x248] sm:$0xff]
      %v233 = vld [vmem:[%s142 + $0x250] sm:$0xff]
      %v234 = vld [vmem:[%s142 + $0x258] sm:$0xff]
      %v235 = vld [vmem:[%s142 + $0x260] sm:$0xf]
      %v236 = vld [vmem:[%s142 + $0x264] sm:$0xff]
      %v237 = vld [vmem:[%s142 + $0x26c] sm:$0xff]
      %v238 = vld [vmem:[%s142 + $0x274] sm:$0xff]
      %v239 = vld [vmem:[%s142 + $0x27c] sm:$0xff]
      %v240 = vld [vmem:[%s142 + $0x284] sm:$0xf]
      %v241 = vld [vmem:[%s142 + $0x288] sm:$0xff]
      %v242 = vld [vmem:[%s142 + $0x290] sm:$0xff]
      %v243 = vld [vmem:[%s142 + $0x298] sm:$0xff]
      %v244 = vld [vmem:[%s142 + $0x2a0] sm:$0xff]
      %v245 = vld [vmem:[%s142 + $0x2a8] sm:$0xf]
      %v246 = vld [vmem:[%s142 + $0x2ac] sm:$0xff]
      %v247 = vld [vmem:[%s142 + $0x2b4] sm:$0xff]
      %v248 = vld [vmem:[%s142 + $0x2bc] sm:$0xff]
      %v249 = vld [vmem:[%s142 + $0x2c4] sm:$0xff]
      %v250 = vld [vmem:[%s142 + $0x2cc] sm:$0xf]
      %v251 = vld [vmem:[%s142 + $0x2d0] sm:$0xff]
      %v252 = vld [vmem:[%s142 + $0x2d8] sm:$0xff]
      %v253 = vld [vmem:[%s142 + $0x2e0] sm:$0xff]
      %v254 = vld [vmem:[%s142 + $0x2e8] sm:$0xff]
      %v255 = vld [vmem:[%s142 + $0x2f0] sm:$0xf]
      %v256 = vld [vmem:[%s142 + $0x2f4] sm:$0xff]
      %v257 = vld [vmem:[%s142 + $0x2fc] sm:$0xff]
      %v258 = vld [vmem:[%s142 + $0x304] sm:$0xff]
      %v259 = vld [vmem:[%s142 + $0x30c] sm:$0xff]
      %v260 = vld [vmem:[%s142 + $0x314] sm:$0xf]
      %v261 = vld [vmem:[%s142 + $0x318] sm:$0xff]
      %v262 = vld [vmem:[%s142 + $0x320] sm:$0xff]
      %v263 = vld [vmem:[%s142 + $0x328] sm:$0xff]
      %v264 = vld [vmem:[%s142 + $0x330] sm:$0xff]
      %v265 = vld [vmem:[%s142 + $0x338] sm:$0xf]
      %v266 = vld [vmem:[%s142 + $0x33c] sm:$0xff]
      %v267 = vld [vmem:[%s142 + $0x344] sm:$0xff]
      %v268 = vld [vmem:[%s142 + $0x34c] sm:$0xff]
      %v269 = vld [vmem:[%s142 + $0x354] sm:$0xff]
      %v270 = vld [vmem:[%s142 + $0x35c] sm:$0xf]
      %v271 = vld [vmem:[%s142 + $0x360] sm:$0xff]
      %v272 = vld [vmem:[%s142 + $0x368] sm:$0xff]
      %v273 = vld [vmem:[%s142 + $0x370] sm:$0xff]
      %v274 = vld [vmem:[%s142 + $0x378] sm:$0xff]
      %v275 = vld [vmem:[%s142 + $0x380] sm:$0xf]
      %v276 = vld [vmem:[%s142 + $0x384] sm:$0xff]
      %v277 = vld [vmem:[%s142 + $0x38c] sm:$0xff]
      %v278 = vld [vmem:[%s142 + $0x394] sm:$0xff]
      %v279 = vld [vmem:[%s142 + $0x39c] sm:$0xff]
      %v280 = vld [vmem:[%s142 + $0x3a4] sm:$0xf]
      %v281 = vld [vmem:[%s142 + $0x3a8] sm:$0xff]
      %v282 = vld [vmem:[%s142 + $0x3b0] sm:$0xff]
      %v283 = vld [vmem:[%s142 + $0x3b8] sm:$0xff]
      %v284 = vld [vmem:[%s142 + $0x3c0] sm:$0xff]
      %v285 = vld [vmem:[%s142 + $0x3c8] sm:$0xf]
      %v286 = vld [vmem:[%s142 + $0x3cc] sm:$0xff]
      %v287 = vld [vmem:[%s142 + $0x3d4] sm:$0xff]
      %v288 = vld [vmem:[%s142 + $0x3dc] sm:$0xff]
      %v289 = vld [vmem:[%s142 + $0x3e4] sm:$0xff]
      %v290 = vld [vmem:[%s142 + $0x3ec] sm:$0xf]
      %v291 = vld [vmem:[%s142 + $0x3f0] sm:$0xff]
      %v292 = vld [vmem:[%s142 + $0x3f8] sm:$0xff]
      %v293 = vld [vmem:[%s142 + $0x400] sm:$0xff]
      %v294 = vld [vmem:[%s142 + $0x408] sm:$0xff]
      %v295 = vld [vmem:[%s142 + $0x410] sm:$0xf]
      %v296 = vld [vmem:[%s142 + $0x414] sm:$0xff]
      %v297 = vld [vmem:[%s142 + $0x41c] sm:$0xff]
      %v298 = vld [vmem:[%s142 + $0x424] sm:$0xff]
      %v299 = vld [vmem:[%s142 + $0x42c] sm:$0xff]
      %v300 = vld [vmem:[%s142 + $0x434] sm:$0xf]
      %v301 = vld [vmem:[%s142 + $0x438] sm:$0xff]
      %v302 = vld [vmem:[%s142 + $0x440] sm:$0xff]
      %v303 = vld [vmem:[%s142 + $0x448] sm:$0xff]
      %v304 = vld [vmem:[%s142 + $0x450] sm:$0xff]
      %v305 = vld [vmem:[%s142 + $0x458] sm:$0xf]
      %v306 = vld [vmem:[%s142 + $0x45c] sm:$0xff]
      %v307 = vld [vmem:[%s142 + $0x464] sm:$0xff]
      %v308 = vld [vmem:[%s142 + $0x46c] sm:$0xff]
      %v309 = vld [vmem:[%s142 + $0x474] sm:$0xff]
      %v310 = vld [vmem:[%s142 + $0x47c] sm:$0xf]
      %v311 = vld [vmem:[%s1] sm:$0xf]
      %v312 = vld [vmem:[%s1 + $0x4] sm:$0xf]
      %v313 = vld [vmem:[%s1 + $0x8] sm:$0xf]
      %v314 = vld [vmem:[%s1 + $0xc] sm:$0xf]
      %v315 = vld [vmem:[%s1 + $0x10] sm:$0xf]
      %v316 = vld [vmem:[%s1 + $0x14] sm:$0xf]
      %v317 = vld [vmem:[%s1 + $0x18] sm:$0xf]
      %v318 = vld [vmem:[%s1 + $0x1c] sm:$0xf]
      %v319 = vld [vmem:[%s1 + $0x20] sm:$0xf]
      %v320 = vld [vmem:[%s1 + $0x24] sm:$0xf]
      %v321 = vld [vmem:[%s1 + $0x28] sm:$0xf]
      %v322 = vld [vmem:[%s1 + $0x2c] sm:$0xf]
      %v323 = vld [vmem:[%s1 + $0x30] sm:$0xf]
      %v324 = vld [vmem:[%s1 + $0x34] sm:$0xf]
      %v325 = vld [vmem:[%s1 + $0x38] sm:$0xf]
      %v326 = vld [vmem:[%s1 + $0x3c] sm:$0xf]
      %v327 = vld [vmem:[%s1 + $0x40] sm:$0xf]
      %v328 = vld [vmem:[%s1 + $0x44] sm:$0xf]
      %v329 = vld [vmem:[%s1 + $0x48] sm:$0xf]
      %v330 = vld [vmem:[%s1 + $0x4c] sm:$0xf]
      %v331 = vld [vmem:[%s1 + $0x50] sm:$0xf]
      %v332 = vld [vmem:[%s1 + $0x54] sm:$0xf]
      %v333 = vld [vmem:[%s1 + $0x58] sm:$0xf]
      %v334 = vld [vmem:[%s1 + $0x5c] sm:$0xf]
      %v335 = vld [vmem:[%s1 + $0x60] sm:$0xf]
      %v336 = vld [vmem:[%s1 + $0x64] sm:$0xf]
      %v337 = vld [vmem:[%s1 + $0x68] sm:$0xf]
      %v338 = vld [vmem:[%s1 + $0x6c] sm:$0xf]
      %v339 = vld [vmem:[%s1 + $0x70] sm:$0xf]
      %v340 = vld [vmem:[%s1 + $0x74] sm:$0xf]
      %v341 = vld [vmem:[%s1 + $0x78] sm:$0xf]
      %v342 = vld [vmem:[%s1 + $0x7c] sm:$0xf]
      %v343 = vld [vmem:[%s1 + $0x80] sm:$0xf]
      %v344 = vld [vmem:[%s1 + $0x84] sm:$0xf]
      %v345 = vld [vmem:[%s1 + $0x88] sm:$0xf]
      %v346 = vld [vmem:[%s1 + $0x8c] sm:$0xf]
      %v347 = vld [vmem:[%s1 + $0x90] sm:$0xf]
      %v348 = vld [vmem:[%s1 + $0x94] sm:$0xf]
      %v349 = vld [vmem:[%s1 + $0x98] sm:$0xf]
      %v350 = vld [vmem:[%s1 + $0x9c] sm:$0xf]
      %v351 = vld [vmem:[%s1 + $0xa0] sm:$0xf]
      %v352 = vld [vmem:[%s1 + $0xa4] sm:$0xf]
      %v353 = vld [vmem:[%s1 + $0xa8] sm:$0xf]
      %v354 = vld [vmem:[%s1 + $0xac] sm:$0xf]
      %v355 = vld [vmem:[%s1 + $0xb0] sm:$0xf]
      %v356 = vld [vmem:[%s1 + $0xb4] sm:$0xf]
      %v357 = vld [vmem:[%s1 + $0xb8] sm:$0xf]
      %v358 = vld [vmem:[%s1 + $0xbc] sm:$0xf]
      %v359 = vld [vmem:[%s1 + $0xc0] sm:$0xf]
      %v360 = vld [vmem:[%s1 + $0xc4] sm:$0xf]
      %v361 = vld [vmem:[%s1 + $0xc8] sm:$0xf]
      %v362 = vld [vmem:[%s1 + $0xcc] sm:$0xf]
      %v363 = vld [vmem:[%s1 + $0xd0] sm:$0xf]
      %v364 = vld [vmem:[%s1 + $0xd4] sm:$0xf]
      %v365 = vld [vmem:[%s1 + $0xd8] sm:$0xf]
      %v366 = vld [vmem:[%s1 + $0xdc] sm:$0xf]
      %v367 = vld [vmem:[%s1 + $0xe0] sm:$0xf]
      %v368 = vld [vmem:[%s1 + $0xe4] sm:$0xf]
      %v369 = vld [vmem:[%s1 + $0xe8] sm:$0xf]
      %v370 = vld [vmem:[%s1 + $0xec] sm:$0xf]
      %v371 = vld [vmem:[%s1 + $0xf0] sm:$0xf]
      %v372 = vld [vmem:[%s1 + $0xf4] sm:$0xf]
      %v373 = vld [vmem:[%s1 + $0xf8] sm:$0xf]
      %v374 = vld [vmem:[%s1 + $0xfc] sm:$0xf]
      %v375 = vld [vmem:[%s1 + $0x100] sm:$0xf]
      %v376 = vld [vmem:[%s1 + $0x104] sm:$0xf]
      %v377 = vld [vmem:[%s1 + $0x108] sm:$0xf]
      %v378 = vld [vmem:[%s1 + $0x10c] sm:$0xf]
      %v379 = vld [vmem:[%s1 + $0x110] sm:$0xf]
      %v380 = vld [vmem:[%s1 + $0x114] sm:$0xf]
      %v381 = vld [vmem:[%s1 + $0x118] sm:$0xf]
      %v382 = vld [vmem:[%s1 + $0x11c] sm:$0xf]
      %v383 = vld [vmem:[%s1 + $0x120] sm:$0xf]
      %v384 = vld [vmem:[%s1 + $0x124] sm:$0xf]
      %v385 = vld [vmem:[%s1 + $0x128] sm:$0xf]
      %v386 = vld [vmem:[%s1 + $0x12c] sm:$0xf]
      %v387 = vld [vmem:[%s1 + $0x130] sm:$0xf]
      %v388 = vld [vmem:[%s1 + $0x134] sm:$0xf]
      %v389 = vld [vmem:[%s1 + $0x138] sm:$0xf]
      %v390 = vld [vmem:[%s1 + $0x13c] sm:$0xf]
      %v391 = vld [vmem:[%s1 + $0x140] sm:$0xf]
      %v392 = vld [vmem:[%s1 + $0x144] sm:$0xf]
      %v393 = vld [vmem:[%s1 + $0x148] sm:$0xf]
      %v394 = vld [vmem:[%s1 + $0x14c] sm:$0xf]
      %v395 = vld [vmem:[%s1 + $0x150] sm:$0xf]
      %v396 = vld [vmem:[%s1 + $0x154] sm:$0xf]
      %v397 = vld [vmem:[%s1 + $0x158] sm:$0xf]
      %v398 = vld [vmem:[%s1 + $0x15c] sm:$0xf]
      %v399 = vld [vmem:[%s1 + $0x160] sm:$0xf]
      %v400 = vld [vmem:[%s1 + $0x164] sm:$0xf]
      %v401 = vld [vmem:[%s1 + $0x168] sm:$0xf]
      %v402 = vld [vmem:[%s1 + $0x16c] sm:$0xf]
      %v403 = vld [vmem:[%s1 + $0x170] sm:$0xf]
      %v404 = vld [vmem:[%s1 + $0x174] sm:$0xf]
      %v405 = vld [vmem:[%s1 + $0x178] sm:$0xf]
      %v406 = vld [vmem:[%s1 + $0x17c] sm:$0xf]
      %v407 = vld [vmem:[%s1 + $0x180] sm:$0xf]
      %v408 = vld [vmem:[%s1 + $0x184] sm:$0xf]
      %v409 = vld [vmem:[%s1 + $0x188] sm:$0xf]
      %v410 = vld [vmem:[%s1 + $0x18c] sm:$0xf]
      %v411 = vld [vmem:[%s1 + $0x190] sm:$0xf]
      %v412 = vld [vmem:[%s1 + $0x194] sm:$0xf]
      %v413 = vld [vmem:[%s1 + $0x198] sm:$0xf]
      %v414 = vld [vmem:[%s1 + $0x19c] sm:$0xf]
      %v415 = vld [vmem:[%s1 + $0x1a0] sm:$0xf]
      %v416 = vld [vmem:[%s1 + $0x1a4] sm:$0xf]
      %v417 = vld [vmem:[%s1 + $0x1a8] sm:$0xf]
      %v418 = vld [vmem:[%s1 + $0x1ac] sm:$0xf]
      %v419 = vld [vmem:[%s1 + $0x1b0] sm:$0xf]
      %v420 = vld [vmem:[%s1 + $0x1b4] sm:$0xf]
      %v421 = vld [vmem:[%s1 + $0x1b8] sm:$0xf]
      %v422 = vld [vmem:[%s1 + $0x1bc] sm:$0xf]
      %v423 = vld [vmem:[%s1 + $0x1c0] sm:$0xf]
      %v424 = vld [vmem:[%s1 + $0x1c4] sm:$0xf]
      %v425 = vld [vmem:[%s1 + $0x1c8] sm:$0xf]
      %v426 = vld [vmem:[%s1 + $0x1cc] sm:$0xf]
      %v427 = vld [vmem:[%s1 + $0x1d0] sm:$0xf]
      %v428 = vld [vmem:[%s1 + $0x1d4] sm:$0xf]
      %v429 = vld [vmem:[%s1 + $0x1d8] sm:$0xf]
      %v430 = vld [vmem:[%s1 + $0x1dc] sm:$0xf]
      %v431 = vld [vmem:[%s1 + $0x1e0] sm:$0xf]
      %v432 = vld [vmem:[%s1 + $0x1e4] sm:$0xf]
      %v433 = vld [vmem:[%s1 + $0x1e8] sm:$0xf]
      %v434 = vld [vmem:[%s1 + $0x1ec] sm:$0xf]
      %v435 = vld [vmem:[%s1 + $0x1f0] sm:$0xf]
      %v436 = vld [vmem:[%s1 + $0x1f4] sm:$0xf]
      %v437 = vld [vmem:[%s1 + $0x1f8] sm:$0xf]
      %v438 = vld [vmem:[%s1 + $0x1fc] sm:$0xf]
      %v439 = vld [vmem:[%s1 + $0x200] sm:$0xf]
      %v440 = vld [vmem:[%s1 + $0x204] sm:$0xf]
      %v441 = vld [vmem:[%s1 + $0x208] sm:$0xf]
      %v442 = vld [vmem:[%s1 + $0x20c] sm:$0xf]
      %v443 = vld [vmem:[%s1 + $0x210] sm:$0xf]
      %v444 = vld [vmem:[%s1 + $0x214] sm:$0xf]
      %v445 = vld [vmem:[%s1 + $0x218] sm:$0xf]
      %v446 = vld [vmem:[%s1 + $0x21c] sm:$0xf]
      %v447 = vld [vmem:[%s1 + $0x220] sm:$0xf]
      %v448 = vld [vmem:[%s1 + $0x224] sm:$0xf]
      %v449 = vld [vmem:[%s1 + $0x228] sm:$0xf]
      %v450 = vld [vmem:[%s1 + $0x22c] sm:$0xf]
      %v451 = vld [vmem:[%s1 + $0x230] sm:$0xf]
      %v452 = vld [vmem:[%s1 + $0x234] sm:$0xf]
      %v453 = vld [vmem:[%s1 + $0x238] sm:$0xf]
      %v454 = vld [vmem:[%s1 + $0x23c] sm:$0xf]
      %v615 = vunpack.c.l.b16 %v151
      %v616 = vunpack.c.h.b16 %v151
      %v617 = vunpack.c.l.b16 %v152
      %v618 = vunpack.c.h.b16 %v152
      %v619 = vunpack.c.l.b16 %v153
      %v620 = vunpack.c.h.b16 %v153
      %v621 = vunpack.c.l.b16 %v154
      %v622 = vunpack.c.h.b16 %v154
      %v623 = vunpack.c.l.b16 %v155
      %v624 = vunpack.c.l.b16 %v156
      %v625 = vunpack.c.h.b16 %v156
      %v626 = vunpack.c.l.b16 %v157
      %v627 = vunpack.c.h.b16 %v157
      %v628 = vunpack.c.l.b16 %v158
      %v629 = vunpack.c.h.b16 %v158
      %v630 = vunpack.c.l.b16 %v159
      %v631 = vunpack.c.h.b16 %v159
      %v632 = vunpack.c.l.b16 %v160
      %v633 = vunpack.c.l.b16 %v161
      %v634 = vunpack.c.h.b16 %v161
      %v635 = vunpack.c.l.b16 %v162
      %v636 = vunpack.c.h.b16 %v162
      %v637 = vunpack.c.l.b16 %v163
      %v638 = vunpack.c.h.b16 %v163
      %v639 = vunpack.c.l.b16 %v164
      %v640 = vunpack.c.h.b16 %v164
      %v641 = vunpack.c.l.b16 %v165
      %v642 = vunpack.c.l.b16 %v166
      %v643 = vunpack.c.h.b16 %v166
      %v644 = vunpack.c.l.b16 %v167
      %v645 = vunpack.c.h.b16 %v167
      %v646 = vunpack.c.l.b16 %v168
      %v647 = vunpack.c.h.b16 %v168
      %v648 = vunpack.c.l.b16 %v169
      %v649 = vunpack.c.h.b16 %v169
      %v650 = vunpack.c.l.b16 %v170
      %v651 = vunpack.c.l.b16 %v171
      %v652 = vunpack.c.h.b16 %v171
      %v653 = vunpack.c.l.b16 %v172
      %v654 = vunpack.c.h.b16 %v172
      %v655 = vunpack.c.l.b16 %v173
      %v656 = vunpack.c.h.b16 %v173
      %v657 = vunpack.c.l.b16 %v174
      %v658 = vunpack.c.h.b16 %v174
      %v659 = vunpack.c.l.b16 %v175
      %v660 = vunpack.c.l.b16 %v176
      %v661 = vunpack.c.h.b16 %v176
      %v662 = vunpack.c.l.b16 %v177
      %v663 = vunpack.c.h.b16 %v177
      %v664 = vunpack.c.l.b16 %v178
      %v665 = vunpack.c.h.b16 %v178
      %v666 = vunpack.c.l.b16 %v179
      %v667 = vunpack.c.h.b16 %v179
      %v668 = vunpack.c.l.b16 %v180
      %v669 = vunpack.c.l.b16 %v181
      %v670 = vunpack.c.h.b16 %v181
      %v671 = vunpack.c.l.b16 %v182
      %v672 = vunpack.c.h.b16 %v182
      %v673 = vunpack.c.l.b16 %v183
      %v674 = vunpack.c.h.b16 %v183
      %v675 = vunpack.c.l.b16 %v184
      %v676 = vunpack.c.h.b16 %v184
      %v677 = vunpack.c.l.b16 %v185
      %v678 = vunpack.c.l.b16 %v186
      %v679 = vunpack.c.h.b16 %v186
      %v680 = vunpack.c.l.b16 %v187
      %v681 = vunpack.c.h.b16 %v187
      %v682 = vunpack.c.l.b16 %v188
      %v683 = vunpack.c.h.b16 %v188
      %v684 = vunpack.c.l.b16 %v189
      %v685 = vunpack.c.h.b16 %v189
      %v686 = vunpack.c.l.b16 %v190
      %v687 = vunpack.c.l.b16 %v191
      %v688 = vunpack.c.h.b16 %v191
      %v689 = vunpack.c.l.b16 %v192
      %v690 = vunpack.c.h.b16 %v192
      %v691 = vunpack.c.l.b16 %v193
      %v692 = vunpack.c.h.b16 %v193
      %v693 = vunpack.c.l.b16 %v194
      %v694 = vunpack.c.h.b16 %v194
      %v695 = vunpack.c.l.b16 %v195
      %v696 = vunpack.c.l.b16 %v196
      %v697 = vunpack.c.h.b16 %v196
      %v698 = vunpack.c.l.b16 %v197
      %v699 = vunpack.c.h.b16 %v197
      %v700 = vunpack.c.l.b16 %v198
      %v701 = vunpack.c.h.b16 %v198
      %v702 = vunpack.c.l.b16 %v199
      %v703 = vunpack.c.h.b16 %v199
      %v704 = vunpack.c.l.b16 %v200
      %v705 = vunpack.c.l.b16 %v201
      %v706 = vunpack.c.h.b16 %v201
      %v707 = vunpack.c.l.b16 %v202
      %v708 = vunpack.c.h.b16 %v202
      %v709 = vunpack.c.l.b16 %v203
      %v710 = vunpack.c.h.b16 %v203
      %v711 = vunpack.c.l.b16 %v204
      %v712 = vunpack.c.h.b16 %v204
      %v713 = vunpack.c.l.b16 %v205
      %v714 = vunpack.c.l.b16 %v206
      %v715 = vunpack.c.h.b16 %v206
      %v716 = vunpack.c.l.b16 %v207
      %v717 = vunpack.c.h.b16 %v207
      %v718 = vunpack.c.l.b16 %v208
      %v719 = vunpack.c.h.b16 %v208
      %v720 = vunpack.c.l.b16 %v209
      %v721 = vunpack.c.h.b16 %v209
      %v722 = vunpack.c.l.b16 %v210
      %v723 = vunpack.c.l.b16 %v211
      %v724 = vunpack.c.h.b16 %v211
      %v725 = vunpack.c.l.b16 %v212
      %v726 = vunpack.c.h.b16 %v212
      %v727 = vunpack.c.l.b16 %v213
      %v728 = vunpack.c.h.b16 %v213
      %v729 = vunpack.c.l.b16 %v214
      %v730 = vunpack.c.h.b16 %v214
      %v731 = vunpack.c.l.b16 %v215
      %v732 = vunpack.c.l.b16 %v216
      %v733 = vunpack.c.h.b16 %v216
      %v734 = vunpack.c.l.b16 %v217
      %v735 = vunpack.c.h.b16 %v217
      %v736 = vunpack.c.l.b16 %v218
      %v737 = vunpack.c.h.b16 %v218
      %v738 = vunpack.c.l.b16 %v219
      %v739 = vunpack.c.h.b16 %v219
      %v740 = vunpack.c.l.b16 %v220
      %v741 = vunpack.c.l.b16 %v221
      %v742 = vunpack.c.h.b16 %v221
      %v743 = vunpack.c.l.b16 %v222
      %v744 = vunpack.c.h.b16 %v222
      %v745 = vunpack.c.l.b16 %v223
      %v746 = vunpack.c.h.b16 %v223
      %v747 = vunpack.c.l.b16 %v224
      %v748 = vunpack.c.h.b16 %v224
      %v749 = vunpack.c.l.b16 %v225
      %v750 = vunpack.c.l.b16 %v226
      %v751 = vunpack.c.h.b16 %v226
      %v752 = vunpack.c.l.b16 %v227
      %v753 = vunpack.c.h.b16 %v227
      %v754 = vunpack.c.l.b16 %v228
      %v755 = vunpack.c.h.b16 %v228
      %v756 = vunpack.c.l.b16 %v229
      %v757 = vunpack.c.h.b16 %v229
      %v758 = vunpack.c.l.b16 %v230
      %v759 = vunpack.c.l.b16 %v231
      %v760 = vunpack.c.h.b16 %v231
      %v761 = vunpack.c.l.b16 %v232
      %v762 = vunpack.c.h.b16 %v232
      %v763 = vunpack.c.l.b16 %v233
      %v764 = vunpack.c.h.b16 %v233
      %v765 = vunpack.c.l.b16 %v234
      %v766 = vunpack.c.h.b16 %v234
      %v767 = vunpack.c.l.b16 %v235
      %v768 = vunpack.c.l.b16 %v236
      %v769 = vunpack.c.h.b16 %v236
      %v770 = vunpack.c.l.b16 %v237
      %v771 = vunpack.c.h.b16 %v237
      %v772 = vunpack.c.l.b16 %v238
      %v773 = vunpack.c.h.b16 %v238
      %v774 = vunpack.c.l.b16 %v239
      %v775 = vunpack.c.h.b16 %v239
      %v776 = vunpack.c.l.b16 %v240
      %v777 = vunpack.c.l.b16 %v241
      %v778 = vunpack.c.h.b16 %v241
      %v779 = vunpack.c.l.b16 %v242
      %v780 = vunpack.c.h.b16 %v242
      %v781 = vunpack.c.l.b16 %v243
      %v782 = vunpack.c.h.b16 %v243
      %v783 = vunpack.c.l.b16 %v244
      %v784 = vunpack.c.h.b16 %v244
      %v785 = vunpack.c.l.b16 %v245
      %v786 = vunpack.c.l.b16 %v246
      %v787 = vunpack.c.h.b16 %v246
      %v788 = vunpack.c.l.b16 %v247
      %v789 = vunpack.c.h.b16 %v247
      %v790 = vunpack.c.l.b16 %v248
      %v791 = vunpack.c.h.b16 %v248
      %v792 = vunpack.c.l.b16 %v249
      %v793 = vunpack.c.h.b16 %v249
      %v794 = vunpack.c.l.b16 %v250
      %v795 = vunpack.c.l.b16 %v251
      %v796 = vunpack.c.h.b16 %v251
      %v797 = vunpack.c.l.b16 %v252
      %v798 = vunpack.c.h.b16 %v252
      %v799 = vunpack.c.l.b16 %v253
      %v800 = vunpack.c.h.b16 %v253
      %v801 = vunpack.c.l.b16 %v254
      %v802 = vunpack.c.h.b16 %v254
      %v803 = vunpack.c.l.b16 %v255
      %v804 = vunpack.c.l.b16 %v256
      %v805 = vunpack.c.h.b16 %v256
      %v806 = vunpack.c.l.b16 %v257
      %v807 = vunpack.c.h.b16 %v257
      %v808 = vunpack.c.l.b16 %v258
      %v809 = vunpack.c.h.b16 %v258
      %v810 = vunpack.c.l.b16 %v259
      %v811 = vunpack.c.h.b16 %v259
      %v812 = vunpack.c.l.b16 %v260
      %v813 = vunpack.c.l.b16 %v261
      %v814 = vunpack.c.h.b16 %v261
      %v815 = vunpack.c.l.b16 %v262
      %v816 = vunpack.c.h.b16 %v262
      %v817 = vunpack.c.l.b16 %v263
      %v818 = vunpack.c.h.b16 %v263
      %v819 = vunpack.c.l.b16 %v264
      %v820 = vunpack.c.h.b16 %v264
      %v821 = vunpack.c.l.b16 %v265
      %v822 = vunpack.c.l.b16 %v266
      %v823 = vunpack.c.h.b16 %v266
      %v824 = vunpack.c.l.b16 %v267
      %v825 = vunpack.c.h.b16 %v267
      %v826 = vunpack.c.l.b16 %v268
      %v827 = vunpack.c.h.b16 %v268
      %v828 = vunpack.c.l.b16 %v269
      %v829 = vunpack.c.h.b16 %v269
      %v830 = vunpack.c.l.b16 %v270
      %v831 = vunpack.c.l.b16 %v271
      %v832 = vunpack.c.h.b16 %v271
      %v833 = vunpack.c.l.b16 %v272
      %v834 = vunpack.c.h.b16 %v272
      %v835 = vunpack.c.l.b16 %v273
      %v836 = vunpack.c.h.b16 %v273
      %v837 = vunpack.c.l.b16 %v274
      %v838 = vunpack.c.h.b16 %v274
      %v839 = vunpack.c.l.b16 %v275
      %v840 = vunpack.c.l.b16 %v276
      %v841 = vunpack.c.h.b16 %v276
      %v842 = vunpack.c.l.b16 %v277
      %v843 = vunpack.c.h.b16 %v277
      %v844 = vunpack.c.l.b16 %v278
      %v845 = vunpack.c.h.b16 %v278
      %v846 = vunpack.c.l.b16 %v279
      %v847 = vunpack.c.h.b16 %v279
      %v848 = vunpack.c.l.b16 %v280
      %v849 = vunpack.c.l.b16 %v281
      %v850 = vunpack.c.h.b16 %v281
      %v851 = vunpack.c.l.b16 %v282
      %v852 = vunpack.c.h.b16 %v282
      %v853 = vunpack.c.l.b16 %v283
      %v854 = vunpack.c.h.b16 %v283
      %v855 = vunpack.c.l.b16 %v284
      %v856 = vunpack.c.h.b16 %v284
      %v857 = vunpack.c.l.b16 %v285
      %v858 = vunpack.c.l.b16 %v286
      %v859 = vunpack.c.h.b16 %v286
      %v860 = vunpack.c.l.b16 %v287
      %v861 = vunpack.c.h.b16 %v287
      %v862 = vunpack.c.l.b16 %v288
      %v863 = vunpack.c.h.b16 %v288
      %v864 = vunpack.c.l.b16 %v289
      %v865 = vunpack.c.h.b16 %v289
      %v866 = vunpack.c.l.b16 %v290
      %v867 = vunpack.c.l.b16 %v291
      %v868 = vunpack.c.h.b16 %v291
      %v869 = vunpack.c.l.b16 %v292
      %v870 = vunpack.c.h.b16 %v292
      %v871 = vunpack.c.l.b16 %v293
      %v872 = vunpack.c.h.b16 %v293
      %v873 = vunpack.c.l.b16 %v294
      %v874 = vunpack.c.h.b16 %v294
      %v875 = vunpack.c.l.b16 %v295
      %v876 = vunpack.c.l.b16 %v296
      %v877 = vunpack.c.h.b16 %v296
      %v878 = vunpack.c.l.b16 %v297
      %v879 = vunpack.c.h.b16 %v297
      %v880 = vunpack.c.l.b16 %v298
      %v881 = vunpack.c.h.b16 %v298
      %v882 = vunpack.c.l.b16 %v299
      %v883 = vunpack.c.h.b16 %v299
      %v884 = vunpack.c.l.b16 %v300
      %v885 = vunpack.c.l.b16 %v301
      %v886 = vunpack.c.h.b16 %v301
      %v887 = vunpack.c.l.b16 %v302
      %v888 = vunpack.c.h.b16 %v302
      %v889 = vunpack.c.l.b16 %v303
      %v890 = vunpack.c.h.b16 %v303
      %v891 = vunpack.c.l.b16 %v304
      %v892 = vunpack.c.h.b16 %v304
      %v893 = vunpack.c.l.b16 %v305
      %v894 = vunpack.c.l.b16 %v306
      %v895 = vunpack.c.h.b16 %v306
      %v896 = vunpack.c.l.b16 %v307
      %v897 = vunpack.c.h.b16 %v307
      %v898 = vunpack.c.l.b16 %v308
      %v899 = vunpack.c.h.b16 %v308
      %v900 = vunpack.c.l.b16 %v309
      %v901 = vunpack.c.h.b16 %v309
      %v902 = vunpack.c.l.b16 %v310
      %v903 = vpack.c.b16 %v624, %v615
      %v904 = vpack.c.b16 %v625, %v616
      %v905 = vpack.c.b16 %v626, %v617
      %v906 = vpack.c.b16 %v627, %v618
      %v907 = vpack.c.b16 %v628, %v619
      %v908 = vpack.c.b16 %v629, %v620
      %v909 = vpack.c.b16 %v630, %v621
      %v910 = vpack.c.b16 %v631, %v622
      %v911 = vpack.c.b16 %v632, %v623
      %v912 = vpack.c.b16 %v642, %v633
      %v913 = vpack.c.b16 %v643, %v634
      %v914 = vpack.c.b16 %v644, %v635
      %v915 = vpack.c.b16 %v645, %v636
      %v916 = vpack.c.b16 %v646, %v637
      %v917 = vpack.c.b16 %v647, %v638
      %v918 = vpack.c.b16 %v648, %v639
      %v919 = vpack.c.b16 %v649, %v640
      %v920 = vpack.c.b16 %v650, %v641
      %v921 = vpack.c.b16 %v660, %v651
      %v922 = vpack.c.b16 %v661, %v652
      %v923 = vpack.c.b16 %v662, %v653
      %v924 = vpack.c.b16 %v663, %v654
      %v925 = vpack.c.b16 %v664, %v655
      %v926 = vpack.c.b16 %v665, %v656
      %v927 = vpack.c.b16 %v666, %v657
      %v928 = vpack.c.b16 %v667, %v658
      %v929 = vpack.c.b16 %v668, %v659
      %v930 = vpack.c.b16 %v678, %v669
      %v931 = vpack.c.b16 %v679, %v670
      %v932 = vpack.c.b16 %v680, %v671
      %v933 = vpack.c.b16 %v681, %v672
      %v934 = vpack.c.b16 %v682, %v673
      %v935 = vpack.c.b16 %v683, %v674
      %v936 = vpack.c.b16 %v684, %v675
      %v937 = vpack.c.b16 %v685, %v676
      %v938 = vpack.c.b16 %v686, %v677
      %v939 = vpack.c.b16 %v696, %v687
      %v940 = vpack.c.b16 %v697, %v688
      %v941 = vpack.c.b16 %v698, %v689
      %v942 = vpack.c.b16 %v699, %v690
      %v943 = vpack.c.b16 %v700, %v691
      %v944 = vpack.c.b16 %v701, %v692
      %v945 = vpack.c.b16 %v702, %v693
      %v946 = vpack.c.b16 %v703, %v694
      %v947 = vpack.c.b16 %v704, %v695
      %v948 = vpack.c.b16 %v714, %v705
      %v949 = vpack.c.b16 %v715, %v706
      %v950 = vpack.c.b16 %v716, %v707
      %v951 = vpack.c.b16 %v717, %v708
      %v952 = vpack.c.b16 %v718, %v709
      %v953 = vpack.c.b16 %v719, %v710
      %v954 = vpack.c.b16 %v720, %v711
      %v955 = vpack.c.b16 %v721, %v712
      %v956 = vpack.c.b16 %v722, %v713
      %v957 = vpack.c.b16 %v732, %v723
      %v958 = vpack.c.b16 %v733, %v724
      %v959 = vpack.c.b16 %v734, %v725
      %v960 = vpack.c.b16 %v735, %v726
      %v961 = vpack.c.b16 %v736, %v727
      %v962 = vpack.c.b16 %v737, %v728
      %v963 = vpack.c.b16 %v738, %v729
      %v964 = vpack.c.b16 %v739, %v730
      %v965 = vpack.c.b16 %v740, %v731
      %v966 = vpack.c.b16 %v750, %v741
      %v967 = vpack.c.b16 %v751, %v742
      %v968 = vpack.c.b16 %v752, %v743
      %v969 = vpack.c.b16 %v753, %v744
      %v970 = vpack.c.b16 %v754, %v745
      %v971 = vpack.c.b16 %v755, %v746
      %v972 = vpack.c.b16 %v756, %v747
      %v973 = vpack.c.b16 %v757, %v748
      %v974 = vpack.c.b16 %v758, %v749
      %v975 = vpack.c.b16 %v768, %v759
      %v976 = vpack.c.b16 %v769, %v760
      %v977 = vpack.c.b16 %v770, %v761
      %v978 = vpack.c.b16 %v771, %v762
      %v979 = vpack.c.b16 %v772, %v763
      %v980 = vpack.c.b16 %v773, %v764
      %v981 = vpack.c.b16 %v774, %v765
      %v982 = vpack.c.b16 %v775, %v766
      %v983 = vpack.c.b16 %v776, %v767
      %v984 = vpack.c.b16 %v786, %v777
      %v985 = vpack.c.b16 %v787, %v778
      %v986 = vpack.c.b16 %v788, %v779
      %v987 = vpack.c.b16 %v789, %v780
      %v988 = vpack.c.b16 %v790, %v781
      %v989 = vpack.c.b16 %v791, %v782
      %v990 = vpack.c.b16 %v792, %v783
      %v991 = vpack.c.b16 %v793, %v784
      %v992 = vpack.c.b16 %v794, %v785
      %v993 = vpack.c.b16 %v804, %v795
      %v994 = vpack.c.b16 %v805, %v796
      %v995 = vpack.c.b16 %v806, %v797
      %v996 = vpack.c.b16 %v807, %v798
      %v997 = vpack.c.b16 %v808, %v799
      %v998 = vpack.c.b16 %v809, %v800
      %v999 = vpack.c.b16 %v810, %v801
      %v1000 = vpack.c.b16 %v811, %v802
      %v1001 = vpack.c.b16 %v812, %v803
      %v1002 = vpack.c.b16 %v822, %v813
      %v1003 = vpack.c.b16 %v823, %v814
      %v1004 = vpack.c.b16 %v824, %v815
      %v1005 = vpack.c.b16 %v825, %v816
      %v1006 = vpack.c.b16 %v826, %v817
      %v1007 = vpack.c.b16 %v827, %v818
      %v1008 = vpack.c.b16 %v828, %v819
      %v1009 = vpack.c.b16 %v829, %v820
      %v1010 = vpack.c.b16 %v830, %v821
      %v1011 = vpack.c.b16 %v840, %v831
      %v1012 = vpack.c.b16 %v841, %v832
      %v1013 = vpack.c.b16 %v842, %v833
      %v1014 = vpack.c.b16 %v843, %v834
      %v1015 = vpack.c.b16 %v844, %v835
      %v1016 = vpack.c.b16 %v845, %v836
      %v1017 = vpack.c.b16 %v846, %v837
      %v1018 = vpack.c.b16 %v847, %v838
      %v1019 = vpack.c.b16 %v848, %v839
      %v1020 = vpack.c.b16 %v858, %v849
      %v1021 = vpack.c.b16 %v859, %v850
      %v1022 = vpack.c.b16 %v860, %v851
      %v1023 = vpack.c.b16 %v861, %v852
      %v1024 = vpack.c.b16 %v862, %v853
      %v1025 = vpack.c.b16 %v863, %v854
      %v1026 = vpack.c.b16 %v864, %v855
      %v1027 = vpack.c.b16 %v865, %v856
      %v1028 = vpack.c.b16 %v866, %v857
      %v1029 = vpack.c.b16 %v876, %v867
      %v1030 = vpack.c.b16 %v877, %v868
      %v1031 = vpack.c.b16 %v878, %v869
      %v1032 = vpack.c.b16 %v879, %v870
      %v1033 = vpack.c.b16 %v880, %v871
      %v1034 = vpack.c.b16 %v881, %v872
      %v1035 = vpack.c.b16 %v882, %v873
      %v1036 = vpack.c.b16 %v883, %v874
      %v1037 = vpack.c.b16 %v884, %v875
      %v1038 = vpack.c.b16 %v894, %v885
      %v1039 = vpack.c.b16 %v895, %v886
      %v1040 = vpack.c.b16 %v896, %v887
      %v1041 = vpack.c.b16 %v897, %v888
      %v1042 = vpack.c.b16 %v898, %v889
      %v1043 = vpack.c.b16 %v899, %v890
      %v1044 = vpack.c.b16 %v900, %v891
      %v1045 = vpack.c.b16 %v901, %v892
      %v1046 = vpack.c.b16 %v902, %v893
      %v1335 = vunpack.c.l.b16 %v311
      %v1336 = vunpack.c.l.b16 %v312
      %v1337 = vunpack.c.l.b16 %v313
      %v1338 = vunpack.c.l.b16 %v314
      %v1339 = vunpack.c.l.b16 %v315
      %v1340 = vunpack.c.l.b16 %v316
      %v1341 = vunpack.c.l.b16 %v317
      %v1342 = vunpack.c.l.b16 %v318
      %v1343 = vunpack.c.l.b16 %v319
      %v1344 = vunpack.c.l.b16 %v320
      %v1345 = vunpack.c.l.b16 %v321
      %v1346 = vunpack.c.l.b16 %v322
      %v1347 = vunpack.c.l.b16 %v323
      %v1348 = vunpack.c.l.b16 %v324
      %v1349 = vunpack.c.l.b16 %v325
      %v1350 = vunpack.c.l.b16 %v326
      %v1351 = vunpack.c.l.b16 %v327
      %v1352 = vunpack.c.l.b16 %v328
      %v1353 = vunpack.c.l.b16 %v329
      %v1354 = vunpack.c.l.b16 %v330
      %v1355 = vunpack.c.l.b16 %v331
      %v1356 = vunpack.c.l.b16 %v332
      %v1357 = vunpack.c.l.b16 %v333
      %v1358 = vunpack.c.l.b16 %v334
      %v1359 = vunpack.c.l.b16 %v335
      %v1360 = vunpack.c.l.b16 %v336
      %v1361 = vunpack.c.l.b16 %v337
      %v1362 = vunpack.c.l.b16 %v338
      %v1363 = vunpack.c.l.b16 %v339
      %v1364 = vunpack.c.l.b16 %v340
      %v1365 = vunpack.c.l.b16 %v341
      %v1366 = vunpack.c.l.b16 %v342
      %v1367 = vunpack.c.l.b16 %v343
      %v1368 = vunpack.c.l.b16 %v344
      %v1369 = vunpack.c.l.b16 %v345
      %v1370 = vunpack.c.l.b16 %v346
      %v1371 = vunpack.c.l.b16 %v347
      %v1372 = vunpack.c.l.b16 %v348
      %v1373 = vunpack.c.l.b16 %v349
      %v1374 = vunpack.c.l.b16 %v350
      %v1375 = vunpack.c.l.b16 %v351
      %v1376 = vunpack.c.l.b16 %v352
      %v1377 = vunpack.c.l.b16 %v353
      %v1378 = vunpack.c.l.b16 %v354
      %v1379 = vunpack.c.l.b16 %v355
      %v1380 = vunpack.c.l.b16 %v356
      %v1381 = vunpack.c.l.b16 %v357
      %v1382 = vunpack.c.l.b16 %v358
      %v1383 = vunpack.c.l.b16 %v359
      %v1384 = vunpack.c.l.b16 %v360
      %v1385 = vunpack.c.l.b16 %v361
      %v1386 = vunpack.c.l.b16 %v362
      %v1387 = vunpack.c.l.b16 %v363
      %v1388 = vunpack.c.l.b16 %v364
      %v1389 = vunpack.c.l.b16 %v365
      %v1390 = vunpack.c.l.b16 %v366
      %v1391 = vunpack.c.l.b16 %v367
      %v1392 = vunpack.c.l.b16 %v368
      %v1393 = vunpack.c.l.b16 %v369
      %v1394 = vunpack.c.l.b16 %v370
      %v1395 = vunpack.c.l.b16 %v371
      %v1396 = vunpack.c.l.b16 %v372
      %v1397 = vunpack.c.l.b16 %v373
      %v1398 = vunpack.c.l.b16 %v374
      %v1399 = vunpack.c.l.b16 %v375
      %v1400 = vunpack.c.l.b16 %v376
      %v1401 = vunpack.c.l.b16 %v377
      %v1402 = vunpack.c.l.b16 %v378
      %v1403 = vunpack.c.l.b16 %v379
      %v1404 = vunpack.c.l.b16 %v380
      %v1405 = vunpack.c.l.b16 %v381
      %v1406 = vunpack.c.l.b16 %v382
      %v1407 = vunpack.c.l.b16 %v383
      %v1408 = vunpack.c.l.b16 %v384
      %v1409 = vunpack.c.l.b16 %v385
      %v1410 = vunpack.c.l.b16 %v386
      %v1411 = vunpack.c.l.b16 %v387
      %v1412 = vunpack.c.l.b16 %v388
      %v1413 = vunpack.c.l.b16 %v389
      %v1414 = vunpack.c.l.b16 %v390
      %v1415 = vunpack.c.l.b16 %v391
      %v1416 = vunpack.c.l.b16 %v392
      %v1417 = vunpack.c.l.b16 %v393
      %v1418 = vunpack.c.l.b16 %v394
      %v1419 = vunpack.c.l.b16 %v395
      %v1420 = vunpack.c.l.b16 %v396
      %v1421 = vunpack.c.l.b16 %v397
      %v1422 = vunpack.c.l.b16 %v398
      %v1423 = vunpack.c.l.b16 %v399
      %v1424 = vunpack.c.l.b16 %v400
      %v1425 = vunpack.c.l.b16 %v401
      %v1426 = vunpack.c.l.b16 %v402
      %v1427 = vunpack.c.l.b16 %v403
      %v1428 = vunpack.c.l.b16 %v404
      %v1429 = vunpack.c.l.b16 %v405
      %v1430 = vunpack.c.l.b16 %v406
      %v1431 = vunpack.c.l.b16 %v407
      %v1432 = vunpack.c.l.b16 %v408
      %v1433 = vunpack.c.l.b16 %v409
      %v1434 = vunpack.c.l.b16 %v410
      %v1435 = vunpack.c.l.b16 %v411
      %v1436 = vunpack.c.l.b16 %v412
      %v1437 = vunpack.c.l.b16 %v413
      %v1438 = vunpack.c.l.b16 %v414
      %v1439 = vunpack.c.l.b16 %v415
      %v1440 = vunpack.c.l.b16 %v416
      %v1441 = vunpack.c.l.b16 %v417
      %v1442 = vunpack.c.l.b16 %v418
      %v1443 = vunpack.c.l.b16 %v419
      %v1444 = vunpack.c.l.b16 %v420
      %v1445 = vunpack.c.l.b16 %v421
      %v1446 = vunpack.c.l.b16 %v422
      %v1447 = vunpack.c.l.b16 %v423
      %v1448 = vunpack.c.l.b16 %v424
      %v1449 = vunpack.c.l.b16 %v425
      %v1450 = vunpack.c.l.b16 %v426
      %v1451 = vunpack.c.l.b16 %v427
      %v1452 = vunpack.c.l.b16 %v428
      %v1453 = vunpack.c.l.b16 %v429
      %v1454 = vunpack.c.l.b16 %v430
      %v1455 = vunpack.c.l.b16 %v431
      %v1456 = vunpack.c.l.b16 %v432
      %v1457 = vunpack.c.l.b16 %v433
      %v1458 = vunpack.c.l.b16 %v434
      %v1459 = vunpack.c.l.b16 %v435
      %v1460 = vunpack.c.l.b16 %v436
      %v1461 = vunpack.c.l.b16 %v437
      %v1462 = vunpack.c.l.b16 %v438
      %v1463 = vunpack.c.l.b16 %v439
      %v1464 = vunpack.c.l.b16 %v440
      %v1465 = vunpack.c.l.b16 %v441
      %v1466 = vunpack.c.l.b16 %v442
      %v1467 = vunpack.c.l.b16 %v443
      %v1468 = vunpack.c.l.b16 %v444
      %v1469 = vunpack.c.l.b16 %v445
      %v1470 = vunpack.c.l.b16 %v446
      %v1471 = vunpack.c.l.b16 %v447
      %v1472 = vunpack.c.l.b16 %v448
      %v1473 = vunpack.c.l.b16 %v449
      %v1474 = vunpack.c.l.b16 %v450
      %v1475 = vunpack.c.l.b16 %v451
      %v1476 = vunpack.c.l.b16 %v452
      %v1477 = vunpack.c.l.b16 %v453
      %v1478 = vunpack.c.l.b16 %v454
      %v1479 = vpack.c.b16 %v1336, %v1335
      %v1480 = vpack.c.b16 %v1338, %v1337
      %v1481 = vpack.c.b16 %v1340, %v1339
      %v1482 = vpack.c.b16 %v1342, %v1341
      %v1483 = vpack.c.b16 %v1344, %v1343
      %v1484 = vpack.c.b16 %v1346, %v1345
      %v1485 = vpack.c.b16 %v1348, %v1347
      %v1486 = vpack.c.b16 %v1350, %v1349
      %v1487 = vpack.c.b16 %v1352, %v1351
      %v1488 = vpack.c.b16 %v1354, %v1353
      %v1489 = vpack.c.b16 %v1356, %v1355
      %v1490 = vpack.c.b16 %v1358, %v1357
      %v1491 = vpack.c.b16 %v1360, %v1359
      %v1492 = vpack.c.b16 %v1362, %v1361
      %v1493 = vpack.c.b16 %v1364, %v1363
      %v1494 = vpack.c.b16 %v1366, %v1365
      %v1495 = vpack.c.b16 %v1368, %v1367
      %v1496 = vpack.c.b16 %v1370, %v1369
      %v1497 = vpack.c.b16 %v1372, %v1371
      %v1498 = vpack.c.b16 %v1374, %v1373
      %v1499 = vpack.c.b16 %v1376, %v1375
      %v1500 = vpack.c.b16 %v1378, %v1377
      %v1501 = vpack.c.b16 %v1380, %v1379
      %v1502 = vpack.c.b16 %v1382, %v1381
      %v1503 = vpack.c.b16 %v1384, %v1383
      %v1504 = vpack.c.b16 %v1386, %v1385
      %v1505 = vpack.c.b16 %v1388, %v1387
      %v1506 = vpack.c.b16 %v1390, %v1389
      %v1507 = vpack.c.b16 %v1392, %v1391
      %v1508 = vpack.c.b16 %v1394, %v1393
      %v1509 = vpack.c.b16 %v1396, %v1395
      %v1510 = vpack.c.b16 %v1398, %v1397
      %v1511 = vpack.c.b16 %v1400, %v1399
      %v1512 = vpack.c.b16 %v1402, %v1401
      %v1513 = vpack.c.b16 %v1404, %v1403
      %v1514 = vpack.c.b16 %v1406, %v1405
      %v1515 = vpack.c.b16 %v1408, %v1407
      %v1516 = vpack.c.b16 %v1410, %v1409
      %v1517 = vpack.c.b16 %v1412, %v1411
      %v1518 = vpack.c.b16 %v1414, %v1413
      %v1519 = vpack.c.b16 %v1416, %v1415
      %v1520 = vpack.c.b16 %v1418, %v1417
      %v1521 = vpack.c.b16 %v1420, %v1419
      %v1522 = vpack.c.b16 %v1422, %v1421
      %v1523 = vpack.c.b16 %v1424, %v1423
      %v1524 = vpack.c.b16 %v1426, %v1425
      %v1525 = vpack.c.b16 %v1428, %v1427
      %v1526 = vpack.c.b16 %v1430, %v1429
      %v1527 = vpack.c.b16 %v1432, %v1431
      %v1528 = vpack.c.b16 %v1434, %v1433
      %v1529 = vpack.c.b16 %v1436, %v1435
      %v1530 = vpack.c.b16 %v1438, %v1437
      %v1531 = vpack.c.b16 %v1440, %v1439
      %v1532 = vpack.c.b16 %v1442, %v1441
      %v1533 = vpack.c.b16 %v1444, %v1443
      %v1534 = vpack.c.b16 %v1446, %v1445
      %v1535 = vpack.c.b16 %v1448, %v1447
      %v1536 = vpack.c.b16 %v1450, %v1449
      %v1537 = vpack.c.b16 %v1452, %v1451
      %v1538 = vpack.c.b16 %v1454, %v1453
      %v1539 = vpack.c.b16 %v1456, %v1455
      %v1540 = vpack.c.b16 %v1458, %v1457
      %v1541 = vpack.c.b16 %v1460, %v1459
      %v1542 = vpack.c.b16 %v1462, %v1461
      %v1543 = vpack.c.b16 %v1464, %v1463
      %v1544 = vpack.c.b16 %v1466, %v1465
      %v1545 = vpack.c.b16 %v1468, %v1467
      %v1546 = vpack.c.b16 %v1470, %v1469
      %v1547 = vpack.c.b16 %v1472, %v1471
      %v1548 = vpack.c.b16 %v1474, %v1473
      %v1549 = vpack.c.b16 %v1476, %v1475
      %v1550 = vpack.c.b16 %v1478, %v1477
      %1623 = vmatprep.subr.bf16.mxu0 0
      %1624 = vmatpush1.bf16.msra.mxu0 %v1479
      %1625 = vmatprep.subr.bf16.mxu0 0
      %1626 = vmatpush1.bf16.msra.mxu0 %v1480
      %1627 = vmatprep.subr.bf16.mxu0 0
      %1628 = vmatpush1.bf16.msra.mxu0 %v1481
      %1629 = vmatprep.subr.bf16.mxu0 0
      %1630 = vmatpush1.bf16.msra.mxu0 %v1482
      %1631 = vmatprep.subr.bf16.mxu0 0
      %1632 = vmatpush1.bf16.msra.mxu0 %v1483
      %1633 = vmatprep.subr.bf16.mxu0 0
      %1634 = vmatpush1.bf16.msra.mxu0 %v1484
      %1635 = vmatprep.subr.bf16.mxu0 0
      %1636 = vmatpush1.bf16.msra.mxu0 %v1485
      %1637 = vmatprep.subr.bf16.mxu0 0
      %1638 = vmatpush1.bf16.msra.mxu0 %v1486
      %1639 = vmatprep.subr.bf16.mxu0 0
      %1640 = vmatpush1.bf16.msra.mxu0 %v1487
      %1641 = vmatprep.subr.bf16.mxu0 0
      %1642 = vmatpush1.bf16.msra.mxu0 %v1488
      %1643 = vmatprep.subr.bf16.mxu0 0
      %1644 = vmatpush1.bf16.msra.mxu0 %v1489
      %1645 = vmatprep.subr.bf16.mxu0 0
      %1646 = vmatpush1.bf16.msra.mxu0 %v1490
      %1647 = vmatprep.subr.bf16.mxu0 0
      %1648 = vmatpush1.bf16.msra.mxu0 %v1491
      %1649 = vmatprep.subr.bf16.mxu0 0
      %1650 = vmatpush1.bf16.msra.mxu0 %v1492
      %1651 = vmatprep.subr.bf16.mxu0 0
      %1652 = vmatpush1.bf16.msra.mxu0 %v1493
      %1653 = vmatprep.subr.bf16.mxu0 0
      %1654 = vmatpush1.bf16.msra.mxu0 %v1494
      %1655 = vmatprep.mubr.bf16.mxu0 %v904
      %1656 = vmatmul.mubr.bf16.gmra.mrb[0].mxu0 %v903
      %v1657 = vpop.f32.mrb[0].mxu0
      %v1658 = vadd.f32 0.0, %v1657
      %v1659 = vpop.f32.mrb[0].mxu0
      %v1660 = vpop.f32.mrb[0].mxu0
      %v1661 = vadd.f32 0.0, %v1660
      %v1662 = vpop.f32.mrb[0].mxu0
      %1663 = vmatprep.mubr.bf16.mxu0 %v913
      %1664 = vmatmul.mubr.bf16.gmra.mrb[0].mxu0 %v912
      %v1665 = vpop.f32.mrb[0].mxu0
      %v1666 = vadd.f32 0.0, %v1665
      %v1667 = vpop.f32.mrb[0].mxu0
      %v1668 = vpop.f32.mrb[0].mxu0
      %v1669 = vadd.f32 0.0, %v1668
      %v1670 = vpop.f32.mrb[0].mxu0
      %1671 = vmatprep.mubr.bf16.mxu0 %v922
      %1672 = vmatmul.mubr.bf16.gmra.mrb[0].mxu0 %v921
      %v1673 = vpop.f32.mrb[0].mxu0
      %v1674 = vadd.f32 0.0, %v1673
      %v1675 = vpop.f32.mrb[0].mxu0
      %v1676 = vpop.f32.mrb[0].mxu0
      %v1677 = vadd.f32 0.0, %v1676
      %v1678 = vpop.f32.mrb[0].mxu0
      %1679 = vmatprep.mubr.bf16.mxu0 %v931
      %1680 = vmatmul.mubr.bf16.gmra.mrb[0].mxu0 %v930
      %v1681 = vpop.f32.mrb[0].mxu0
      %v1682 = vadd.f32 0.0, %v1681
      %v1683 = vpop.f32.mrb[0].mxu0
      %v1684 = vpop.f32.mrb[0].mxu0
      %v1685 = vadd.f32 0.0, %v1684
      %v1686 = vpop.f32.mrb[0].mxu0
      %1687 = vmatprep.mubr.bf16.mxu0 %v940
      %1688 = vmatmul.mubr.bf16.gmra.mrb[0].mxu0 %v939
      %v1689 = vpop.f32.mrb[0].mxu0
      %v1690 = vadd.f32 0.0, %v1689
      %v1691 = vpop.f32.mrb[0].mxu0
      %v1692 = vpop.f32.mrb[0].mxu0
      %v1693 = vadd.f32 0.0, %v1692
      %v1694 = vpop.f32.mrb[0].mxu0
      %1695 = vmatprep.mubr.bf16.mxu0 %v949
      %1696 = vmatmul.mubr.bf16.gmra.mrb[0].mxu0 %v948
      %v1697 = vpop.f32.mrb[0].mxu0
      %v1698 = vadd.f32 0.0, %v1697
      %v1699 = vpop.f32.mrb[0].mxu0
      %v1700 = vpop.f32.mrb[0].mxu0
      %v1701 = vadd.f32 0.0, %v1700
      %v1702 = vpop.f32.mrb[0].mxu0
      %1703 = vmatprep.mubr.bf16.mxu0 %v958
      %1704 = vmatmul.mubr.bf16.gmra.mrb[0].mxu0 %v957
      %v1705 = vpop.f32.mrb[0].mxu0
      %v1706 = vadd.f32 0.0, %v1705
      %v1707 = vpop.f32.mrb[0].mxu0
      %v1708 = vpop.f32.mrb[0].mxu0
      %v1709 = vadd.f32 0.0, %v1708
      %v1710 = vpop.f32.mrb[0].mxu0
      %1711 = vmatprep.mubr.bf16.mxu0 %v967
      %1712 = vmatmul.mubr.bf16.gmra.mrb[0].mxu0 %v966
      %v1713 = vpop.f32.mrb[0].mxu0
      %v1714 = vadd.f32 0.0, %v1713
      %v1715 = vpop.f32.mrb[0].mxu0
      %v1716 = vpop.f32.mrb[0].mxu0
      %v1717 = vadd.f32 0.0, %v1716
      %v1718 = vpop.f32.mrb[0].mxu0
      %1719 = vmatprep.mubr.bf16.mxu0 %v976
      %1720 = vmatmul.mubr.bf16.gmra.mrb[0].mxu0 %v975
      %v1721 = vpop.f32.mrb[0].mxu0
      %v1722 = vadd.f32 0.0, %v1721
      %v1723 = vpop.f32.mrb[0].mxu0
      %v1724 = vpop.f32.mrb[0].mxu0
      %v1725 = vadd.f32 0.0, %v1724
      %v1726 = vpop.f32.mrb[0].mxu0
      %1727 = vmatprep.mubr.bf16.mxu0 %v985
      %1728 = vmatmul.mubr.bf16.gmra.mrb[0].mxu0 %v984
      %v1729 = vpop.f32.mrb[0].mxu0
      %v1730 = vadd.f32 0.0, %v1729
      %v1731 = vpop.f32.mrb[0].mxu0
      %v1732 = vpop.f32.mrb[0].mxu0
      %v1733 = vadd.f32 0.0, %v1732
      %v1734 = vpop.f32.mrb[0].mxu0
      %1735 = vmatprep.mubr.bf16.mxu0 %v994
      %1736 = vmatmul.mubr.bf16.gmra.mrb[0].mxu0 %v993
      %v1737 = vpop.f32.mrb[0].mxu0
      %v1738 = vadd.f32 0.0, %v1737
      %v1739 = vpop.f32.mrb[0].mxu0
      %v1740 = vpop.f32.mrb[0].mxu0
      %v1741 = vadd.f32 0.0, %v1740
      %v1742 = vpop.f32.mrb[0].mxu0
      %1743 = vmatprep.mubr.bf16.mxu0 %v1003
      %1744 = vmatmul.mubr.bf16.gmra.mrb[0].mxu0 %v1002
      %v1745 = vpop.f32.mrb[0].mxu0
      %v1746 = vadd.f32 0.0, %v1745
      %v1747 = vpop.f32.mrb[0].mxu0
      %v1748 = vpop.f32.mrb[0].mxu0
      %v1749 = vadd.f32 0.0, %v1748
      %v1750 = vpop.f32.mrb[0].mxu0
      %1751 = vmatprep.mubr.bf16.mxu0 %v1012
      %1752 = vmatmul.mubr.bf16.gmra.mrb[0].mxu0 %v1011
      %v1753 = vpop.f32.mrb[0].mxu0
      %v1754 = vadd.f32 0.0, %v1753
      %v1755 = vpop.f32.mrb[0].mxu0
      %v1756 = vpop.f32.mrb[0].mxu0
      %v1757 = vadd.f32 0.0, %v1756
      %v1758 = vpop.f32.mrb[0].mxu0
      %1759 = vmatprep.mubr.bf16.mxu0 %v1021
      %1760 = vmatmul.mubr.bf16.gmra.mrb[0].mxu0 %v1020
      %v1761 = vpop.f32.mrb[0].mxu0
      %v1762 = vadd.f32 0.0, %v1761
      %v1763 = vpop.f32.mrb[0].mxu0
      %v1764 = vpop.f32.mrb[0].mxu0
      %v1765 = vadd.f32 0.0, %v1764
      %v1766 = vpop.f32.mrb[0].mxu0
      %1767 = vmatprep.mubr.bf16.mxu0 %v1030
      %1768 = vmatmul.mubr.bf16.gmra.mrb[0].mxu0 %v1029
      %v1769 = vpop.f32.mrb[0].mxu0
      %v1770 = vadd.f32 0.0, %v1769
      %v1771 = vpop.f32.mrb[0].mxu0
      %v1772 = vpop.f32.mrb[0].mxu0
      %v1773 = vadd.f32 0.0, %v1772
      %v1774 = vpop.f32.mrb[0].mxu0
      %1775 = vmatprep.mubr.bf16.mxu0 %v1039
      %1776 = vmatmul.mubr.bf16.gmra.mrb[0].mxu0 %v1038
      %v1777 = vpop.f32.mrb[0].mxu0
      %v1778 = vadd.f32 0.0, %v1777
      %v1779 = vpop.f32.mrb[0].mxu0
      %v1780 = vpop.f32.mrb[0].mxu0
      %v1781 = vadd.f32 0.0, %v1780
      %v1782 = vpop.f32.mrb[0].mxu0
      %1783 = vdwg.mxu0
      %1784 = vmatprep.subr.bf16.mxu0 0
      %1785 = vmatpush1.bf16.msra.mxu0 %v1495
      %1786 = vmatprep.subr.bf16.mxu0 0
      %1787 = vmatpush1.bf16.msra.mxu0 %v1496
      %1788 = vmatprep.subr.bf16.mxu0 0
      %1789 = vmatpush1.bf16.msra.mxu0 %v1497
      %1790 = vmatprep.subr.bf16.mxu0 0
      %1791 = vmatpush1.bf16.msra.mxu0 %v1498
      %1792 = vmatprep.subr.bf16.mxu0 0
      %1793 = vmatpush1.bf16.msra.mxu0 %v1499
      %1794 = vmatprep.subr.bf16.mxu0 0
      %1795 = vmatpush1.bf16.msra.mxu0 %v1500
      %1796 = vmatprep.subr.bf16.mxu0 0
      %1797 = vmatpush1.bf16.msra.mxu0 %v1501
      %1798 = vmatprep.subr.bf16.mxu0 0
      %1799 = vmatpush1.bf16.msra.mxu0 %v1502
      %1800 = vmatprep.subr.bf16.mxu0 0
      %1801 = vmatpush1.bf16.msra.mxu0 %v1503
      %1802 = vmatprep.subr.bf16.mxu0 0
      %1803 = vmatpush1.bf16.msra.mxu0 %v1504
      %1804 = vmatprep.subr.bf16.mxu0 0
      %1805 = vmatpush1.bf16.msra.mxu0 %v1505
      %1806 = vmatprep.subr.bf16.mxu0 0
      %1807 = vmatpush1.bf16.msra.mxu0 %v1506
      %1808 = vmatprep.subr.bf16.mxu0 0
      %1809 = vmatpush1.bf16.msra.mxu0 %v1507
      %1810 = vmatprep.subr.bf16.mxu0 0
      %1811 = vmatpush1.bf16.msra.mxu0 %v1508
      %1812 = vmatprep.subr.bf16.mxu0 0
      %1813 = vmatpush1.bf16.msra.mxu0 %v1509
      %1814 = vmatprep.subr.bf16.mxu0 0
      %1815 = vmatpush1.bf16.msra.mxu0 %v1510
      %1816 = vmatprep.mubr.bf16.mxu0 %v906
      %1817 = vmatmul.mubr.bf16.gmra.mrb[0].mxu0 %v905
      %v1818 = vpop.f32.mrb[0].mxu0
      %v1819 = vadd.f32 %v1658, %v1818
      %v1820 = vpop.f32.mrb[0].mxu0
      %v1821 = vpop.f32.mrb[0].mxu0
      %v1822 = vadd.f32 %v1661, %v1821
      %v1823 = vpop.f32.mrb[0].mxu0
      %1824 = vmatprep.mubr.bf16.mxu0 %v915
      %1825 = vmatmul.mubr.bf16.gmra.mrb[0].mxu0 %v914
      %v1826 = vpop.f32.mrb[0].mxu0
      %v1827 = vadd.f32 %v1666, %v1826
      %v1828 = vpop.f32.mrb[0].mxu0
      %v1829 = vpop.f32.mrb[0].mxu0
      %v1830 = vadd.f32 %v1669, %v1829
      %v1831 = vpop.f32.mrb[0].mxu0
      %1832 = vmatprep.mubr.bf16.mxu0 %v924
      %1833 = vmatmul.mubr.bf16.gmra.mrb[0].mxu0 %v923
      %v1834 = vpop.f32.mrb[0].mxu0
      %v1835 = vadd.f32 %v1674, %v1834
      %v1836 = vpop.f32.mrb[0].mxu0
      %v1837 = vpop.f32.mrb[0].mxu0
      %v1838 = vadd.f32 %v1677, %v1837
      %v1839 = vpop.f32.mrb[0].mxu0
      %1840 = vmatprep.mubr.bf16.mxu0 %v933
      %1841 = vmatmul.mubr.bf16.gmra.mrb[0].mxu0 %v932
      %v1842 = vpop.f32.mrb[0].mxu0
      %v1843 = vadd.f32 %v1682, %v1842
      %v1844 = vpop.f32.mrb[0].mxu0
      %v1845 = vpop.f32.mrb[0].mxu0
      %v1846 = vadd.f32 %v1685, %v1845
      %v1847 = vpop.f32.mrb[0].mxu0
      %1848 = vmatprep.mubr.bf16.mxu0 %v942
      %1849 = vmatmul.mubr.bf16.gmra.mrb[0].mxu0 %v941
      %v1850 = vpop.f32.mrb[0].mxu0
      %v1851 = vadd.f32 %v1690, %v1850
      %v1852 = vpop.f32.mrb[0].mxu0
      %v1853 = vpop.f32.mrb[0].mxu0
      %v1854 = vadd.f32 %v1693, %v1853
      %v1855 = vpop.f32.mrb[0].mxu0
      %1856 = vmatprep.mubr.bf16.mxu0 %v951
      %1857 = vmatmul.mubr.bf16.gmra.mrb[0].mxu0 %v950
      %v1858 = vpop.f32.mrb[0].mxu0
      %v1859 = vadd.f32 %v1698, %v1858
      %v1860 = vpop.f32.mrb[0].mxu0
      %v1861 = vpop.f32.mrb[0].mxu0
      %v1862 = vadd.f32 %v1701, %v1861
      %v1863 = vpop.f32.mrb[0].mxu0
      %1864 = vmatprep.mubr.bf16.mxu0 %v960
      %1865 = vmatmul.mubr.bf16.gmra.mrb[0].mxu0 %v959
      %v1866 = vpop.f32.mrb[0].mxu0
      %v1867 = vadd.f32 %v1706, %v1866
      %v1868 = vpop.f32.mrb[0].mxu0
      %v1869 = vpop.f32.mrb[0].mxu0
      %v1870 = vadd.f32 %v1709, %v1869
      %v1871 = vpop.f32.mrb[0].mxu0
      %1872 = vmatprep.mubr.bf16.mxu0 %v969
      %1873 = vmatmul.mubr.bf16.gmra.mrb[0].mxu0 %v968
      %v1874 = vpop.f32.mrb[0].mxu0
      %v1875 = vadd.f32 %v1714, %v1874
      %v1876 = vpop.f32.mrb[0].mxu0
      %v1877 = vpop.f32.mrb[0].mxu0
      %v1878 = vadd.f32 %v1717, %v1877
      %v1879 = vpop.f32.mrb[0].mxu0
      %1880 = vmatprep.mubr.bf16.mxu0 %v978
      %1881 = vmatmul.mubr.bf16.gmra.mrb[0].mxu0 %v977
      %v1882 = vpop.f32.mrb[0].mxu0
      %v1883 = vadd.f32 %v1722, %v1882
      %v1884 = vpop.f32.mrb[0].mxu0
      %v1885 = vpop.f32.mrb[0].mxu0
      %v1886 = vadd.f32 %v1725, %v1885
      %v1887 = vpop.f32.mrb[0].mxu0
      %1888 = vmatprep.mubr.bf16.mxu0 %v987
      %1889 = vmatmul.mubr.bf16.gmra.mrb[0].mxu0 %v986
      %v1890 = vpop.f32.mrb[0].mxu0
      %v1891 = vadd.f32 %v1730, %v1890
      %v1892 = vpop.f32.mrb[0].mxu0
      %v1893 = vpop.f32.mrb[0].mxu0
      %v1894 = vadd.f32 %v1733, %v1893
      %v1895 = vpop.f32.mrb[0].mxu0
      %1896 = vmatprep.mubr.bf16.mxu0 %v996
      %1897 = vmatmul.mubr.bf16.gmra.mrb[0].mxu0 %v995
      %v1898 = vpop.f32.mrb[0].mxu0
      %v1899 = vadd.f32 %v1738, %v1898
      %v1900 = vpop.f32.mrb[0].mxu0
      %v1901 = vpop.f32.mrb[0].mxu0
      %v1902 = vadd.f32 %v1741, %v1901
      %v1903 = vpop.f32.mrb[0].mxu0
      %1904 = vmatprep.mubr.bf16.mxu0 %v1005
      %1905 = vmatmul.mubr.bf16.gmra.mrb[0].mxu0 %v1004
      %v1906 = vpop.f32.mrb[0].mxu0
      %v1907 = vadd.f32 %v1746, %v1906
      %v1908 = vpop.f32.mrb[0].mxu0
      %v1909 = vpop.f32.mrb[0].mxu0
      %v1910 = vadd.f32 %v1749, %v1909
      %v1911 = vpop.f32.mrb[0].mxu0
      %1912 = vmatprep.mubr.bf16.mxu0 %v1014
      %1913 = vmatmul.mubr.bf16.gmra.mrb[0].mxu0 %v1013
      %v1914 = vpop.f32.mrb[0].mxu0
      %v1915 = vadd.f32 %v1754, %v1914
      %v1916 = vpop.f32.mrb[0].mxu0
      %v1917 = vpop.f32.mrb[0].mxu0
      %v1918 = vadd.f32 %v1757, %v1917
      %v1919 = vpop.f32.mrb[0].mxu0
      %1920 = vmatprep.mubr.bf16.mxu0 %v1023
      %1921 = vmatmul.mubr.bf16.gmra.mrb[0].mxu0 %v1022
      %v1922 = vpop.f32.mrb[0].mxu0
      %v1923 = vadd.f32 %v1762, %v1922
      %v1924 = vpop.f32.mrb[0].mxu0
      %v1925 = vpop.f32.mrb[0].mxu0
      %v1926 = vadd.f32 %v1765, %v1925
      %v1927 = vpop.f32.mrb[0].mxu0
      %1928 = vmatprep.mubr.bf16.mxu0 %v1032
      %1929 = vmatmul.mubr.bf16.gmra.mrb[0].mxu0 %v1031
      %v1930 = vpop.f32.mrb[0].mxu0
      %v1931 = vadd.f32 %v1770, %v1930
      %v1932 = vpop.f32.mrb[0].mxu0
      %v1933 = vpop.f32.mrb[0].mxu0
      %v1934 = vadd.f32 %v1773, %v1933
      %v1935 = vpop.f32.mrb[0].mxu0
      %1936 = vmatprep.mubr.bf16.mxu0 %v1041
      %1937 = vmatmul.mubr.bf16.gmra.mrb[0].mxu0 %v1040
      %v1938 = vpop.f32.mrb[0].mxu0
      %v1939 = vadd.f32 %v1778, %v1938
      %v1940 = vpop.f32.mrb[0].mxu0
      %v1941 = vpop.f32.mrb[0].mxu0
      %v1942 = vadd.f32 %v1781, %v1941
      %v1943 = vpop.f32.mrb[0].mxu0
      %1944 = vdwg.mxu0
      %1945 = vmatprep.subr.bf16.mxu0 0
      %1946 = vmatpush1.bf16.msra.mxu0 %v1511
      %1947 = vmatprep.subr.bf16.mxu0 0
      %1948 = vmatpush1.bf16.msra.mxu0 %v1512
      %1949 = vmatprep.subr.bf16.mxu0 0
      %1950 = vmatpush1.bf16.msra.mxu0 %v1513
      %1951 = vmatprep.subr.bf16.mxu0 0
      %1952 = vmatpush1.bf16.msra.mxu0 %v1514
      %1953 = vmatprep.subr.bf16.mxu0 0
      %1954 = vmatpush1.bf16.msra.mxu0 %v1515
      %1955 = vmatprep.subr.bf16.mxu0 0
      %1956 = vmatpush1.bf16.msra.mxu0 %v1516
      %1957 = vmatprep.subr.bf16.mxu0 0
      %1958 = vmatpush1.bf16.msra.mxu0 %v1517
      %1959 = vmatprep.subr.bf16.mxu0 0
      %1960 = vmatpush1.bf16.msra.mxu0 %v1518
      %1961 = vmatprep.subr.bf16.mxu0 0
      %1962 = vmatpush1.bf16.msra.mxu0 %v1519
      %1963 = vmatprep.subr.bf16.mxu0 0
      %1964 = vmatpush1.bf16.msra.mxu0 %v1520
      %1965 = vmatprep.subr.bf16.mxu0 0
      %1966 = vmatpush1.bf16.msra.mxu0 %v1521
      %1967 = vmatprep.subr.bf16.mxu0 0
      %1968 = vmatpush1.bf16.msra.mxu0 %v1522
      %1969 = vmatprep.subr.bf16.mxu0 0
      %1970 = vmatpush1.bf16.msra.mxu0 %v1523
      %1971 = vmatprep.subr.bf16.mxu0 0
      %1972 = vmatpush1.bf16.msra.mxu0 %v1524
      %1973 = vmatprep.subr.bf16.mxu0 0
      %1974 = vmatpush1.bf16.msra.mxu0 %v1525
      %1975 = vmatprep.subr.bf16.mxu0 0
      %1976 = vmatpush1.bf16.msra.mxu0 %v1526
      %1977 = vmatprep.mubr.bf16.mxu0 %v908
      %1978 = vmatmul.mubr.bf16.gmra.mrb[0].mxu0 %v907
      %v1979 = vpop.f32.mrb[0].mxu0
      %v1980 = vadd.f32 %v1819, %v1979
      %v1981 = vpop.f32.mrb[0].mxu0
      %v1982 = vpop.f32.mrb[0].mxu0
      %v1983 = vadd.f32 %v1822, %v1982
      %v1984 = vpop.f32.mrb[0].mxu0
      %1985 = vmatprep.mubr.bf16.mxu0 %v917
      %1986 = vmatmul.mubr.bf16.gmra.mrb[0].mxu0 %v916
      %v1987 = vpop.f32.mrb[0].mxu0
      %v1988 = vadd.f32 %v1827, %v1987
      %v1989 = vpop.f32.mrb[0].mxu0
      %v1990 = vpop.f32.mrb[0].mxu0
      %v1991 = vadd.f32 %v1830, %v1990
      %v1992 = vpop.f32.mrb[0].mxu0
      %1993 = vmatprep.mubr.bf16.mxu0 %v926
      %1994 = vmatmul.mubr.bf16.gmra.mrb[0].mxu0 %v925
      %v1995 = vpop.f32.mrb[0].mxu0
      %v1996 = vadd.f32 %v1835, %v1995
      %v1997 = vpop.f32.mrb[0].mxu0
      %v1998 = vpop.f32.mrb[0].mxu0
      %v1999 = vadd.f32 %v1838, %v1998
      %v2000 = vpop.f32.mrb[0].mxu0
      %2001 = vmatprep.mubr.bf16.mxu0 %v935
      %2002 = vmatmul.mubr.bf16.gmra.mrb[0].mxu0 %v934
      %v2003 = vpop.f32.mrb[0].mxu0
      %v2004 = vadd.f32 %v1843, %v2003
      %v2005 = vpop.f32.mrb[0].mxu0
      %v2006 = vpop.f32.mrb[0].mxu0
      %v2007 = vadd.f32 %v1846, %v2006
      %v2008 = vpop.f32.mrb[0].mxu0
      %2009 = vmatprep.mubr.bf16.mxu0 %v944
      %2010 = vmatmul.mubr.bf16.gmra.mrb[0].mxu0 %v943
      %v2011 = vpop.f32.mrb[0].mxu0
      %v2012 = vadd.f32 %v1851, %v2011
      %v2013 = vpop.f32.mrb[0].mxu0
      %v2014 = vpop.f32.mrb[0].mxu0
      %v2015 = vadd.f32 %v1854, %v2014
      %v2016 = vpop.f32.mrb[0].mxu0
      %2017 = vmatprep.mubr.bf16.mxu0 %v953
      %2018 = vmatmul.mubr.bf16.gmra.mrb[0].mxu0 %v952
      %v2019 = vpop.f32.mrb[0].mxu0
      %v2020 = vadd.f32 %v1859, %v2019
      %v2021 = vpop.f32.mrb[0].mxu0
      %v2022 = vpop.f32.mrb[0].mxu0
      %v2023 = vadd.f32 %v1862, %v2022
      %v2024 = vpop.f32.mrb[0].mxu0
      %2025 = vmatprep.mubr.bf16.mxu0 %v962
      %2026 = vmatmul.mubr.bf16.gmra.mrb[0].mxu0 %v961
      %v2027 = vpop.f32.mrb[0].mxu0
      %v2028 = vadd.f32 %v1867, %v2027
      %v2029 = vpop.f32.mrb[0].mxu0
      %v2030 = vpop.f32.mrb[0].mxu0
      %v2031 = vadd.f32 %v1870, %v2030
      %v2032 = vpop.f32.mrb[0].mxu0
      %2033 = vmatprep.mubr.bf16.mxu0 %v971
      %2034 = vmatmul.mubr.bf16.gmra.mrb[0].mxu0 %v970
      %v2035 = vpop.f32.mrb[0].mxu0
      %v2036 = vadd.f32 %v1875, %v2035
      %v2037 = vpop.f32.mrb[0].mxu0
      %v2038 = vpop.f32.mrb[0].mxu0
      %v2039 = vadd.f32 %v1878, %v2038
      %v2040 = vpop.f32.mrb[0].mxu0
      %2041 = vmatprep.mubr.bf16.mxu0 %v980
      %2042 = vmatmul.mubr.bf16.gmra.mrb[0].mxu0 %v979
      %v2043 = vpop.f32.mrb[0].mxu0
      %v2044 = vadd.f32 %v1883, %v2043
      %v2045 = vpop.f32.mrb[0].mxu0
      %v2046 = vpop.f32.mrb[0].mxu0
      %v2047 = vadd.f32 %v1886, %v2046
      %v2048 = vpop.f32.mrb[0].mxu0
      %2049 = vmatprep.mubr.bf16.mxu0 %v989
      %2050 = vmatmul.mubr.bf16.gmra.mrb[0].mxu0 %v988
      %v2051 = vpop.f32.mrb[0].mxu0
      %v2052 = vadd.f32 %v1891, %v2051
      %v2053 = vpop.f32.mrb[0].mxu0
      %v2054 = vpop.f32.mrb[0].mxu0
      %v2055 = vadd.f32 %v1894, %v2054
      %v2056 = vpop.f32.mrb[0].mxu0
      %2057 = vmatprep.mubr.bf16.mxu0 %v998
      %2058 = vmatmul.mubr.bf16.gmra.mrb[0].mxu0 %v997
      %v2059 = vpop.f32.mrb[0].mxu0
      %v2060 = vadd.f32 %v1899, %v2059
      %v2061 = vpop.f32.mrb[0].mxu0
      %v2062 = vpop.f32.mrb[0].mxu0
      %v2063 = vadd.f32 %v1902, %v2062
      %v2064 = vpop.f32.mrb[0].mxu0
      %2065 = vmatprep.mubr.bf16.mxu0 %v1007
      %2066 = vmatmul.mubr.bf16.gmra.mrb[0].mxu0 %v1006
      %v2067 = vpop.f32.mrb[0].mxu0
      %v2068 = vadd.f32 %v1907, %v2067
      %v2069 = vpop.f32.mrb[0].mxu0
      %v2070 = vpop.f32.mrb[0].mxu0
      %v2071 = vadd.f32 %v1910, %v2070
      %v2072 = vpop.f32.mrb[0].mxu0
      %2073 = vmatprep.mubr.bf16.mxu0 %v1016
      %2074 = vmatmul.mubr.bf16.gmra.mrb[0].mxu0 %v1015
      %v2075 = vpop.f32.mrb[0].mxu0
      %v2076 = vadd.f32 %v1915, %v2075
      %v2077 = vpop.f32.mrb[0].mxu0
      %v2078 = vpop.f32.mrb[0].mxu0
      %v2079 = vadd.f32 %v1918, %v2078
      %v2080 = vpop.f32.mrb[0].mxu0
      %2081 = vmatprep.mubr.bf16.mxu0 %v1025
      %2082 = vmatmul.mubr.bf16.gmra.mrb[0].mxu0 %v1024
      %v2083 = vpop.f32.mrb[0].mxu0
      %v2084 = vadd.f32 %v1923, %v2083
      %v2085 = vpop.f32.mrb[0].mxu0
      %v2086 = vpop.f32.mrb[0].mxu0
      %v2087 = vadd.f32 %v1926, %v2086
      %v2088 = vpop.f32.mrb[0].mxu0
      %2089 = vmatprep.mubr.bf16.mxu0 %v1034
      %2090 = vmatmul.mubr.bf16.gmra.mrb[0].mxu0 %v1033
      %v2091 = vpop.f32.mrb[0].mxu0
      %v2092 = vadd.f32 %v1931, %v2091
      %v2093 = vpop.f32.mrb[0].mxu0
      %v2094 = vpop.f32.mrb[0].mxu0
      %v2095 = vadd.f32 %v1934, %v2094
      %v2096 = vpop.f32.mrb[0].mxu0
      %2097 = vmatprep.mubr.bf16.mxu0 %v1043
      %2098 = vmatmul.mubr.bf16.gmra.mrb[0].mxu0 %v1042
      %v2099 = vpop.f32.mrb[0].mxu0
      %v2100 = vadd.f32 %v1939, %v2099
      %v2101 = vpop.f32.mrb[0].mxu0
      %v2102 = vpop.f32.mrb[0].mxu0
      %v2103 = vadd.f32 %v1942, %v2102
      %v2104 = vpop.f32.mrb[0].mxu0
      %2105 = vdwg.mxu0
      %2106 = vmatprep.subr.bf16.mxu0 0
      %2107 = vmatpush1.bf16.msra.mxu0 %v1527
      %2108 = vmatprep.subr.bf16.mxu0 0
      %2109 = vmatpush1.bf16.msra.mxu0 %v1528
      %2110 = vmatprep.subr.bf16.mxu0 0
      %2111 = vmatpush1.bf16.msra.mxu0 %v1529
      %2112 = vmatprep.subr.bf16.mxu0 0
      %2113 = vmatpush1.bf16.msra.mxu0 %v1530
      %2114 = vmatprep.subr.bf16.mxu0 0
      %2115 = vmatpush1.bf16.msra.mxu0 %v1531
      %2116 = vmatprep.subr.bf16.mxu0 0
      %2117 = vmatpush1.bf16.msra.mxu0 %v1532
      %2118 = vmatprep.subr.bf16.mxu0 0
      %2119 = vmatpush1.bf16.msra.mxu0 %v1533
      %2120 = vmatprep.subr.bf16.mxu0 0
      %2121 = vmatpush1.bf16.msra.mxu0 %v1534
      %2122 = vmatprep.subr.bf16.mxu0 0
      %2123 = vmatpush1.bf16.msra.mxu0 %v1535
      %2124 = vmatprep.subr.bf16.mxu0 0
      %2125 = vmatpush1.bf16.msra.mxu0 %v1536
      %2126 = vmatprep.subr.bf16.mxu0 0
      %2127 = vmatpush1.bf16.msra.mxu0 %v1537
      %2128 = vmatprep.subr.bf16.mxu0 0
      %2129 = vmatpush1.bf16.msra.mxu0 %v1538
      %2130 = vmatprep.subr.bf16.mxu0 0
      %2131 = vmatpush1.bf16.msra.mxu0 %v1539
      %2132 = vmatprep.subr.bf16.mxu0 0
      %2133 = vmatpush1.bf16.msra.mxu0 %v1540
      %2134 = vmatprep.subr.bf16.mxu0 0
      %2135 = vmatpush1.bf16.msra.mxu0 %v1541
      %2136 = vmatprep.subr.bf16.mxu0 0
      %2137 = vmatpush1.bf16.msra.mxu0 %v1542
      %2138 = vmatprep.mubr.bf16.mxu0 %v910
      %2139 = vmatmul.mubr.bf16.gmra.mrb[0].mxu0 %v909
      %v2140 = vpop.f32.mrb[0].mxu0
      %v2141 = vadd.f32 %v1980, %v2140
      %v2142 = vpop.f32.mrb[0].mxu0
      %v2143 = vpop.f32.mrb[0].mxu0
      %v2144 = vadd.f32 %v1983, %v2143
      %v2145 = vpop.f32.mrb[0].mxu0
      %2146 = vmatprep.mubr.bf16.mxu0 %v919
      %2147 = vmatmul.mubr.bf16.gmra.mrb[0].mxu0 %v918
      %v2148 = vpop.f32.mrb[0].mxu0
      %v2149 = vadd.f32 %v1988, %v2148
      %v2150 = vpop.f32.mrb[0].mxu0
      %v2151 = vpop.f32.mrb[0].mxu0
      %v2152 = vadd.f32 %v1991, %v2151
      %v2153 = vpop.f32.mrb[0].mxu0
      %2154 = vmatprep.mubr.bf16.mxu0 %v928
      %2155 = vmatmul.mubr.bf16.gmra.mrb[0].mxu0 %v927
      %v2156 = vpop.f32.mrb[0].mxu0
      %v2157 = vadd.f32 %v1996, %v2156
      %v2158 = vpop.f32.mrb[0].mxu0
      %v2159 = vpop.f32.mrb[0].mxu0
      %v2160 = vadd.f32 %v1999, %v2159
      %v2161 = vpop.f32.mrb[0].mxu0
      %2162 = vmatprep.mubr.bf16.mxu0 %v937
      %2163 = vmatmul.mubr.bf16.gmra.mrb[0].mxu0 %v936
      %v2164 = vpop.f32.mrb[0].mxu0
      %v2165 = vadd.f32 %v2004, %v2164
      %v2166 = vpop.f32.mrb[0].mxu0
      %v2167 = vpop.f32.mrb[0].mxu0
      %v2168 = vadd.f32 %v2007, %v2167
      %v2169 = vpop.f32.mrb[0].mxu0
      %2170 = vmatprep.mubr.bf16.mxu0 %v946
      %2171 = vmatmul.mubr.bf16.gmra.mrb[0].mxu0 %v945
      %v2172 = vpop.f32.mrb[0].mxu0
      %v2173 = vadd.f32 %v2012, %v2172
      %v2174 = vpop.f32.mrb[0].mxu0
      %v2175 = vpop.f32.mrb[0].mxu0
      %v2176 = vadd.f32 %v2015, %v2175
      %v2177 = vpop.f32.mrb[0].mxu0
      %2178 = vmatprep.mubr.bf16.mxu0 %v955
      %2179 = vmatmul.mubr.bf16.gmra.mrb[0].mxu0 %v954
      %v2180 = vpop.f32.mrb[0].mxu0
      %v2181 = vadd.f32 %v2020, %v2180
      %v2182 = vpop.f32.mrb[0].mxu0
      %v2183 = vpop.f32.mrb[0].mxu0
      %v2184 = vadd.f32 %v2023, %v2183
      %v2185 = vpop.f32.mrb[0].mxu0
      %2186 = vmatprep.mubr.bf16.mxu0 %v964
      %2187 = vmatmul.mubr.bf16.gmra.mrb[0].mxu0 %v963
      %v2188 = vpop.f32.mrb[0].mxu0
      %v2189 = vadd.f32 %v2028, %v2188
      %v2190 = vpop.f32.mrb[0].mxu0
      %v2191 = vpop.f32.mrb[0].mxu0
      %v2192 = vadd.f32 %v2031, %v2191
      %v2193 = vpop.f32.mrb[0].mxu0
      %2194 = vmatprep.mubr.bf16.mxu0 %v973
      %2195 = vmatmul.mubr.bf16.gmra.mrb[0].mxu0 %v972
      %v2196 = vpop.f32.mrb[0].mxu0
      %v2197 = vadd.f32 %v2036, %v2196
      %v2198 = vpop.f32.mrb[0].mxu0
      %v2199 = vpop.f32.mrb[0].mxu0
      %v2200 = vadd.f32 %v2039, %v2199
      %v2201 = vpop.f32.mrb[0].mxu0
      %2202 = vmatprep.mubr.bf16.mxu0 %v982
      %2203 = vmatmul.mubr.bf16.gmra.mrb[0].mxu0 %v981
      %v2204 = vpop.f32.mrb[0].mxu0
      %v2205 = vadd.f32 %v2044, %v2204
      %v2206 = vpop.f32.mrb[0].mxu0
      %v2207 = vpop.f32.mrb[0].mxu0
      %v2208 = vadd.f32 %v2047, %v2207
      %v2209 = vpop.f32.mrb[0].mxu0
      %2210 = vmatprep.mubr.bf16.mxu0 %v991
      %2211 = vmatmul.mubr.bf16.gmra.mrb[0].mxu0 %v990
      %v2212 = vpop.f32.mrb[0].mxu0
      %v2213 = vadd.f32 %v2052, %v2212
      %v2214 = vpop.f32.mrb[0].mxu0
      %v2215 = vpop.f32.mrb[0].mxu0
      %v2216 = vadd.f32 %v2055, %v2215
      %v2217 = vpop.f32.mrb[0].mxu0
      %2218 = vmatprep.mubr.bf16.mxu0 %v1000
      %2219 = vmatmul.mubr.bf16.gmra.mrb[0].mxu0 %v999
      %v2220 = vpop.f32.mrb[0].mxu0
      %v2221 = vadd.f32 %v2060, %v2220
      %v2222 = vpop.f32.mrb[0].mxu0
      %v2223 = vpop.f32.mrb[0].mxu0
      %v2224 = vadd.f32 %v2063, %v2223
      %v2225 = vpop.f32.mrb[0].mxu0
      %2226 = vmatprep.mubr.bf16.mxu0 %v1009
      %2227 = vmatmul.mubr.bf16.gmra.mrb[0].mxu0 %v1008
      %v2228 = vpop.f32.mrb[0].mxu0
      %v2229 = vadd.f32 %v2068, %v2228
      %v2230 = vpop.f32.mrb[0].mxu0
      %v2231 = vpop.f32.mrb[0].mxu0
      %v2232 = vadd.f32 %v2071, %v2231
      %v2233 = vpop.f32.mrb[0].mxu0
      %2234 = vmatprep.mubr.bf16.mxu0 %v1018
      %2235 = vmatmul.mubr.bf16.gmra.mrb[0].mxu0 %v1017
      %v2236 = vpop.f32.mrb[0].mxu0
      %v2237 = vadd.f32 %v2076, %v2236
      %v2238 = vpop.f32.mrb[0].mxu0
      %v2239 = vpop.f32.mrb[0].mxu0
      %v2240 = vadd.f32 %v2079, %v2239
      %v2241 = vpop.f32.mrb[0].mxu0
      %2242 = vmatprep.mubr.bf16.mxu0 %v1027
      %2243 = vmatmul.mubr.bf16.gmra.mrb[0].mxu0 %v1026
      %v2244 = vpop.f32.mrb[0].mxu0
      %v2245 = vadd.f32 %v2084, %v2244
      %v2246 = vpop.f32.mrb[0].mxu0
      %v2247 = vpop.f32.mrb[0].mxu0
      %v2248 = vadd.f32 %v2087, %v2247
      %v2249 = vpop.f32.mrb[0].mxu0
      %2250 = vmatprep.mubr.bf16.mxu0 %v1036
      %2251 = vmatmul.mubr.bf16.gmra.mrb[0].mxu0 %v1035
      %v2252 = vpop.f32.mrb[0].mxu0
      %v2253 = vadd.f32 %v2092, %v2252
      %v2254 = vpop.f32.mrb[0].mxu0
      %v2255 = vpop.f32.mrb[0].mxu0
      %v2256 = vadd.f32 %v2095, %v2255
      %v2257 = vpop.f32.mrb[0].mxu0
      %2258 = vmatprep.mubr.bf16.mxu0 %v1045
      %2259 = vmatmul.mubr.bf16.gmra.mrb[0].mxu0 %v1044
      %v2260 = vpop.f32.mrb[0].mxu0
      %v2261 = vadd.f32 %v2100, %v2260
      %v2262 = vpop.f32.mrb[0].mxu0
      %v2263 = vpop.f32.mrb[0].mxu0
      %v2264 = vadd.f32 %v2103, %v2263
      %v2265 = vpop.f32.mrb[0].mxu0
      %2266 = vdwg.mxu0
      %2267 = vmatprep.subr.bf16.mxu0 0
      %2268 = vmatpush1.bf16.msra.mxu0 %v1543
      %2269 = vmatprep.subr.bf16.mxu0 0
      %2270 = vmatpush1.bf16.msra.mxu0 %v1544
      %2271 = vmatprep.subr.bf16.mxu0 0
      %2272 = vmatpush1.bf16.msra.mxu0 %v1545
      %2273 = vmatprep.subr.bf16.mxu0 0
      %2274 = vmatpush1.bf16.msra.mxu0 %v1546
      %2275 = vmatprep.subr.bf16.mxu0 0
      %2276 = vmatpush1.bf16.msra.mxu0 %v1547
      %2277 = vmatprep.subr.bf16.mxu0 0
      %2278 = vmatpush1.bf16.msra.mxu0 %v1548
      %2279 = vmatprep.subr.bf16.mxu0 0
      %2280 = vmatpush1.bf16.msra.mxu0 %v1549
      %2281 = vmatprep.subr.bf16.mxu0 0
      %2282 = vmatpush1.bf16.msra.mxu0 %v1550
      %2283 = vmatprep.subr.bf16.mxu0 0
      %2284 = vmatpush1.bf16.msra.mxu0 0
      %2285 = vmatprep.subr.bf16.mxu0 0
      %2286 = vmatpush1.bf16.msra.mxu0 0
      %2287 = vmatprep.subr.bf16.mxu0 0
      %2288 = vmatpush1.bf16.msra.mxu0 0
      %2289 = vmatprep.subr.bf16.mxu0 0
      %2290 = vmatpush1.bf16.msra.mxu0 0
      %2291 = vmatprep.subr.bf16.mxu0 0
      %2292 = vmatpush1.bf16.msra.mxu0 0
      %2293 = vmatprep.subr.bf16.mxu0 0
      %2294 = vmatpush1.bf16.msra.mxu0 0
      %2295 = vmatprep.subr.bf16.mxu0 0
      %2296 = vmatpush1.bf16.msra.mxu0 0
      %2297 = vmatprep.subr.bf16.mxu0 0
      %2298 = vmatpush1.bf16.msra.mxu0 0
      %2299 = vmatprep.mubr.bf16.mxu0 0
      %2300 = vmatmul.mubr.bf16.gmra.mrb[0].mxu0 %v911
      %v2301 = vpop.f32.mrb[0].mxu0
      %v2302 = vadd.f32 %v2141, %v2301
      %v2303 = vpop.f32.mrb[0].mxu0
      %v2304 = vpop.f32.mrb[0].mxu0
      %v2305 = vadd.f32 %v2144, %v2304
      %v2306 = vpop.f32.mrb[0].mxu0
      %2307 = vmatprep.mubr.bf16.mxu0 0
      %2308 = vmatmul.mubr.bf16.gmra.mrb[0].mxu0 %v920
      %v2309 = vpop.f32.mrb[0].mxu0
      %v2310 = vadd.f32 %v2149, %v2309
      %v2311 = vpop.f32.mrb[0].mxu0
      %v2312 = vpop.f32.mrb[0].mxu0
      %v2313 = vadd.f32 %v2152, %v2312
      %v2314 = vpop.f32.mrb[0].mxu0
      %2315 = vmatprep.mubr.bf16.mxu0 0
      %2316 = vmatmul.mubr.bf16.gmra.mrb[0].mxu0 %v929
      %v2317 = vpop.f32.mrb[0].mxu0
      %v2318 = vadd.f32 %v2157, %v2317
      %v2319 = vpop.f32.mrb[0].mxu0
      %v2320 = vpop.f32.mrb[0].mxu0
      %v2321 = vadd.f32 %v2160, %v2320
      %v2322 = vpop.f32.mrb[0].mxu0
      %2323 = vmatprep.mubr.bf16.mxu0 0
      %2324 = vmatmul.mubr.bf16.gmra.mrb[0].mxu0 %v938
      %v2325 = vpop.f32.mrb[0].mxu0
      %v2326 = vadd.f32 %v2165, %v2325
      %v2327 = vpop.f32.mrb[0].mxu0
      %v2328 = vpop.f32.mrb[0].mxu0
      %v2329 = vadd.f32 %v2168, %v2328
      %v2330 = vpop.f32.mrb[0].mxu0
      %2331 = vmatprep.mubr.bf16.mxu0 0
      %2332 = vmatmul.mubr.bf16.gmra.mrb[0].mxu0 %v947
      %v2333 = vpop.f32.mrb[0].mxu0
      %v2334 = vadd.f32 %v2173, %v2333
      %v2335 = vpop.f32.mrb[0].mxu0
      %v2336 = vpop.f32.mrb[0].mxu0
      %v2337 = vadd.f32 %v2176, %v2336
      %v2338 = vpop.f32.mrb[0].mxu0
      %2339 = vmatprep.mubr.bf16.mxu0 0
      %2340 = vmatmul.mubr.bf16.gmra.mrb[0].mxu0 %v956
      %v2341 = vpop.f32.mrb[0].mxu0
      %v2342 = vadd.f32 %v2181, %v2341
      %v2343 = vpop.f32.mrb[0].mxu0
      %v2344 = vpop.f32.mrb[0].mxu0
      %v2345 = vadd.f32 %v2184, %v2344
      %v2346 = vpop.f32.mrb[0].mxu0
      %2347 = vmatprep.mubr.bf16.mxu0 0
      %2348 = vmatmul.mubr.bf16.gmra.mrb[0].mxu0 %v965
      %v2349 = vpop.f32.mrb[0].mxu0
      %v2350 = vadd.f32 %v2189, %v2349
      %v2351 = vpop.f32.mrb[0].mxu0
      %v2352 = vpop.f32.mrb[0].mxu0
      %v2353 = vadd.f32 %v2192, %v2352
      %v2354 = vpop.f32.mrb[0].mxu0
      %2355 = vmatprep.mubr.bf16.mxu0 0
      %2356 = vmatmul.mubr.bf16.gmra.mrb[0].mxu0 %v974
      %v2357 = vpop.f32.mrb[0].mxu0
      %v2358 = vadd.f32 %v2197, %v2357
      %v2359 = vpop.f32.mrb[0].mxu0
      %v2360 = vpop.f32.mrb[0].mxu0
      %v2361 = vadd.f32 %v2200, %v2360
      %v2362 = vpop.f32.mrb[0].mxu0
      %2363 = vmatprep.mubr.bf16.mxu0 0
      %2364 = vmatmul.mubr.bf16.gmra.mrb[0].mxu0 %v983
      %v2365 = vpop.f32.mrb[0].mxu0
      %v2366 = vadd.f32 %v2205, %v2365
      %v2367 = vpop.f32.mrb[0].mxu0
      %v2368 = vpop.f32.mrb[0].mxu0
      %v2369 = vadd.f32 %v2208, %v2368
      %v2370 = vpop.f32.mrb[0].mxu0
      %2371 = vmatprep.mubr.bf16.mxu0 0
      %2372 = vmatmul.mubr.bf16.gmra.mrb[0].mxu0 %v992
      %v2373 = vpop.f32.mrb[0].mxu0
      %v2374 = vadd.f32 %v2213, %v2373
      %v2375 = vpop.f32.mrb[0].mxu0
      %v2376 = vpop.f32.mrb[0].mxu0
      %v2377 = vadd.f32 %v2216, %v2376
      %v2378 = vpop.f32.mrb[0].mxu0
      %2379 = vmatprep.mubr.bf16.mxu0 0
      %2380 = vmatmul.mubr.bf16.gmra.mrb[0].mxu0 %v1001
      %v2381 = vpop.f32.mrb[0].mxu0
      %v2382 = vadd.f32 %v2221, %v2381
      %v2383 = vpop.f32.mrb[0].mxu0
      %v2384 = vpop.f32.mrb[0].mxu0
      %v2385 = vadd.f32 %v2224, %v2384
      %v2386 = vpop.f32.mrb[0].mxu0
      %2387 = vmatprep.mubr.bf16.mxu0 0
      %2388 = vmatmul.mubr.bf16.gmra.mrb[0].mxu0 %v1010
      %v2389 = vpop.f32.mrb[0].mxu0
      %v2390 = vadd.f32 %v2229, %v2389
      %v2391 = vpop.f32.mrb[0].mxu0
      %v2392 = vpop.f32.mrb[0].mxu0
      %v2393 = vadd.f32 %v2232, %v2392
      %v2394 = vpop.f32.mrb[0].mxu0
      %2395 = vmatprep.mubr.bf16.mxu0 0
      %2396 = vmatmul.mubr.bf16.gmra.mrb[0].mxu0 %v1019
      %v2397 = vpop.f32.mrb[0].mxu0
      %v2398 = vadd.f32 %v2237, %v2397
      %v2399 = vpop.f32.mrb[0].mxu0
      %v2400 = vpop.f32.mrb[0].mxu0
      %v2401 = vadd.f32 %v2240, %v2400
      %v2402 = vpop.f32.mrb[0].mxu0
      %2403 = vmatprep.mubr.bf16.mxu0 0
      %2404 = vmatmul.mubr.bf16.gmra.mrb[0].mxu0 %v1028
      %v2405 = vpop.f32.mrb[0].mxu0
      %v2406 = vadd.f32 %v2245, %v2405
      %v2407 = vpop.f32.mrb[0].mxu0
      %v2408 = vpop.f32.mrb[0].mxu0
      %v2409 = vadd.f32 %v2248, %v2408
      %v2410 = vpop.f32.mrb[0].mxu0
      %2411 = vmatprep.mubr.bf16.mxu0 0
      %2412 = vmatmul.mubr.bf16.gmra.mrb[0].mxu0 %v1037
      %v2413 = vpop.f32.mrb[0].mxu0
      %v2414 = vadd.f32 %v2253, %v2413
      %v2415 = vpop.f32.mrb[0].mxu0
      %v2416 = vpop.f32.mrb[0].mxu0
      %v2417 = vadd.f32 %v2256, %v2416
      %v2418 = vpop.f32.mrb[0].mxu0
      %2419 = vmatprep.mubr.bf16.mxu0 0
      %2420 = vmatmul.mubr.bf16.gmra.mrb[0].mxu0 %v1046
      %v2421 = vpop.f32.mrb[0].mxu0
      %v2422 = vadd.f32 %v2261, %v2421
      %v2423 = vpop.f32.mrb[0].mxu0
      %v2424 = vpop.f32.mrb[0].mxu0
      %v2425 = vadd.f32 %v2264, %v2424
      %v2426 = vpop.f32.mrb[0].mxu0
      %2427 = vdwg.mxu0
      %2428 = vst [vmem:[%s148] sm:$0xff] %v2302
      %2429 = vst [vmem:[%s148 + $0x8] sm:$0xff] %v2305
      %2430 = vst [vmem:[%s148 + $0x10] sm:$0xff] %v2310
      %2431 = vst [vmem:[%s148 + $0x18] sm:$0xff] %v2313
      %2432 = vst [vmem:[%s148 + $0x20] sm:$0xff] %v2318
      %2433 = vst [vmem:[%s148 + $0x28] sm:$0xff] %v2321
      %2434 = vst [vmem:[%s148 + $0x30] sm:$0xff] %v2326
      %2435 = vst [vmem:[%s148 + $0x38] sm:$0xff] %v2329
      %2436 = vst [vmem:[%s148 + $0x40] sm:$0xff] %v2334
      %2437 = vst [vmem:[%s148 + $0x48] sm:$0xff] %v2337
      %2438 = vst [vmem:[%s148 + $0x50] sm:$0xff] %v2342
      %2439 = vst [vmem:[%s148 + $0x58] sm:$0xff] %v2345
      %2440 = vst [vmem:[%s148 + $0x60] sm:$0xff] %v2350
      %2441 = vst [vmem:[%s148 + $0x68] sm:$0xff] %v2353
      %2442 = vst [vmem:[%s148 + $0x70] sm:$0xff] %v2358
      %2443 = vst [vmem:[%s148 + $0x78] sm:$0xff] %v2361
      %2444 = vst [vmem:[%s148 + $0x80] sm:$0xff] %v2366
      %2445 = vst [vmem:[%s148 + $0x88] sm:$0xff] %v2369
      %2446 = vst [vmem:[%s148 + $0x90] sm:$0xff] %v2374
      %2447 = vst [vmem:[%s148 + $0x98] sm:$0xff] %v2377
      %2448 = vst [vmem:[%s148 + $0xa0] sm:$0xff] %v2382
      %2449 = vst [vmem:[%s148 + $0xa8] sm:$0xff] %v2385
      %2450 = vst [vmem:[%s148 + $0xb0] sm:$0xff] %v2390
      %2451 = vst [vmem:[%s148 + $0xb8] sm:$0xff] %v2393
      %2452 = vst [vmem:[%s148 + $0xc0] sm:$0xff] %v2398
      %2453 = vst [vmem:[%s148 + $0xc8] sm:$0xff] %v2401
      %2454 = vst [vmem:[%s148 + $0xd0] sm:$0xff] %v2406
      %2455 = vst [vmem:[%s148 + $0xd8] sm:$0xff] %v2409
      %2456 = vst [vmem:[%s148 + $0xe0] sm:$0xff] %v2414
      %2457 = vst [vmem:[%s148 + $0xe8] sm:$0xff] %v2417
      %2458 = vst [vmem:[%s148 + $0xf0] sm:$0xff] %v2422
      %2459 = vst [vmem:[%s148 + $0xf8] sm:$0xff] %v2425
      %s2460 = smul.u32 32, %s13
      %p2461 = scmp.lt.s32.totalorder %s2460, 63
      %s2462 = scalar_select %p2461, %s2460, 63
      %s2463 = smul.addr %s2462, 8
      %s2464 = scalar_lea.vmem %s2, %s2463
      // Predicated region
      $region29: #{bottleneck_forward.7} parent=27 // pred_check
        %p2465 = pneg %p78
      $region30: #{bottleneck_forward.7} parent=27 // pred_check_branch
        %2467 = sbr.rel (%p2465) target = $region32
      $region31: #{bottleneck_forward.7} parent=27 // pred_region
        %s2468 = smul.u32 32, %s13
      $region32: #{bottleneck_forward.7} parent=27 // pred_fallthru
        _
    $region28: #{bottleneck_forward.7} parent=5 // pred_fallthru
      _
    %p2469 = scmp.le.s32.totalorder 2, %s8
    // Predicated region
    $region33: #{bottleneck_forward.7} parent=5 // pred_check
      %p2470 = pneg %p2469
    $region34: #{bottleneck_forward.7} parent=5 // pred_check_branch
      %2472 = sbr.rel (%p2470) target = $region36
    $region35: #{bottleneck_forward.7} parent=5 // pred_region
      %s2473 = ssub.s32 %s8, 2
      // Predicated region
      $region37: #{bottleneck_forward.7} parent=35 // pred_check
        %p2474 = pneg %p84
      $region38: #{bottleneck_forward.7} parent=35 // pred_check_branch
        %2476 = sbr.rel (%p2474) target = $region40
      $region39: #{bottleneck_forward.7} parent=35 // pred_region
        %s2477 = smul.u32 32, %s14
        %p2478 = scmp.lt.s32.totalorder %s2477, 63
        %s2479 = scalar_select %p2478, %s2477, 63
        %s2480 = smul.addr %s2479, 8
        %s2481 = scalar_lea.vmem %s2, %s2480
      $region40: #{bottleneck_forward.7} parent=35 // pred_fallthru
        _
    $region36: #{bottleneck_forward.7} parent=5 // pred_fallthru
      _
  $region6: #{bottleneck_forward.7} parent=0 // loop_footer
    %s12 = sadd.s32 1, %s8
  $region7: #{bottleneck_forward.7} parent=0 // loop_footer_branch
    %7 = sbr.rel target = $region3
  $region8: #{bottleneck_forward.7} parent=0 // loop_exit
    _

</llo_original>
